<compile_context>
chip_gen: v7x
topology: tpu7x:2x2x1
jax: 0.10.0
libtpu: 0.0.40
codegen_flags: <defaults>
</compile_context>

<pallas_src>
import numpy as np
import jax
import jax.numpy as jnp
from jax import lax
from jax.experimental import pallas as pl
from jax.experimental.pallas import tpu as pltpu


def _orthogonal_2d(key, rows, cols, dtype=jnp.float32):
    """Rows-orthonormal matrix (rows <= cols), akin to torch.nn.init.orthogonal_."""
    a = jax.random.normal(key, (cols, rows), dtype)
    q, _ = jnp.linalg.qr(a)            # (cols, rows), orthonormal columns
    return q.T                          # (rows, cols), orthonormal rows


def _default_batch_block(n):
    # Give the pipeline >= 2 grid steps (>= 4 when possible) so input DMA /
    # compute / output writeback overlap, while keeping blocks as large as
    # possible to amortize the ~0.35 us per-step overhead.
    if n >= 4 and n % 4 == 0:
        return n // 4
    if n >= 2 and n % 2 == 0:
        return n // 2
    return 1


def _build_kernel(NB, D, H, W, Cx, Ch, KD, KH, dil, pad):
    """Fused banded ConvGRU-cell kernel processing NB batch samples per step."""
    dd, dh = dil                # D/H dilation (W taps live in the band)
    pd, ph = pad                # D/H zero padding (W padding lives in the band)
    Dp, Hp = D + 2 * pd, H + 2 * ph
    WCh, WCx = W * Ch, W * Cx
    Klhs = WCh + WCx            # slab lane width: [h lanes | x lanes]
    M = NB * D * H              # matmul rows (W stays fused in the lanes)

    def kernel(x_ref, h_ref, bg_ref, bo_ref, bias_ref, out_ref, slab):
        # ---- build the D/H zero-padded, lane-dense slab [h | x] ------------
        # Halo is re-zeroed every step (cheap thin shell) so there is no
        # cross-step scratch dependence -> the grid axis can be "parallel".
        if pd > 0:
            slab[:, 0:pd, :, :] = jnp.zeros((NB, pd, Hp, Klhs), jnp.bfloat16)
            slab[:, pd + D:Dp, :, :] = jnp.zeros((NB, pd, Hp, Klhs), jnp.bfloat16)
        if ph > 0:
            slab[:, :, 0:ph, :] = jnp.zeros((NB, Dp, ph, Klhs), jnp.bfloat16)
            slab[:, :, ph + H:Hp, :] = jnp.zeros((NB, Dp, ph, Klhs), jnp.bfloat16)

        h_bf = h_ref[...]                                   # (NB, D, H, W*Ch) bf16
        slab[:, pd:pd + D, ph:ph + H, 0:WCh] = h_bf         # 256-lane-wide store
        slab[:, pd:pd + D, ph:ph + H, WCh:Klhs] = x_ref[...]

        # ---- fused update / reset / out(x-part) gates ----------------------
        # KD*KH accumulating banded matmuls: K = W*(Cx+Ch), N = 3*W*Ch.
        acc = None
        for ikd in range(KD):
            for ikh in range(KH):
                t = ikd * KH + ikh
                lhs = slab[:, ikd * dd:ikd * dd + D, ikh * dh:ikh * dh + H, :]
                lhs = lhs.reshape(M, Klhs)
                part = jnp.dot(lhs, bg_ref[t],
                               preferred_element_type=jnp.float32)
                acc = part if acc is None else acc + part
        acc = acc + bias_ref[...]                           # (M, 3*W*Ch) f32

        upd = jax.nn.sigmoid(acc[:, 0:WCh])                 # lane offset 0
        rst = jax.nn.sigmoid(acc[:, WCh:2 * WCh])           # lane offset 256

        # ---- out gate: overwrite the h lanes of the slab with h*reset ------
        h32 = h_bf.reshape(M, WCh).astype(jnp.float32)
        hr = (h32 * rst).astype(jnp.bfloat16)
        slab[:, pd:pd + D, ph:ph + H, 0:WCh] = hr.reshape(NB, D, H, WCh)

        o_acc = acc[:, 2 * WCh:3 * WCh]                     # x part + bias_o
        for ikd in range(KD):
            for ikh in range(KH):
                t = ikd * KH + ikh
                lhs = slab[:, ikd * dd:ikd * dd + D, ikh * dh:ikh * dh + H, 0:WCh]
                lhs = lhs.reshape(M, WCh)
                o_acc = o_acc + jnp.dot(lhs, bo_ref[t],
                                        preferred_element_type=jnp.float32)
        out_gate = jnp.tanh(o_acc)

        # ---- GRU blend in f32; lane-dense (W*Ch-wide) output store ---------
        h_new = h32 * (1.0 - upd) + out_gate * upd
        out_ref[...] = h_new.reshape(NB, D, H, WCh)

    return kernel


def convgru_cell_pallas(x_ndhwc, h_ndhwc, band_g, band_o, bias_row,
                        kernel_size, dilation, batch_block=None):
    N, D, H, W, Cx = x_ndhwc.shape
    Ch = h_ndhwc.shape[-1]
    KD, KH, KW = kernel_size
    dd, dh, dw = dilation
    pd, ph, pw = [k // 2 if k > 1 else 0 for k in kernel_size]
    # The GRU blend (h*(1-u)+o*u) requires conv output spatial == input spatial.
    assert (D + 2 * pd - dd * (KD - 1),
            H + 2 * ph - dh * (KH - 1),
            W + 2 * pw - dw * (KW - 1)) == (D, H, W)

    Dp, Hp = D + 2 * pd, H + 2 * ph
    WCh, WCx = W * Ch, W * Cx
    Klhs = WCh + WCx
    Kdh = KD * KH
    assert band_g.shape == (Kdh, Klhs, 3 * WCh)
    assert band_o.shape == (Kdh, WCh, WCh)

    NB = batch_block or _default_batch_block(N)
    assert N % NB == 0, "batch_block must divide the batch size"

    # Straight NCDHW -> NDHWC bf16 (done by caller) -> lane-fused (w, c).
    x_in = x_ndhwc.astype(jnp.bfloat16).reshape(N, D, H, WCx)
    h_in = h_ndhwc.astype(jnp.bfloat16).reshape(N, D, H, WCh)

    kernel = _build_kernel(NB, D, H, W, Cx, Ch, KD, KH, (dd, dh), (pd, ph))

    blk4 = lambda b: (b, 0, 0, 0)
    cst3 = lambda b: (0, 0, 0)

    out = pl.pallas_call(
        kernel,
        out_shape=jax.ShapeDtypeStruct((N, D, H, WCh), jnp.float32),
        grid_spec=pltpu.PrefetchScalarGridSpec(
            num_scalar_prefetch=0,
            grid=(N // NB,),
            in_specs=[
                pl.BlockSpec((NB, D, H, WCx), blk4),            # x   (bf16)
                pl.BlockSpec((NB, D, H, WCh), blk4),            # h   (bf16)
                pl.BlockSpec((Kdh, Klhs, 3 * WCh), cst3),       # gate band (u|r|o)
                pl.BlockSpec((Kdh, WCh, WCh), cst3),            # out-gate h*r band
                pl.BlockSpec((1, 3 * WCh), lambda b: (0, 0)),   # fused bias row
            ],
            out_specs=pl.BlockSpec((NB, D, H, WCh), blk4),
            scratch_shapes=[
                pltpu.VMEM((NB, Dp, Hp, Klhs), jnp.bfloat16),   # padded [h|x] slab
            ],
        ),
        # Per-step halo zeroing removes cross-step scratch deps -> megacore-safe.
        compiler_params=pltpu.CompilerParams(dimension_semantics=("parallel",)),
    )(x_in, h_in, band_g, band_o, bias_row)

    return out.reshape(N, D, H, W, Ch)


class ConvGRU:
    """JAX/Pallas port of the PyTorch ConvGRU module (forward pass only)."""

    def __init__(self, input_size, hidden_size, kernel_size, dilation, padding,
                 max_pool, key):
        # `padding` ctor arg is ignored, matching the PyTorch module (it
        # recomputes p = k//2 internally).
        self.input_size = input_size
        self.hidden_size = hidden_size
        self.kernel_size = tuple(kernel_size)
        self.dilation = ((dilation,) * 3 if isinstance(dilation, int)
                         else tuple(dilation))
        if max_pool:
            self.max_pool = ((1, max_pool, max_pool)
                             if isinstance(max_pool, int) else tuple(max_pool))
        else:
            self.max_pool = False

        KD, KH, KW = self.kernel_size
        Kt = KD * KH * KW
        cin = input_size + hidden_size
        keys = jax.random.split(key, 6)
        self._torch_w = {}
        for i, g in enumerate(("u", "r", "o")):
            w2d = _orthogonal_2d(keys[i], hidden_size, cin * Kt)
            self._torch_w[g] = np.asarray(w2d).reshape(
                hidden_size, cin, KD, KH, KW)                  # torch OIDHW
            b = 1e-4 * jax.random.normal(keys[3 + i], (hidden_size,), jnp.float32)
            self._torch_w["b" + g] = np.asarray(b)
        self._band_cache = {}

    # -- banded weight construction (host-side, cached per spatial W) -------
    def _banded_params(self, W):
        if W in self._band_cache:
            return self._band_cache[W]
        KD, KH, KW = self.kernel_size
        dd, dh, dw = self.dilation
        pw = KW // 2 if KW > 1 else 0
        Cx, Ch = self.input_size, self.hidden_size
        Kdh = KD * KH
        WCh, WCx = W * Ch, W * Cx

        band_g = np.zeros((Kdh, WCh + WCx, 3 * WCh), np.float32)
        band_o = np.zeros((Kdh, WCh, WCh), np.float32)
        for g, name in enumerate(("u", "r", "o")):
            wg = self._torch_w[name]                 # (Ch, Cx+Ch, KD, KH, KW)
            for ikd in range(KD):
                for ikh in range(KH):
                    t = ikd * KH + ikh
                    for ikw in range(KW):
                        blk_x = wg[:, :Cx, ikd, ikh, ikw].T    # (Cx, Ch) [ci, co]
                        blk_h = wg[:, Cx:, ikd, ikh, ikw].T    # (Ch, Ch) [ci, co]
                        for w in range(W):
                            w_in = w + ikw * dw - pw
                            if not (0 <= w_in < W):            # implicit W zero-pad
                                continue
                            col = g * WCh + w * Ch
                            band_g[t, WCh + w_in * Cx:WCh + (w_in + 1) * Cx,
                                   col:col + Ch] = blk_x
                            if g < 2:                          # update / reset use h
                                band_g[t, w_in * Ch:(w_in + 1) * Ch,
                                       col:col + Ch] = blk_h
                            else:                              # out gate uses h*reset
                                band_o[t, w_in * Ch:(w_in + 1) * Ch,
                                       w * Ch:(w + 1) * Ch] = blk_h

        bias_row = np.concatenate(
            [np.tile(self._torch_w["b" + n], W) for n in ("u", "r", "o")]
        ).reshape(1, 3 * WCh).astype(np.float32)

        packed = (jnp.asarray(band_g, jnp.bfloat16),
                  jnp.asarray(band_o, jnp.bfloat16),
                  jnp.asarray(bias_row, jnp.float32))
        self._band_cache[W] = packed
        return packed

    def _maybe_pool(self, x):
        if not self.max_pool:
            return x
        # F.max_pool3d(x, k): stride = kernel, no padding, floor mode.
        return lax.reduce_window(
            x, -jnp.inf, lax.max,
            window_dimensions=(1, 1) + self.max_pool,
            window_strides=(1, 1) + self.max_pool,
            padding="VALID")

    def __call__(self, x, h=None, batch_block=None):
        # x: NCDHW, h: NCDHW (already at pooled spatial size) or None.
        x = self._maybe_pool(x)
        N = x.shape[0]
        D, H, W = x.shape[2:]
        if h is None:
            h = jnp.zeros((N, self.hidden_size, D, H, W), x.dtype)
        x_cl = jnp.transpose(x, (0, 2, 3, 4, 1))    # NDHWC (bf16 cast in wrapper)
        h_cl = jnp.transpose(h, (0, 2, 3, 4, 1))
        band_g, band_o, bias_row = self._banded_params(W)
        out_cl = convgru_cell_pallas(x_cl, h_cl, band_g, band_o, bias_row,
                                     self.kernel_size, self.dilation,
                                     batch_block=batch_block)
        return jnp.transpose(out_cl, (0, 4, 1, 2, 3))

    # Pure-JAX reference mirroring the PyTorch forward (used for validation).
    def reference(self, x, h=None):
        pd_, ph_, pw_ = [k // 2 if k > 1 else 0 for k in self.kernel_size]

        def conv3d(inp, w, b):
            out = lax.conv_general_dilated(
                inp, jnp.asarray(w), window_strides=(1, 1, 1),
                padding=[(pd_, pd_), (ph_, ph_), (pw_, pw_)],
                rhs_dilation=self.dilation,
                dimension_numbers=("NCDHW", "OIDHW", "NCDHW"))
            return out + jnp.asarray(b).reshape(1, -1, 1, 1, 1)

        x = self._maybe_pool(x)
        N = x.shape[0]
        if h is None:
            h = jnp.zeros((N, self.hidden_size) + x.shape[2:], x.dtype)
        stacked = jnp.concatenate([x, h], axis=1)
        upd = jax.nn.sigmoid(conv3d(stacked, self._torch_w["u"], self._torch_w["bu"]))
        rst = jax.nn.sigmoid(conv3d(stacked, self._torch_w["r"], self._torch_w["br"]))
        out = jnp.tanh(conv3d(jnp.concatenate([x, h * rst], axis=1),
                              self._torch_w["o"], self._torch_w["bo"]))
        return h * (1.0 - upd) + out * upd


if __name__ == "__main__":
    key = jax.random.PRNGKey(0)
    kx, kh, kp = jax.random.split(key, 3)

    N, Cin, Chid = 2, 4, 32
    D, H, W = 4, 16, 16
    x = jax.random.normal(kx, (N, Cin, D, H, W), jnp.float32)
    # Hidden state already at pooled spatial size (max_pool=2 halves H and W).
    h = jax.random.normal(kh, (N, Chid, D, H // 2, W // 2), jnp.float32)

    cell = ConvGRU(input_size=Cin, hidden_size=Chid, kernel_size=(1, 3, 3),
                   dilation=(1, 1, 1), padding=None, max_pool=2, key=kp)

    out = jax.block_until_ready(cell(x, h))          # grid of 2 steps -> pipelined
    ref = jax.block_until_ready(cell.reference(x, h))

    assert out.shape == ref.shape == (N, Chid, D, H // 2, W // 2)
    max_err = float(jnp.max(jnp.abs(out - ref)))
    assert bool(jnp.allclose(out, ref, atol=5e-2, rtol=5e-2)), max_err
    print("KERNEL_OK")
</pallas_src>

<mosaic_0001>
module attributes {stable_mosaic.version = 11 : i64} {
  func.func @kernel(%arg0: i32, %arg1: memref<1x4x8x32xbf16, #tpu.memory_space<vmem>>, %arg2: memref<1x4x8x256xbf16, #tpu.memory_space<vmem>>, %arg3: memref<3x288x768xbf16, #tpu.memory_space<vmem>>, %arg4: memref<3x256x256xbf16, #tpu.memory_space<vmem>>, %arg5: memref<1x768xf32, #tpu.memory_space<vmem>>, %arg6: memref<1x4x8x256xf32, #tpu.memory_space<vmem>>, %arg7: memref<1x4x10x288xbf16, #tpu.memory_space<vmem>>) attributes {dimension_semantics = [#tpu.dimension_semantics<parallel>], iteration_bounds = array<i64: 2>, scalar_prefetch = 0 : i64, scratch_operands = 1 : i64, tpu.core_type = #tpu.core_type<tc>, window_params = [{transform_indices = @transform_0, window_bounds = array<i64: 1, 4, 8, 32>}, {transform_indices = @transform_1, window_bounds = array<i64: 1, 4, 8, 256>}, {pipeline_mode = #tpu.pipeline_mode<synchronous>, transform_indices = @transform_2, window_bounds = array<i64: 3, 288, 768>}, {pipeline_mode = #tpu.pipeline_mode<synchronous>, transform_indices = @transform_3, window_bounds = array<i64: 3, 256, 256>}, {pipeline_mode = #tpu.pipeline_mode<synchronous>, transform_indices = @transform_4, window_bounds = array<i64: 1, 768>}, {transform_indices = @transform_5, window_bounds = array<i64: 1, 4, 8, 256>}]} {
    %cst = arith.constant 0.000000e+00 : bf16
    %0 = vector.broadcast %cst : bf16 to vector<1x4x1x288xbf16>
    %c0 = arith.constant 0 : index
    %c0_0 = arith.constant 0 : index
    %c0_1 = arith.constant 0 : index
    %c0_2 = arith.constant 0 : index
    %1 = vector.load %arg7[%c0, %c0_0, %c0_1, %c0_2] : memref<1x4x10x288xbf16, #tpu.memory_space<vmem>>, vector<1x4x1x288xbf16>
    tpu.vector_store %arg7[%c0, %c0_0, %c0_1, %c0_2], %0 {strides = array<i32>} : memref<1x4x10x288xbf16, #tpu.memory_space<vmem>>, vector<1x4x1x288xbf16>,
    %cst_3 = arith.constant 0.000000e+00 : bf16
    %2 = vector.broadcast %cst_3 : bf16 to vector<1x4x1x288xbf16>
    %c0_4 = arith.constant 0 : index
    %c0_5 = arith.constant 0 : index
    %c9 = arith.constant 9 : index
    %c0_6 = arith.constant 0 : index
    %3 = vector.load %arg7[%c0_4, %c0_5, %c9, %c0_6] : memref<1x4x10x288xbf16, #tpu.memory_space<vmem>>, vector<1x4x1x288xbf16>
    tpu.vector_store %arg7[%c0_4, %c0_5, %c9, %c0_6], %2 {strides = array<i32>} : memref<1x4x10x288xbf16, #tpu.memory_space<vmem>>, vector<1x4x1x288xbf16>,
    %c0_7 = arith.constant 0 : index
    %c0_8 = arith.constant 0 : index
    %c0_9 = arith.constant 0 : index
    %c0_10 = arith.constant 0 : index
    %4 = vector.load %arg2[%c0_7, %c0_8, %c0_9, %c0_10] : memref<1x4x8x256xbf16, #tpu.memory_space<vmem>>, vector<1x4x8x256xbf16>
    %c0_11 = arith.constant 0 : index
    %c0_12 = arith.constant 0 : index
    %c1 = arith.constant 1 : index
    %c0_13 = arith.constant 0 : index
    %5 = vector.load %arg7[%c0_11, %c0_12, %c1, %c0_13] : memref<1x4x10x288xbf16, #tpu.memory_space<vmem>>, vector<1x4x8x256xbf16>
    tpu.vector_store %arg7[%c0_11, %c0_12, %c1, %c0_13], %4 {strides = array<i32>} : memref<1x4x10x288xbf16, #tpu.memory_space<vmem>>, vector<1x4x8x256xbf16>,
    %c0_14 = arith.constant 0 : index
    %c0_15 = arith.constant 0 : index
    %c0_16 = arith.constant 0 : index
    %c0_17 = arith.constant 0 : index
    %6 = vector.load %arg1[%c0_14, %c0_15, %c0_16, %c0_17] : memref<1x4x8x32xbf16, #tpu.memory_space<vmem>>, vector<1x4x8x32xbf16>
    %c0_18 = arith.constant 0 : index
    %c0_19 = arith.constant 0 : index
    %c1_20 = arith.constant 1 : index
    %c256 = arith.constant 256 : index
    %7 = vector.load %arg7[%c0_18, %c0_19, %c1_20, %c256] : memref<1x4x10x288xbf16, #tpu.memory_space<vmem>>, vector<1x4x8x32xbf16>
    tpu.vector_store %arg7[%c0_18, %c0_19, %c1_20, %c256], %6 {strides = array<i32>} : memref<1x4x10x288xbf16, #tpu.memory_space<vmem>>, vector<1x4x8x32xbf16>,
    %c0_21 = arith.constant 0 : index
    %c0_22 = arith.constant 0 : index
    %c0_23 = arith.constant 0 : index
    %c0_24 = arith.constant 0 : index
    %8 = vector.load %arg7[%c0_21, %c0_22, %c0_23, %c0_24] : memref<1x4x10x288xbf16, #tpu.memory_space<vmem>>, vector<1x4x8x288xbf16>
    %9 = vector.shape_cast %8 : vector<1x4x8x288xbf16> to vector<32x288xbf16>
    %c0_25 = arith.constant 0 : index
    %c0_26 = arith.constant 0 : index
    %c0_27 = arith.constant 0 : index
    %10 = vector.load %arg3[%c0_25, %c0_26, %c0_27] : memref<3x288x768xbf16, #tpu.memory_space<vmem>>, vector<1x288x768xbf16>
    %11 = vector.shape_cast %10 : vector<1x288x768xbf16> to vector<288x768xbf16>
    %cst_28 = arith.constant dense<0.000000e+00> : vector<32x768xf32>
    %12 = tpu.matmul %9, %11, %cst_28 {dimension_numbers = #tpu.dot_dimension_numbers<[1], [0], [0], [1], [0, 0, 1, 1], [], []>} : vector<32x288xbf16>, vector<288x768xbf16>, vector<32x768xf32> -> vector<32x768xf32>
    %c0_29 = arith.constant 0 : index
    %c0_30 = arith.constant 0 : index
    %c1_31 = arith.constant 1 : index
    %c0_32 = arith.constant 0 : index
    %13 = vector.load %arg7[%c0_29, %c0_30, %c1_31, %c0_32] : memref<1x4x10x288xbf16, #tpu.memory_space<vmem>>, vector<1x4x8x288xbf16>
    %14 = vector.shape_cast %13 : vector<1x4x8x288xbf16> to vector<32x288xbf16>
    %c1_33 = arith.constant 1 : index
    %c0_34 = arith.constant 0 : index
    %c0_35 = arith.constant 0 : index
    %15 = vector.load %arg3[%c1_33, %c0_34, %c0_35] : memref<3x288x768xbf16, #tpu.memory_space<vmem>>, vector<1x288x768xbf16>
    %16 = vector.shape_cast %15 : vector<1x288x768xbf16> to vector<288x768xbf16>
    %cst_36 = arith.constant dense<0.000000e+00> : vector<32x768xf32>
    %17 = tpu.matmul %14, %16, %cst_36 {dimension_numbers = #tpu.dot_dimension_numbers<[1], [0], [0], [1], [0, 0, 1, 1], [], []>} : vector<32x288xbf16>, vector<288x768xbf16>, vector<32x768xf32> -> vector<32x768xf32>
    %18 = arith.addf %12, %17 : vector<32x768xf32>
    %c0_37 = arith.constant 0 : index
    %c0_38 = arith.constant 0 : index
    %c2 = arith.constant 2 : index
    %c0_39 = arith.constant 0 : index
    %19 = vector.load %arg7[%c0_37, %c0_38, %c2, %c0_39] : memref<1x4x10x288xbf16, #tpu.memory_space<vmem>>, vector<1x4x8x288xbf16>
    %20 = vector.shape_cast %19 : vector<1x4x8x288xbf16> to vector<32x288xbf16>
    %c2_40 = arith.constant 2 : index
    %c0_41 = arith.constant 0 : index
    %c0_42 = arith.constant 0 : index
    %21 = vector.load %arg3[%c2_40, %c0_41, %c0_42] : memref<3x288x768xbf16, #tpu.memory_space<vmem>>, vector<1x288x768xbf16>
    %22 = vector.shape_cast %21 : vector<1x288x768xbf16> to vector<288x768xbf16>
    %cst_43 = arith.constant dense<0.000000e+00> : vector<32x768xf32>
    %23 = tpu.matmul %20, %22, %cst_43 {dimension_numbers = #tpu.dot_dimension_numbers<[1], [0], [0], [1], [0, 0, 1, 1], [], []>} : vector<32x288xbf16>, vector<288x768xbf16>, vector<32x768xf32> -> vector<32x768xf32>
    %24 = arith.addf %18, %23 : vector<32x768xf32>
    %c0_44 = arith.constant 0 : index
    %c0_45 = arith.constant 0 : index
    %25 = vector.load %arg5[%c0_44, %c0_45] : memref<1x768xf32, #tpu.memory_space<vmem>>, vector<1x768xf32>
    %26 = vector.broadcast %25 : vector<1x768xf32> to vector<32x768xf32>
    %27 = arith.addf %24, %26 : vector<32x768xf32>
    %28 = vector.extract_strided_slice %27 {offsets = [0, 0], sizes = [32, 256], strides = [1, 1]} : vector<32x768xf32> to vector<32x256xf32>
    %29 = arith.negf %28 : vector<32x256xf32>
    %30 = math.exp %29 : vector<32x256xf32>
    %cst_46 = arith.constant 1.000000e+00 : f32
    %31 = vector.broadcast %cst_46 : f32 to vector<32x256xf32>
    %32 = arith.addf %31, %30 : vector<32x256xf32>
    %33 = arith.divf %31, %32 : vector<32x256xf32>
    %34 = vector.extract_strided_slice %27 {offsets = [0, 256], sizes = [32, 256], strides = [1, 1]} : vector<32x768xf32> to vector<32x256xf32>
    %35 = arith.negf %34 : vector<32x256xf32>
    %36 = math.exp %35 : vector<32x256xf32>
    %cst_47 = arith.constant 1.000000e+00 : f32
    %37 = vector.broadcast %cst_47 : f32 to vector<32x256xf32>
    %38 = arith.addf %37, %36 : vector<32x256xf32>
    %39 = arith.divf %37, %38 : vector<32x256xf32>
    %40 = vector.shape_cast %4 : vector<1x4x8x256xbf16> to vector<32x256xbf16>
    %41 = arith.extf %40 : vector<32x256xbf16> to vector<32x256xf32>
    %42 = arith.mulf %41, %39 : vector<32x256xf32>
    %43 = arith.truncf %42 : vector<32x256xf32> to vector<32x256xbf16>
    %44 = vector.shape_cast %43 : vector<32x256xbf16> to vector<1x4x8x256xbf16>
    %c0_48 = arith.constant 0 : index
    %c0_49 = arith.constant 0 : index
    %c1_50 = arith.constant 1 : index
    %c0_51 = arith.constant 0 : index
    %45 = vector.load %arg7[%c0_48, %c0_49, %c1_50, %c0_51] : memref<1x4x10x288xbf16, #tpu.memory_space<vmem>>, vector<1x4x8x256xbf16>
    tpu.vector_store %arg7[%c0_48, %c0_49, %c1_50, %c0_51], %44 {strides = array<i32>} : memref<1x4x10x288xbf16, #tpu.memory_space<vmem>>, vector<1x4x8x256xbf16>,
    %46 = vector.extract_strided_slice %27 {offsets = [0, 512], sizes = [32, 256], strides = [1, 1]} : vector<32x768xf32> to vector<32x256xf32>
    %c0_52 = arith.constant 0 : index
    %c0_53 = arith.constant 0 : index
    %c0_54 = arith.constant 0 : index
    %c0_55 = arith.constant 0 : index
    %47 = vector.load %arg7[%c0_52, %c0_53, %c0_54, %c0_55] : memref<1x4x10x288xbf16, #tpu.memory_space<vmem>>, vector<1x4x8x256xbf16>
    %48 = vector.shape_cast %47 : vector<1x4x8x256xbf16> to vector<32x256xbf16>
    %c0_56 = arith.constant 0 : index
    %c0_57 = arith.constant 0 : index
    %c0_58 = arith.constant 0 : index
    %49 = vector.load %arg4[%c0_56, %c0_57, %c0_58] : memref<3x256x256xbf16, #tpu.memory_space<vmem>>, vector<1x256x256xbf16>
    %50 = vector.shape_cast %49 : vector<1x256x256xbf16> to vector<256x256xbf16>
    %cst_59 = arith.constant dense<0.000000e+00> : vector<32x256xf32>
    %51 = tpu.matmul %48, %50, %cst_59 {dimension_numbers = #tpu.dot_dimension_numbers<[1], [0], [0], [1], [0, 0, 1, 1], [], []>} : vector<32x256xbf16>, vector<256x256xbf16>, vector<32x256xf32> -> vector<32x256xf32>
    %52 = arith.addf %46, %51 : vector<32x256xf32>
    %c0_60 = arith.constant 0 : index
    %c0_61 = arith.constant 0 : index
    %c1_62 = arith.constant 1 : index
    %c0_63 = arith.constant 0 : index
    %53 = vector.load %arg7[%c0_60, %c0_61, %c1_62, %c0_63] : memref<1x4x10x288xbf16, #tpu.memory_space<vmem>>, vector<1x4x8x256xbf16>
    %54 = vector.shape_cast %53 : vector<1x4x8x256xbf16> to vector<32x256xbf16>
    %c1_64 = arith.constant 1 : index
    %c0_65 = arith.constant 0 : index
    %c0_66 = arith.constant 0 : index
    %55 = vector.load %arg4[%c1_64, %c0_65, %c0_66] : memref<3x256x256xbf16, #tpu.memory_space<vmem>>, vector<1x256x256xbf16>
    %56 = vector.shape_cast %55 : vector<1x256x256xbf16> to vector<256x256xbf16>
    %cst_67 = arith.constant dense<0.000000e+00> : vector<32x256xf32>
    %57 = tpu.matmul %54, %56, %cst_67 {dimension_numbers = #tpu.dot_dimension_numbers<[1], [0], [0], [1], [0, 0, 1, 1], [], []>} : vector<32x256xbf16>, vector<256x256xbf16>, vector<32x256xf32> -> vector<32x256xf32>
    %58 = arith.addf %52, %57 : vector<32x256xf32>
    %c0_68 = arith.constant 0 : index
    %c0_69 = arith.constant 0 : index
    %c2_70 = arith.constant 2 : index
    %c0_71 = arith.constant 0 : index
    %59 = vector.load %arg7[%c0_68, %c0_69, %c2_70, %c0_71] : memref<1x4x10x288xbf16, #tpu.memory_space<vmem>>, vector<1x4x8x256xbf16>
    %60 = vector.shape_cast %59 : vector<1x4x8x256xbf16> to vector<32x256xbf16>
    %c2_72 = arith.constant 2 : index
    %c0_73 = arith.constant 0 : index
    %c0_74 = arith.constant 0 : index
    %61 = vector.load %arg4[%c2_72, %c0_73, %c0_74] : memref<3x256x256xbf16, #tpu.memory_space<vmem>>, vector<1x256x256xbf16>
    %62 = vector.shape_cast %61 : vector<1x256x256xbf16> to vector<256x256xbf16>
    %cst_75 = arith.constant dense<0.000000e+00> : vector<32x256xf32>
    %63 = tpu.matmul %60, %62, %cst_75 {dimension_numbers = #tpu.dot_dimension_numbers<[1], [0], [0], [1], [0, 0, 1, 1], [], []>} : vector<32x256xbf16>, vector<256x256xbf16>, vector<32x256xf32> -> vector<32x256xf32>
    %64 = arith.addf %58, %63 : vector<32x256xf32>
    %65 = math.tanh %64 : vector<32x256xf32>
    %cst_76 = arith.constant 1.000000e+00 : f32
    %66 = vector.broadcast %cst_76 : f32 to vector<32x256xf32>
    %67 = arith.subf %66, %33 : vector<32x256xf32>
    %68 = arith.mulf %41, %67 : vector<32x256xf32>
    %69 = arith.mulf %65, %33 : vector<32x256xf32>
    %70 = arith.addf %68, %69 : vector<32x256xf32>
    %71 = vector.shape_cast %70 : vector<32x256xf32> to vector<1x4x8x256xf32>
    %c0_77 = arith.constant 0 : index
    %c0_78 = arith.constant 0 : index
    %c0_79 = arith.constant 0 : index
    %c0_80 = arith.constant 0 : index
    %72 = vector.load %arg6[%c0_77, %c0_78, %c0_79, %c0_80] : memref<1x4x8x256xf32, #tpu.memory_space<vmem>>, vector<1x4x8x256xf32>
    tpu.vector_store %arg6[%c0_77, %c0_78, %c0_79, %c0_80], %71 {strides = array<i32>} : memref<1x4x8x256xf32, #tpu.memory_space<vmem>>, vector<1x4x8x256xf32>,
    return
  }
  func.func @transform_0(%arg0: i32) -> (i32, i32, i32, i32) {
    %c0_i32 = arith.constant 0 : i32
    %c0_i32_0 = arith.constant 0 : i32
    %c0_i32_1 = arith.constant 0 : i32
    %c0_i32_2 = arith.constant 0 : i32
    return %arg0, %c0_i32, %c0_i32_0, %c0_i32_1 : i32, i32, i32, i32
  }
  func.func @transform_1(%arg0: i32) -> (i32, i32, i32, i32) {
    %c0_i32 = arith.constant 0 : i32
    %c0_i32_0 = arith.constant 0 : i32
    %c0_i32_1 = arith.constant 0 : i32
    %c0_i32_2 = arith.constant 0 : i32
    return %arg0, %c0_i32, %c0_i32_0, %c0_i32_1 : i32, i32, i32, i32
  }
  func.func @transform_2(%arg0: i32) -> (i32, i32, i32) {
    %c0_i32 = arith.constant 0 : i32
    %c0_i32_0 = arith.constant 0 : i32
    %c0_i32_1 = arith.constant 0 : i32
    %c0_i32_2 = arith.constant 0 : i32
    return %c0_i32, %c0_i32_0, %c0_i32_1 : i32, i32, i32
  }
  func.func @transform_3(%arg0: i32) -> (i32, i32, i32) {
    %c0_i32 = arith.constant 0 : i32
    %c0_i32_0 = arith.constant 0 : i32
    %c0_i32_1 = arith.constant 0 : i32
    %c0_i32_2 = arith.constant 0 : i32
    return %c0_i32, %c0_i32_0, %c0_i32_1 : i32, i32, i32
  }
  func.func @transform_4(%arg0: i32) -> (i32, i32) {
    %c0_i32 = arith.constant 0 : i32
    %c0_i32_0 = arith.constant 0 : i32
    %c0_i32_1 = arith.constant 0 : i32
    return %c0_i32, %c0_i32_0 : i32, i32
  }
  func.func @transform_5(%arg0: i32) -> (i32, i32, i32, i32) {
    %c0_i32 = arith.constant 0 : i32
    %c0_i32_0 = arith.constant 0 : i32
    %c0_i32_1 = arith.constant 0 : i32
    %c0_i32_2 = arith.constant 0 : i32
    return %arg0, %c0_i32, %c0_i32_0, %c0_i32_1 : i32, i32, i32, i32
  }
}

</mosaic_0001>

<llo_original>
// kernel: tpu_custom_call.1
$region0: #{tpu_custom_call.1}
  #allocation0 [shape = 'u32[]', space=smem, size = 0x4, offset = 0x4, fixed_abs, tag = 'smem constant byte address 0x4 - core index']
  #allocation1 [shape = 'u32[144,128]{1,0:T(1,128)}', space=vmem, size = 0x12000, scoped, tag = 'internal scratch']
  #allocation2 [shape = 'bf16[1,4,10,288]{3,2,1,0:T(8,128)(2,1)}', space=vmem, size = 0xc000, scoped, tag = 'scratch operand']
  %s0 = inlined_call_operand.hbm [shape: bf16[2,4,8,32], index: 0, kind: input, shape index: {}]
  %s1 = inlined_call_operand.hbm [shape: bf16[2,4,8,256], index: 1, kind: input, shape index: {}]
  %s2 = inlined_call_operand.hbm [shape: bf16[3,288,768], index: 2, kind: input, shape index: {}]
  %s3 = inlined_call_operand.hbm [shape: bf16[3,256,256], index: 3, kind: input, shape index: {}]
  %s4 = inlined_call_operand.hbm [shape: f32[1,768], index: 4, kind: input, shape index: {}]
  %s5 = inlined_call_operand.hbm [shape: f32[2,4,8,256], index: 5, kind: output, shape index: {}]
  %s6 = sld [smem:[#allocation0]]
  $region73: #{tpu_custom_call.1} parent=0
    _
  %s8 = ssub.s32 1, %s6
  %s9 = scalar_select 0, %s8, %s6
  $region1: #{tpu_custom_call.1} parent=0
    #allocation3 [shape = 'u8[16384]{0}', space=vmem, size = 0x4000, scoped, tag = 'input window, operand 0']
    #allocation4 [shape = 's32[2]{0}', space=sflag, size = 0x8, scoped, tag = 'scoped memory for tpu_custom_call.1']
    #allocation5 [shape = 's32[2]{0}', space=sflag, size = 0x8, scoped, tag = 'scoped memory for tpu_custom_call.1']
    #allocation6 [shape = 'u8[32768]{0}', space=vmem, size = 0x8000, scoped, tag = 'input window, operand 1']
    #allocation7 [shape = 's32[2]{0}', space=sflag, size = 0x8, scoped, tag = 'scoped memory for tpu_custom_call.1']
    #allocation8 [shape = 'u8[1327104]{0}', space=vmem, size = 0x144000, scoped, tag = 'input window, operand 2, single buffered']
    #allocation9 [shape = 'u8[393216]{0}', space=vmem, size = 0x60000, scoped, tag = 'input window, operand 3, single buffered']
    #allocation10 [shape = 's32[1]{0}', space=sflag, size = 0x4, scoped, tag = 'scoped memory for tpu_custom_call.1']
    #allocation11 [shape = 'u8[3072]{0}', space=vmem, size = 0xc00, scoped, tag = 'input window, operand 4, single buffered']
    #allocation12 [shape = 'u8[65536]{0}', space=vmem, size = 0x10000, scoped, tag = 'output window, operand 0']
    %10 = vsyncpa [#allocation4], 0
    %s11 = scalar_lea.sflag [#allocation4], 1
    %12 = vsyncpa %s11, 0
    %13 = vsyncpa [#allocation7], 0
    %s14 = scalar_lea.sflag [#allocation7], 1
    %15 = vsyncpa %s14, 0
    %16 = vsyncpa [#allocation10], 0
    %17 = vsyncpa [#allocation5], 0
    %s18 = scalar_lea.sflag [#allocation5], 1
    %19 = vsyncpa %s18, 0
    loop: start=0, step=1, limit=4
    $region2: #{tpu_custom_call.1} parent=1 // loop_pre_header
      _
    $region3: #{tpu_custom_call.1} parent=1 // loop_header
      %s21 = sphi 0, %s25
      %p22 = scmp.ge.s32.totalorder %s21, 4
      %s31 = sphi 0, %s33
      %s34 = sphi 0, %s31
      %s35 = sphi 0, %s34
      %s51 = sphi 0, %s35
      %s57 = sphi 0, %s59
      %s60 = sphi 0, %s57
      %s61 = sphi 0, %s60
      %s77 = sphi 0, %s61
      %s81 = sphi 0, %s81
      %s83 = sphi 0, %s81
      %s84 = sphi 0, %s83
      %s98 = sphi 0, %s84
      %s102 = sphi 0, %s102
      %s104 = sphi 0, %s102
      %s105 = sphi 0, %s104
      %s119 = sphi 0, %s105
      %s123 = sphi 0, %s123
      %s125 = sphi 0, %s123
      %s126 = sphi 0, %s125
      %s140 = sphi 0, %s126
      %s146 = sphi 0, %s148
      %s149 = sphi 0, %s146
      %s150 = sphi 0, %s149
      %s166 = sphi 0, %s150
    $region4: #{tpu_custom_call.1} parent=1 // loop_header_branch
      %24 = sbr.rel (%p22) target = $region8
    $region5: #{tpu_custom_call.1} parent=1 // loop_body
      %s26 = ssub.s32 %s21, 1
      %s27 = ssub.s32 %s21, 2
      %s28 = sadd.s32 %s21, 1
      %s29 = ssub.s32 %s21, %s28
      %p30 = scmp.eq.s32.totalorder %s29, 0
      %s32 = sadd.s32 %s31, 1
      %s33 = scalar_select %p30, %s31, %s32
      %p36 = pneg %p30
      %p37 = scmp.eq.s32.totalorder %s21, 1
      %p38 = por %p36, %p37
      %p39 = scmp.ne.s32.totalorder %s31, %s34
      %p40 = scmp.eq.s32.totalorder %s21, 0
      %p41 = por %p39, %p40
      %p42 = scmp.ne.s32.totalorder %s31, %s34
      %p43 = scmp.eq.s32.totalorder %s26, 1
      %p44 = por %p42, %p43
      %p45 = scmp.ne.s32.totalorder %s34, %s35
      %p46 = scmp.eq.s32.totalorder %s26, 0
      %p47 = por %p45, %p46
      %p48 = scmp.ne.s32.totalorder %s34, %s35
      %p49 = scmp.eq.s32.totalorder %s27, 1
      %p50 = por %p48, %p49
      %p52 = scmp.ne.s32.totalorder %s35, %s51
      %p53 = scmp.eq.s32.totalorder %s27, 0
      %p54 = por %p52, %p53
      %s55 = ssub.s32 %s21, %s28
      %p56 = scmp.eq.s32.totalorder %s55, 0
      %s58 = sadd.s32 %s57, 1
      %s59 = scalar_select %p56, %s57, %s58
      %p62 = pneg %p56
      %p63 = scmp.eq.s32.totalorder %s21, 1
      %p64 = por %p62, %p63
      %p65 = scmp.ne.s32.totalorder %s57, %s60
      %p66 = scmp.eq.s32.totalorder %s21, 0
      %p67 = por %p65, %p66
      %p68 = scmp.ne.s32.totalorder %s57, %s60
      %p69 = scmp.eq.s32.totalorder %s26, 1
      %p70 = por %p68, %p69
      %p71 = scmp.ne.s32.totalorder %s60, %s61
      %p72 = scmp.eq.s32.totalorder %s26, 0
      %p73 = por %p71, %p72
      %p74 = scmp.ne.s32.totalorder %s60, %s61
      %p75 = scmp.eq.s32.totalorder %s27, 1
      %p76 = por %p74, %p75
      %p78 = scmp.ne.s32.totalorder %s61, %s77
      %p79 = scmp.eq.s32.totalorder %s27, 0
      %p80 = por %p78, %p79
      %s82 = sadd.s32 %s81, 1
      %p85 = scmp.eq.s32.totalorder %s21, 1
      %p86 = scmp.ne.s32.totalorder %s81, %s83
      %p87 = scmp.eq.s32.totalorder %s21, 0
      %p88 = por %p86, %p87
      %p89 = scmp.ne.s32.totalorder %s81, %s83
      %p90 = scmp.eq.s32.totalorder %s26, 1
      %p91 = por %p89, %p90
      %p92 = scmp.ne.s32.totalorder %s83, %s84
      %p93 = scmp.eq.s32.totalorder %s26, 0
      %p94 = por %p92, %p93
      %p95 = scmp.ne.s32.totalorder %s83, %s84
      %p96 = scmp.eq.s32.totalorder %s27, 1
      %p97 = por %p95, %p96
      %p99 = scmp.ne.s32.totalorder %s84, %s98
      %p100 = scmp.eq.s32.totalorder %s27, 0
      %p101 = por %p99, %p100
      %s103 = sadd.s32 %s102, 1
      %p106 = scmp.eq.s32.totalorder %s21, 1
      %p107 = scmp.ne.s32.totalorder %s102, %s104
      %p108 = scmp.eq.s32.totalorder %s21, 0
      %p109 = por %p107, %p108
      %p110 = scmp.ne.s32.totalorder %s102, %s104
      %p111 = scmp.eq.s32.totalorder %s26, 1
      %p112 = por %p110, %p111
      %p113 = scmp.ne.s32.totalorder %s104, %s105
      %p114 = scmp.eq.s32.totalorder %s26, 0
      %p115 = por %p113, %p114
      %p116 = scmp.ne.s32.totalorder %s104, %s105
      %p117 = scmp.eq.s32.totalorder %s27, 1
      %p118 = por %p116, %p117
      %p120 = scmp.ne.s32.totalorder %s105, %s119
      %p121 = scmp.eq.s32.totalorder %s27, 0
      %p122 = por %p120, %p121
      %s124 = sadd.s32 %s123, 1
      %p127 = scmp.eq.s32.totalorder %s21, 1
      %p128 = scmp.ne.s32.totalorder %s123, %s125
      %p129 = scmp.eq.s32.totalorder %s21, 0
      %p130 = por %p128, %p129
      %p131 = scmp.ne.s32.totalorder %s123, %s125
      %p132 = scmp.eq.s32.totalorder %s26, 1
      %p133 = por %p131, %p132
      %p134 = scmp.ne.s32.totalorder %s125, %s126
      %p135 = scmp.eq.s32.totalorder %s26, 0
      %p136 = por %p134, %p135
      %p137 = scmp.ne.s32.totalorder %s125, %s126
      %p138 = scmp.eq.s32.totalorder %s27, 1
      %p139 = por %p137, %p138
      %p141 = scmp.ne.s32.totalorder %s126, %s140
      %p142 = scmp.eq.s32.totalorder %s27, 0
      %p143 = por %p141, %p142
      %s144 = ssub.s32 %s21, %s28
      %p145 = scmp.eq.s32.totalorder %s144, 0
      %s147 = sadd.s32 %s146, 1
      %s148 = scalar_select %p145, %s146, %s147
      %p151 = pneg %p145
      %p152 = scmp.eq.s32.totalorder %s21, 1
      %p153 = por %p151, %p152
      %p154 = scmp.ne.s32.totalorder %s146, %s149
      %p155 = scmp.eq.s32.totalorder %s21, 0
      %p156 = por %p154, %p155
      %p157 = scmp.ne.s32.totalorder %s146, %s149
      %p158 = scmp.eq.s32.totalorder %s26, 1
      %p159 = por %p157, %p158
      %p160 = scmp.ne.s32.totalorder %s149, %s150
      %p161 = scmp.eq.s32.totalorder %s26, 0
      %p162 = por %p160, %p161
      %p163 = scmp.ne.s32.totalorder %s149, %s150
      %p164 = scmp.eq.s32.totalorder %s27, 1
      %p165 = por %p163, %p164
      %p167 = scmp.ne.s32.totalorder %s150, %s166
      %p168 = scmp.eq.s32.totalorder %s27, 0
      %p169 = por %p167, %p168
      %p170 = scmp.le.s32.totalorder 1, %s21
      %p171 = scmp.lt.s32.totalorder %s21, 3
      %p172 = pnand %p170, %p171
      %p173 = pneg %p172
      // Predicated region
      $region9: #{tpu_custom_call.1} parent=5 // pred_check
        _
      $region10: #{tpu_custom_call.1} parent=5 // pred_check_branch
        %175 = sbr.rel (%p172) target = $region12
      $region11: #{tpu_custom_call.1} parent=5 // pred_region
        %s176 = ssub.s32 %s21, 1
        // Predicated region
        $region13: #{tpu_custom_call.1} parent=11 // pred_check
          %p177 = pneg %p94
        $region14: #{tpu_custom_call.1} parent=11 // pred_check_branch
          %179 = sbr.rel (%p177) target = $region16
        $region15: #{tpu_custom_call.1} parent=11 // pred_region
          %s181 = ssub.s32 41472, 41472
          %182 = vsyncadd [#allocation7], %s181
          %s183 = sshll.u32 [#allocation8], 4
          %s184 = int_to_ptr.vmem [resolvable:$true] %s183
          %189 = dma.hbm_to_vmem [thread:$0]  %s2, 41472, %s184, [#allocation7], 384, 384, 24
        $region16: #{tpu_custom_call.1} parent=11 // pred_fallthru
          _
        // Predicated region
        $region17: #{tpu_custom_call.1} parent=11 // pred_check
          %p190 = pneg %p115
        $region18: #{tpu_custom_call.1} parent=11 // pred_check_branch
          %192 = sbr.rel (%p190) target = $region20
        $region19: #{tpu_custom_call.1} parent=11 // pred_region
          %s194 = ssub.s32 12288, 12288
          %195 = vsyncadd [#allocation10], %s194
          %s196 = sshll.u32 [#allocation9], 4
          %s197 = int_to_ptr.vmem [resolvable:$true] %s196
          %202 = dma.hbm_to_vmem [thread:$0]  %s3, 12288, %s197, [#allocation10], 128, 128, 8
        $region20: #{tpu_custom_call.1} parent=11 // pred_fallthru
          _
        // Predicated region
        $region21: #{tpu_custom_call.1} parent=11 // pred_check
          %p203 = pneg %p136
        $region22: #{tpu_custom_call.1} parent=11 // pred_check_branch
          %205 = sbr.rel (%p203) target = $region24
        $region23: #{tpu_custom_call.1} parent=11 // pred_region
          %s207 = ssub.s32 96, 96
          %208 = vsyncadd [#allocation10], %s207
          %s210 = sshll.u32 [#allocation11], 4
          %s211 = int_to_ptr.vmem [resolvable:$true] %s210
          %213 = dma.hbm_to_vmem [thread:$0]  %s4, 96, %s211, [#allocation10]
        $region24: #{tpu_custom_call.1} parent=11 // pred_fallthru
          _
      $region12: #{tpu_custom_call.1} parent=5 // pred_fallthru
        _
      %p214 = scmp.lt.s32.totalorder %s21, 2
      // Predicated region
      $region25: #{tpu_custom_call.1} parent=5 // pred_check
        %p215 = pneg %p214
      $region26: #{tpu_custom_call.1} parent=5 // pred_check_branch
        %217 = sbr.rel (%p215) target = $region28
      $region27: #{tpu_custom_call.1} parent=5 // pred_region
        // Predicated region
        $region29: #{tpu_custom_call.1} parent=27 // pred_check
          %p218 = pneg %p41
        $region30: #{tpu_custom_call.1} parent=27 // pred_check_branch
          %220 = sbr.rel (%p218) target = $region32
        $region31: #{tpu_custom_call.1} parent=27 // pred_region
          %s221 = sand.u32 %s31, 1
          %s222 = scalar_lea.sflag [#allocation4], %s221
          %s223 = sand.u32 %s31, 1
          %s224 = smul.addr %s223, 16
          %s225 = scalar_lea.vmem [#allocation3], %s224
          %s227 = ssub.s32 256, 256
          %228 = vsyncadd %s222, %s227
          %s229 = smul.addr %s21, 4
          %s230 = smul.addr %s229, 64
          %s231 = scalar_lea.hbm %s0, %s230
          %s232 = sshll.u32 %s225, 4
          %s233 = int_to_ptr.vmem [resolvable:$true] %s232
          %238 = dma.hbm_to_vmem [thread:$0]  %s231, 256, %s233, %s222, 64, 64, 4
        $region32: #{tpu_custom_call.1} parent=27 // pred_fallthru
          _
        // Predicated region
        $region33: #{tpu_custom_call.1} parent=27 // pred_check
          %p239 = pneg %p67
        $region34: #{tpu_custom_call.1} parent=27 // pred_check_branch
          %241 = sbr.rel (%p239) target = $region36
        $region35: #{tpu_custom_call.1} parent=27 // pred_region
          %s242 = sand.u32 %s21, 1
          %s243 = scalar_lea.sflag [#allocation7], %s242
          %s244 = sand.u32 %s57, 1
          %s245 = smul.addr %s244, 32
          %s246 = scalar_lea.vmem [#allocation6], %s245
          %s248 = ssub.s32 512, 512
          %249 = vsyncadd %s243, %s248
          %s250 = smul.addr %s21, 8
          %s251 = smul.addr %s250, 64
          %s252 = scalar_lea.hbm %s1, %s251
          %s253 = sshll.u32 %s246, 4
          %s254 = int_to_ptr.vmem [resolvable:$true] %s253
          %259 = dma.hbm_to_vmem [thread:$0]  %s252, 512, %s254, %s243, 128, 128, 8
        $region36: #{tpu_custom_call.1} parent=27 // pred_fallthru
          _
      $region28: #{tpu_custom_call.1} parent=5 // pred_fallthru
        _
      %p260 = scmp.le.s32.totalorder 1, %s21
      %p261 = scmp.lt.s32.totalorder %s21, 3
      %p262 = pnand %p260, %p261
      %p263 = pneg %p262
      // Predicated region
      $region37: #{tpu_custom_call.1} parent=5 // pred_check
        _
      $region38: #{tpu_custom_call.1} parent=5 // pred_check_branch
        %265 = sbr.rel (%p262) target = $region40
      $region39: #{tpu_custom_call.1} parent=5 // pred_region
        %s266 = ssub.s32 %s21, 1
        %s267 = sand.u32 %s34, 1
        %s268 = scalar_lea.sflag [#allocation4], %s267
        %s269 = sand.u32 %s34, 1
        %s270 = smul.addr %s269, 16
        %s271 = scalar_lea.vmem [#allocation3], %s270
        // Predicated region
        $region41: #{tpu_custom_call.1} parent=39 // pred_check
          %p272 = pneg %p47
        $region42: #{tpu_custom_call.1} parent=39 // pred_check_branch
          %274 = sbr.rel (%p272) target = $region44
        $region43: #{tpu_custom_call.1} parent=39 // pred_region
          %275 = dma.done %s268, 256
        $region44: #{tpu_custom_call.1} parent=39 // pred_fallthru
          _
        %s276 = sand.u32 %s26, 1
        %s277 = scalar_lea.sflag [#allocation7], %s276
        %s278 = sand.u32 %s60, 1
        %s279 = smul.addr %s278, 32
        %s280 = scalar_lea.vmem [#allocation6], %s279
        // Predicated region
        $region45: #{tpu_custom_call.1} parent=39 // pred_check
          %p281 = pneg %p73
        $region46: #{tpu_custom_call.1} parent=39 // pred_check_branch
          %283 = sbr.rel (%p281) target = $region48
        $region47: #{tpu_custom_call.1} parent=39 // pred_region
          %284 = dma.done %s277, 512
        $region48: #{tpu_custom_call.1} parent=39 // pred_fallthru
          _
        // Predicated region
        $region49: #{tpu_custom_call.1} parent=39 // pred_check
          %p285 = pneg %p94
        $region50: #{tpu_custom_call.1} parent=39 // pred_check_branch
          %287 = sbr.rel (%p285) target = $region52
        $region51: #{tpu_custom_call.1} parent=39 // pred_region
          %288 = dma.done [#allocation7], 41472
        $region52: #{tpu_custom_call.1} parent=39 // pred_fallthru
          _
        // Predicated region
        $region53: #{tpu_custom_call.1} parent=39 // pred_check
          %p289 = pneg %p115
        $region54: #{tpu_custom_call.1} parent=39 // pred_check_branch
          %291 = sbr.rel (%p289) target = $region56
        $region55: #{tpu_custom_call.1} parent=39 // pred_region
          %292 = dma.done [#allocation10], 12288
        $region56: #{tpu_custom_call.1} parent=39 // pred_fallthru
          _
        // Predicated region
        $region57: #{tpu_custom_call.1} parent=39 // pred_check
          %p293 = pneg %p136
        $region58: #{tpu_custom_call.1} parent=39 // pred_check_branch
          %295 = sbr.rel (%p293) target = $region60
        $region59: #{tpu_custom_call.1} parent=39 // pred_region
          %296 = dma.done [#allocation10], 96
        $region60: #{tpu_custom_call.1} parent=39 // pred_fallthru
          _
        %s297 = sand.u32 %s34, 1
        %s298 = scalar_lea.sflag [#allocation4], %s297
        %s299 = sand.u32 %s34, 1
        %s300 = smul.addr %s299, 16
        %s301 = scalar_lea.vmem [#allocation3], %s300
        %p302 = pneg %p47
        %p303 = pneg %p44
        %s304 = sand.u32 %s26, 1
        %s305 = scalar_lea.sflag [#allocation7], %s304
        %s306 = sand.u32 %s60, 1
        %s307 = smul.addr %s306, 32
        %s308 = scalar_lea.vmem [#allocation6], %s307
        %p309 = pneg %p73
        %p310 = pneg %p70
        %p311 = pneg %p94
        %p312 = pneg %p91
        %p313 = pneg %p115
        %p314 = pneg %p112
        %p315 = pneg %p136
        %p316 = pneg %p133
        %p317 = pneg %p162
        %p318 = pneg %p159
        %s319 = sand.u32 %s149, 1
        %s320 = scalar_lea.sflag [#allocation5], %s319
        %s321 = sand.u32 %s149, 1
        %s322 = smul.addr %s321, 64
        %s323 = scalar_lea.vmem [#allocation12], %s322
        %vm325 = vcmask 1040384
        %vm326 = vsmask.f32 256
        %vm327 = vmand %vm325, %vm326
        %vm328 = vcmask 1044484
        %vm329 = vsmask.f32 4352
        %vm330 = vmand %vm328, %vm329
        %vm331 = vmor %vm330, %vm327
        %v332 = vld [vmem:[#allocation2] sm:$0x11]
        %v333 = vsel %vm331, 0, %v332
        %334 = vst [vmem:[#allocation2] sm:$0x11] %v333
        %vm335 = vcmask 253952
        %vm336 = vmand %vm335, %vm326
        %v337 = vld [vmem:[#allocation2 + $0x8] sm:$0x1]
        %v338 = vsel %vm336, 0, %v337
        %339 = vst [vmem:[#allocation2 + $0x8] sm:$0x1] %v338
        %v340 = vld [vmem:[#allocation2 + $0x18] sm:$0x11]
        %v341 = vsel %vm331, 0, %v340
        %342 = vst [vmem:[#allocation2 + $0x18] sm:$0x11] %v341
        %v343 = vld [vmem:[#allocation2 + $0x20] sm:$0x1]
        %v344 = vsel %vm336, 0, %v343
        %345 = vst [vmem:[#allocation2 + $0x20] sm:$0x1] %v344
        %v346 = vld [vmem:[#allocation2 + $0x30] sm:$0x11]
        %v347 = vsel %vm331, 0, %v346
        %348 = vst [vmem:[#allocation2 + $0x30] sm:$0x11] %v347
        %v349 = vld [vmem:[#allocation2 + $0x38] sm:$0x1]
        %v350 = vsel %vm336, 0, %v349
        %351 = vst [vmem:[#allocation2 + $0x38] sm:$0x1] %v350
        %v352 = vld [vmem:[#allocation2 + $0x48] sm:$0x11]
        %v353 = vsel %vm331, 0, %v352
        %354 = vst [vmem:[#allocation2 + $0x48] sm:$0x11] %v353
        %v355 = vld [vmem:[#allocation2 + $0x50] sm:$0x1]
        %v356 = vsel %vm336, 0, %v355
        %357 = vst [vmem:[#allocation2 + $0x50] sm:$0x1] %v356
        %vm358 = vsmask.f32 7938
        %vm359 = vmand %vm325, %vm358
        %vm360 = vsmask.f32 7954
        %vm361 = vmand %vm328, %vm360
        %vm362 = vmor %vm361, %vm359
        %v363 = vld [vmem:[#allocation2 + $0xc] sm:$0x11]
        %v364 = vsel %vm362, 0, %v363
        %365 = vst [vmem:[#allocation2 + $0xc] sm:$0x11] %v364
        %vm366 = vmand %vm335, %vm358
        %v367 = vld [vmem:[#allocation2 + $0x14] sm:$0x1]
        %v368 = vsel %vm366, 0, %v367
        %369 = vst [vmem:[#allocation2 + $0x14] sm:$0x1] %v368
        %v370 = vld [vmem:[#allocation2 + $0x24] sm:$0x11]
        %v371 = vsel %vm362, 0, %v370
        %372 = vst [vmem:[#allocation2 + $0x24] sm:$0x11] %v371
        %v373 = vld [vmem:[#allocation2 + $0x2c] sm:$0x1]
        %v374 = vsel %vm366, 0, %v373
        %375 = vst [vmem:[#allocation2 + $0x2c] sm:$0x1] %v374
        %v376 = vld [vmem:[#allocation2 + $0x3c] sm:$0x11]
        %v377 = vsel %vm362, 0, %v376
        %378 = vst [vmem:[#allocation2 + $0x3c] sm:$0x11] %v377
        %v379 = vld [vmem:[#allocation2 + $0x44] sm:$0x1]
        %v380 = vsel %vm366, 0, %v379
        %381 = vst [vmem:[#allocation2 + $0x44] sm:$0x1] %v380
        %v382 = vld [vmem:[#allocation2 + $0x54] sm:$0x11]
        %v383 = vsel %vm362, 0, %v382
        %384 = vst [vmem:[#allocation2 + $0x54] sm:$0x11] %v383
        %v385 = vld [vmem:[#allocation2 + $0x5c] sm:$0x1]
        %v386 = vsel %vm366, 0, %v385
        %387 = vst [vmem:[#allocation2 + $0x5c] sm:$0x1] %v386
        %v388 = vld [vmem:[%s280] sm:$0xff]
        %v389 = vld [vmem:[%s280 + $0x8] sm:$0xff]
        %v390 = vld [vmem:[%s280 + $0x10] sm:$0xff]
        %v391 = vld [vmem:[%s280 + $0x18] sm:$0xff]
        %v393 = vshrl.u32 %v388, 16
        %v395 = vrot.slane %v393, 7
        %v396 = vshll.u32 %v388, 16
        %v398 = vor.u32 %v395, %v396
        %v399 = vrot.slane %v395, 4
        %v401 = vshrl.u32 %v389, 16
        %v403 = vrot.slane %v401, 7
        %v404 = vshll.u32 %v389, 16
        %v406 = vor.u32 %v403, %v404
        %v407 = vrot.slane %v403, 4
        %v409 = vshrl.u32 %v390, 16
        %v411 = vrot.slane %v409, 7
        %v412 = vshll.u32 %v390, 16
        %v414 = vor.u32 %v411, %v412
        %v415 = vrot.slane %v411, 4
        %v417 = vshrl.u32 %v391, 16
        %v419 = vrot.slane %v417, 7
        %v420 = vshll.u32 %v391, 16
        %v422 = vor.u32 %v419, %v420
        %v423 = vrot.slane %v419, 4
        %vm432 = vcmask 1043456
        %vm433 = vmand %vm432, %vm358
        %vm434 = vcmask 1047556
        %vm435 = vmand %vm434, %vm360
        %vm436 = vmor %vm435, %vm433
        %v437 = vld [vmem:[#allocation2] sm:$0xff]
        %v438 = vsel %vm436, %v398, %v437
        %439 = vst [vmem:[#allocation2] sm:$0xff] %v438
        %v440 = vld [vmem:[#allocation2 + $0xc] sm:$0x11]
        %v441 = vsel %vm331, %v399, %v440
        %442 = vst [vmem:[#allocation2 + $0xc] sm:$0x11] %v441
        %v443 = vld [vmem:[#allocation2 + $0x18] sm:$0xff]
        %v444 = vsel %vm436, %v406, %v443
        %445 = vst [vmem:[#allocation2 + $0x18] sm:$0xff] %v444
        %v446 = vld [vmem:[#allocation2 + $0x24] sm:$0x11]
        %v447 = vsel %vm331, %v407, %v446
        %448 = vst [vmem:[#allocation2 + $0x24] sm:$0x11] %v447
        %v449 = vld [vmem:[#allocation2 + $0x30] sm:$0xff]
        %v450 = vsel %vm436, %v414, %v449
        %451 = vst [vmem:[#allocation2 + $0x30] sm:$0xff] %v450
        %v452 = vld [vmem:[#allocation2 + $0x3c] sm:$0x11]
        %v453 = vsel %vm331, %v415, %v452
        %454 = vst [vmem:[#allocation2 + $0x3c] sm:$0x11] %v453
        %v455 = vld [vmem:[#allocation2 + $0x48] sm:$0xff]
        %v456 = vsel %vm436, %v422, %v455
        %457 = vst [vmem:[#allocation2 + $0x48] sm:$0xff] %v456
        %v458 = vld [vmem:[#allocation2 + $0x54] sm:$0x11]
        %v459 = vsel %vm331, %v423, %v458
        %460 = vst [vmem:[#allocation2 + $0x54] sm:$0x11] %v459
        %v461 = vld [vmem:[%s271] sm:$0xf]
        %v462 = vld [vmem:[%s271 + $0x4] sm:$0xf]
        %v463 = vld [vmem:[%s271 + $0x8] sm:$0xf]
        %v464 = vld [vmem:[%s271 + $0xc] sm:$0xf]
        %v466 = vshrl.u32 %v461, 16
        %v468 = vrot.slane %v466, 7
        %v469 = vshll.u32 %v461, 16
        %v471 = vor.u32 %v468, %v469
        %v472 = vrot.slane %v468, 4
        %v474 = vshrl.u32 %v462, 16
        %v476 = vrot.slane %v474, 7
        %v477 = vshll.u32 %v462, 16
        %v479 = vor.u32 %v476, %v477
        %v480 = vrot.slane %v476, 4
        %v482 = vshrl.u32 %v463, 16
        %v484 = vrot.slane %v482, 7
        %v485 = vshll.u32 %v463, 16
        %v487 = vor.u32 %v484, %v485
        %v488 = vrot.slane %v484, 4
        %v490 = vshrl.u32 %v464, 16
        %v492 = vrot.slane %v490, 7
        %v493 = vshll.u32 %v464, 16
        %v495 = vor.u32 %v492, %v493
        %v496 = vrot.slane %v492, 4
        %vm505 = vcmask 257024
        %vm506 = vmand %vm505, %vm358
        %v507 = vld [vmem:[#allocation2 + $0x8] sm:$0xf]
        %v508 = vsel %vm506, %v471, %v507
        %509 = vst [vmem:[#allocation2 + $0x8] sm:$0xf] %v508
        %v510 = vld [vmem:[#allocation2 + $0x14] sm:$0x1]
        %v511 = vsel %vm336, %v472, %v510
        %512 = vst [vmem:[#allocation2 + $0x14] sm:$0x1] %v511
        %v513 = vld [vmem:[#allocation2 + $0x20] sm:$0xf]
        %v514 = vsel %vm506, %v479, %v513
        %515 = vst [vmem:[#allocation2 + $0x20] sm:$0xf] %v514
        %v516 = vld [vmem:[#allocation2 + $0x2c] sm:$0x1]
        %v517 = vsel %vm336, %v480, %v516
        %518 = vst [vmem:[#allocation2 + $0x2c] sm:$0x1] %v517
        %v519 = vld [vmem:[#allocation2 + $0x38] sm:$0xf]
        %v520 = vsel %vm506, %v487, %v519
        %521 = vst [vmem:[#allocation2 + $0x38] sm:$0xf] %v520
        %v522 = vld [vmem:[#allocation2 + $0x44] sm:$0x1]
        %v523 = vsel %vm336, %v488, %v522
        %524 = vst [vmem:[#allocation2 + $0x44] sm:$0x1] %v523
        %v525 = vld [vmem:[#allocation2 + $0x50] sm:$0xf]
        %v526 = vsel %vm506, %v495, %v525
        %527 = vst [vmem:[#allocation2 + $0x50] sm:$0xf] %v526
        %v528 = vld [vmem:[#allocation2 + $0x5c] sm:$0x1]
        %v529 = vsel %vm336, %v496, %v528
        %530 = vst [vmem:[#allocation2 + $0x5c] sm:$0x1] %v529
        %v531 = vld [vmem:[#allocation2] sm:$0xff]
        %v532 = vld [vmem:[#allocation2 + $0x8] sm:$0xf]
        %v533 = vld [vmem:[#allocation2 + $0x18] sm:$0xff]
        %v534 = vld [vmem:[#allocation2 + $0x20] sm:$0xf]
        %v535 = vld [vmem:[#allocation2 + $0x30] sm:$0xff]
        %v536 = vld [vmem:[#allocation2 + $0x38] sm:$0xf]
        %v537 = vld [vmem:[#allocation2 + $0x48] sm:$0xff]
        %v538 = vld [vmem:[#allocation2 + $0x50] sm:$0xf]
        %v539 = vld [vmem:[#allocation8] sm:$0xff]
        %v540 = vld [vmem:[#allocation8 + $0x8] sm:$0xff]
        %v541 = vld [vmem:[#allocation8 + $0x10] sm:$0xff]
        %v542 = vld [vmem:[#allocation8 + $0x18] sm:$0xff]
        %v543 = vld [vmem:[#allocation8 + $0x20] sm:$0xff]
        %v544 = vld [vmem:[#allocation8 + $0x28] sm:$0xff]
        %v545 = vld [vmem:[#allocation8 + $0x30] sm:$0xff]
        %v546 = vld [vmem:[#allocation8 + $0x38] sm:$0xff]
        %v547 = vld [vmem:[#allocation8 + $0x40] sm:$0xff]
        %v548 = vld [vmem:[#allocation8 + $0x48] sm:$0xff]
        %v549 = vld [vmem:[#allocation8 + $0x50] sm:$0xff]
        %v550 = vld [vmem:[#allocation8 + $0x58] sm:$0xff]
        %v551 = vld [vmem:[#allocation8 + $0x60] sm:$0xff]
        %v552 = vld [vmem:[#allocation8 + $0x68] sm:$0xff]
        %v553 = vld [vmem:[#allocation8 + $0x70] sm:$0xff]
        %v554 = vld [vmem:[#allocation8 + $0x78] sm:$0xff]
        %v555 = vld [vmem:[#allocation8 + $0x80] sm:$0xff]
        %v556 = vld [vmem:[#allocation8 + $0x88] sm:$0xff]
        %v557 = vld [vmem:[#allocation8 + $0x90] sm:$0xff]
        %v558 = vld [vmem:[#allocation8 + $0x98] sm:$0xff]
        %v559 = vld [vmem:[#allocation8 + $0xa0] sm:$0xff]
        %v560 = vld [vmem:[#allocation8 + $0xa8] sm:$0xff]
        %v561 = vld [vmem:[#allocation8 + $0xb0] sm:$0xff]
        %v562 = vld [vmem:[#allocation8 + $0xb8] sm:$0xff]
        %v563 = vld [vmem:[#allocation8 + $0xc0] sm:$0xff]
        %v564 = vld [vmem:[#allocation8 + $0xc8] sm:$0xff]
        %v565 = vld [vmem:[#allocation8 + $0xd0] sm:$0xff]
        %v566 = vld [vmem:[#allocation8 + $0xd8] sm:$0xff]
        %v567 = vld [vmem:[#allocation8 + $0xe0] sm:$0xff]
        %v568 = vld [vmem:[#allocation8 + $0xe8] sm:$0xff]
        %v569 = vld [vmem:[#allocation8 + $0xf0] sm:$0xff]
        %v570 = vld [vmem:[#allocation8 + $0xf8] sm:$0xff]
        %v571 = vld [vmem:[#allocation8 + $0x100] sm:$0xff]
        %v572 = vld [vmem:[#allocation8 + $0x108] sm:$0xff]
        %v573 = vld [vmem:[#allocation8 + $0x110] sm:$0xff]
        %v574 = vld [vmem:[#allocation8 + $0x118] sm:$0xff]
        %v575 = vld [vmem:[#allocation8 + $0x120] sm:$0xff]
        %v576 = vld [vmem:[#allocation8 + $0x128] sm:$0xff]
        %v577 = vld [vmem:[#allocation8 + $0x130] sm:$0xff]
        %v578 = vld [vmem:[#allocation8 + $0x138] sm:$0xff]
        %v579 = vld [vmem:[#allocation8 + $0x140] sm:$0xff]
        %v580 = vld [vmem:[#allocation8 + $0x148] sm:$0xff]
        %v581 = vld [vmem:[#allocation8 + $0x150] sm:$0xff]
        %v582 = vld [vmem:[#allocation8 + $0x158] sm:$0xff]
        %v583 = vld [vmem:[#allocation8 + $0x160] sm:$0xff]
        %v584 = vld [vmem:[#allocation8 + $0x168] sm:$0xff]
        %v585 = vld [vmem:[#allocation8 + $0x170] sm:$0xff]
        %v586 = vld [vmem:[#allocation8 + $0x178] sm:$0xff]
        %v587 = vld [vmem:[#allocation8 + $0x180] sm:$0xff]
        %v588 = vld [vmem:[#allocation8 + $0x188] sm:$0xff]
        %v589 = vld [vmem:[#allocation8 + $0x190] sm:$0xff]
        %v590 = vld [vmem:[#allocation8 + $0x198] sm:$0xff]
        %v591 = vld [vmem:[#allocation8 + $0x1a0] sm:$0xff]
        %v592 = vld [vmem:[#allocation8 + $0x1a8] sm:$0xff]
        %v593 = vld [vmem:[#allocation8 + $0x1b0] sm:$0xff]
        %v594 = vld [vmem:[#allocation8 + $0x1b8] sm:$0xff]
        %v595 = vld [vmem:[#allocation8 + $0x1c0] sm:$0xff]
        %v596 = vld [vmem:[#allocation8 + $0x1c8] sm:$0xff]
        %v597 = vld [vmem:[#allocation8 + $0x1d0] sm:$0xff]
        %v598 = vld [vmem:[#allocation8 + $0x1d8] sm:$0xff]
        %v599 = vld [vmem:[#allocation8 + $0x1e0] sm:$0xff]
        %v600 = vld [vmem:[#allocation8 + $0x1e8] sm:$0xff]
        %v601 = vld [vmem:[#allocation8 + $0x1f0] sm:$0xff]
        %v602 = vld [vmem:[#allocation8 + $0x1f8] sm:$0xff]
        %v603 = vld [vmem:[#allocation8 + $0x200] sm:$0xff]
        %v604 = vld [vmem:[#allocation8 + $0x208] sm:$0xff]
        %v605 = vld [vmem:[#allocation8 + $0x210] sm:$0xff]
        %v606 = vld [vmem:[#allocation8 + $0x218] sm:$0xff]
        %v607 = vld [vmem:[#allocation8 + $0x220] sm:$0xff]
        %v608 = vld [vmem:[#allocation8 + $0x228] sm:$0xff]
        %v609 = vld [vmem:[#allocation8 + $0x230] sm:$0xff]
        %v610 = vld [vmem:[#allocation8 + $0x238] sm:$0xff]
        %v611 = vld [vmem:[#allocation8 + $0x240] sm:$0xff]
        %v612 = vld [vmem:[#allocation8 + $0x248] sm:$0xff]
        %v613 = vld [vmem:[#allocation8 + $0x250] sm:$0xff]
        %v614 = vld [vmem:[#allocation8 + $0x258] sm:$0xff]
        %v615 = vld [vmem:[#allocation8 + $0x260] sm:$0xff]
        %v616 = vld [vmem:[#allocation8 + $0x268] sm:$0xff]
        %v617 = vld [vmem:[#allocation8 + $0x270] sm:$0xff]
        %v618 = vld [vmem:[#allocation8 + $0x278] sm:$0xff]
        %v619 = vld [vmem:[#allocation8 + $0x280] sm:$0xff]
        %v620 = vld [vmem:[#allocation8 + $0x288] sm:$0xff]
        %v621 = vld [vmem:[#allocation8 + $0x290] sm:$0xff]
        %v622 = vld [vmem:[#allocation8 + $0x298] sm:$0xff]
        %v623 = vld [vmem:[#allocation8 + $0x2a0] sm:$0xff]
        %v624 = vld [vmem:[#allocation8 + $0x2a8] sm:$0xff]
        %v625 = vld [vmem:[#allocation8 + $0x2b0] sm:$0xff]
        %v626 = vld [vmem:[#allocation8 + $0x2b8] sm:$0xff]
        %v627 = vld [vmem:[#allocation8 + $0x2c0] sm:$0xff]
        %v628 = vld [vmem:[#allocation8 + $0x2c8] sm:$0xff]
        %v629 = vld [vmem:[#allocation8 + $0x2d0] sm:$0xff]
        %v630 = vld [vmem:[#allocation8 + $0x2d8] sm:$0xff]
        %v631 = vld [vmem:[#allocation8 + $0x2e0] sm:$0xff]
        %v632 = vld [vmem:[#allocation8 + $0x2e8] sm:$0xff]
        %v633 = vld [vmem:[#allocation8 + $0x2f0] sm:$0xff]
        %v634 = vld [vmem:[#allocation8 + $0x2f8] sm:$0xff]
        %v635 = vld [vmem:[#allocation8 + $0x300] sm:$0xff]
        %v636 = vld [vmem:[#allocation8 + $0x308] sm:$0xff]
        %v637 = vld [vmem:[#allocation8 + $0x310] sm:$0xff]
        %v638 = vld [vmem:[#allocation8 + $0x318] sm:$0xff]
        %v639 = vld [vmem:[#allocation8 + $0x320] sm:$0xff]
        %v640 = vld [vmem:[#allocation8 + $0x328] sm:$0xff]
        %v641 = vld [vmem:[#allocation8 + $0x330] sm:$0xff]
        %v642 = vld [vmem:[#allocation8 + $0x338] sm:$0xff]
        %v643 = vld [vmem:[#allocation8 + $0x340] sm:$0xff]
        %v644 = vld [vmem:[#allocation8 + $0x348] sm:$0xff]
        %v645 = vld [vmem:[#allocation8 + $0x350] sm:$0xff]
        %v646 = vld [vmem:[#allocation8 + $0x358] sm:$0xff]
        %v647 = vld [vmem:[#allocation2 + $0xc] sm:$0x11]
        %v648 = vld [vmem:[#allocation2 + $0x14] sm:$0x1]
        %v649 = vld [vmem:[#allocation2 + $0x24] sm:$0x11]
        %v650 = vld [vmem:[#allocation2 + $0x2c] sm:$0x1]
        %v651 = vld [vmem:[#allocation2 + $0x3c] sm:$0x11]
        %v652 = vld [vmem:[#allocation2 + $0x44] sm:$0x1]
        %v653 = vld [vmem:[#allocation2 + $0x54] sm:$0x11]
        %v654 = vld [vmem:[#allocation2 + $0x5c] sm:$0x1]
        %vm655 = vsmask.f32 3328
        %vm656 = vsmask.f32 7440
        %vm657 = vmor %vm655, %vm656
        %v659 = vshrl.u32 %v531, 16
        %v661 = vrot.slane %v659, 4
        %v662 = vshll.u32 %v531, 16
        %v664 = vrot.slane %v662, 5
        %v665 = vor.u32 %v661, %v664
        %v666 = vrot.slane %v665, 4
        %v668 = vshll.u32 %v647, 16
        %v670 = vrot.slane %v668, 5
        %v671 = vsel %vm657, %v666, %v670
        %v673 = vshrl.u32 %v532, 16
        %v675 = vrot.slane %v673, 4
        %v676 = vshll.u32 %v532, 16
        %v678 = vrot.slane %v676, 5
        %v679 = vor.u32 %v675, %v678
        %v680 = vrot.slane %v679, 4
        %v682 = vshll.u32 %v648, 16
        %v684 = vrot.slane %v682, 5
        %v685 = vsel %vm657, %v680, %v684
        %v687 = vshrl.u32 %v533, 16
        %v689 = vrot.slane %v687, 4
        %v690 = vshll.u32 %v533, 16
        %v692 = vrot.slane %v690, 5
        %v693 = vor.u32 %v689, %v692
        %v694 = vrot.slane %v693, 4
        %v696 = vshll.u32 %v649, 16
        %v698 = vrot.slane %v696, 5
        %v699 = vsel %vm657, %v694, %v698
        %v701 = vshrl.u32 %v534, 16
        %v703 = vrot.slane %v701, 4
        %v704 = vshll.u32 %v534, 16
        %v706 = vrot.slane %v704, 5
        %v707 = vor.u32 %v703, %v706
        %v708 = vrot.slane %v707, 4
        %v710 = vshll.u32 %v650, 16
        %v712 = vrot.slane %v710, 5
        %v713 = vsel %vm657, %v708, %v712
        %v715 = vshrl.u32 %v535, 16
        %v717 = vrot.slane %v715, 4
        %v718 = vshll.u32 %v535, 16
        %v720 = vrot.slane %v718, 5
        %v721 = vor.u32 %v717, %v720
        %v722 = vrot.slane %v721, 4
        %v724 = vshll.u32 %v651, 16
        %v726 = vrot.slane %v724, 5
        %v727 = vsel %vm657, %v722, %v726
        %v729 = vshrl.u32 %v536, 16
        %v731 = vrot.slane %v729, 4
        %v732 = vshll.u32 %v536, 16
        %v734 = vrot.slane %v732, 5
        %v735 = vor.u32 %v731, %v734
        %v736 = vrot.slane %v735, 4
        %v738 = vshll.u32 %v652, 16
        %v740 = vrot.slane %v738, 5
        %v741 = vsel %vm657, %v736, %v740
        %v743 = vshrl.u32 %v537, 16
        %v745 = vrot.slane %v743, 4
        %v746 = vshll.u32 %v537, 16
        %v748 = vrot.slane %v746, 5
        %v749 = vor.u32 %v745, %v748
        %v750 = vrot.slane %v749, 4
        %v752 = vshll.u32 %v653, 16
        %v754 = vrot.slane %v752, 5
        %v755 = vsel %vm657, %v750, %v754
        %v757 = vshrl.u32 %v538, 16
        %v759 = vrot.slane %v757, 4
        %v760 = vshll.u32 %v538, 16
        %v762 = vrot.slane %v760, 5
        %v763 = vor.u32 %v759, %v762
        %v764 = vrot.slane %v763, 4
        %v766 = vshll.u32 %v654, 16
        %v768 = vrot.slane %v766, 5
        %v769 = vsel %vm657, %v764, %v768
        %s770 = scalar_lea.vmem [#allocation8], 864
        %v771 = vld [vmem:[%s770] sm:$0xff]
        %v772 = vld [vmem:[%s770 + $0x8] sm:$0xff]
        %v773 = vld [vmem:[%s770 + $0x10] sm:$0xff]
        %v774 = vld [vmem:[%s770 + $0x18] sm:$0xff]
        %v775 = vld [vmem:[%s770 + $0x20] sm:$0xff]
        %v776 = vld [vmem:[%s770 + $0x28] sm:$0xff]
        %v777 = vld [vmem:[%s770 + $0x30] sm:$0xff]
        %v778 = vld [vmem:[%s770 + $0x38] sm:$0xff]
        %v779 = vld [vmem:[%s770 + $0x40] sm:$0xff]
        %v780 = vld [vmem:[%s770 + $0x48] sm:$0xff]
        %v781 = vld [vmem:[%s770 + $0x50] sm:$0xff]
        %v782 = vld [vmem:[%s770 + $0x58] sm:$0xff]
        %v783 = vld [vmem:[%s770 + $0x60] sm:$0xff]
        %v784 = vld [vmem:[%s770 + $0x68] sm:$0xff]
        %v785 = vld [vmem:[%s770 + $0x70] sm:$0xff]
        %v786 = vld [vmem:[%s770 + $0x78] sm:$0xff]
        %v787 = vld [vmem:[%s770 + $0x80] sm:$0xff]
        %v788 = vld [vmem:[%s770 + $0x88] sm:$0xff]
        %v789 = vld [vmem:[%s770 + $0x90] sm:$0xff]
        %v790 = vld [vmem:[%s770 + $0x98] sm:$0xff]
        %v791 = vld [vmem:[%s770 + $0xa0] sm:$0xff]
        %v792 = vld [vmem:[%s770 + $0xa8] sm:$0xff]
        %v793 = vld [vmem:[%s770 + $0xb0] sm:$0xff]
        %v794 = vld [vmem:[%s770 + $0xb8] sm:$0xff]
        %v795 = vld [vmem:[%s770 + $0xc0] sm:$0xff]
        %v796 = vld [vmem:[%s770 + $0xc8] sm:$0xff]
        %v797 = vld [vmem:[%s770 + $0xd0] sm:$0xff]
        %v798 = vld [vmem:[%s770 + $0xd8] sm:$0xff]
        %v799 = vld [vmem:[%s770 + $0xe0] sm:$0xff]
        %v800 = vld [vmem:[%s770 + $0xe8] sm:$0xff]
        %v801 = vld [vmem:[%s770 + $0xf0] sm:$0xff]
        %v802 = vld [vmem:[%s770 + $0xf8] sm:$0xff]
        %v803 = vld [vmem:[%s770 + $0x100] sm:$0xff]
        %v804 = vld [vmem:[%s770 + $0x108] sm:$0xff]
        %v805 = vld [vmem:[%s770 + $0x110] sm:$0xff]
        %v806 = vld [vmem:[%s770 + $0x118] sm:$0xff]
        %v807 = vld [vmem:[%s770 + $0x120] sm:$0xff]
        %v808 = vld [vmem:[%s770 + $0x128] sm:$0xff]
        %v809 = vld [vmem:[%s770 + $0x130] sm:$0xff]
        %v810 = vld [vmem:[%s770 + $0x138] sm:$0xff]
        %v811 = vld [vmem:[%s770 + $0x140] sm:$0xff]
        %v812 = vld [vmem:[%s770 + $0x148] sm:$0xff]
        %v813 = vld [vmem:[%s770 + $0x150] sm:$0xff]
        %v814 = vld [vmem:[%s770 + $0x158] sm:$0xff]
        %v815 = vld [vmem:[%s770 + $0x160] sm:$0xff]
        %v816 = vld [vmem:[%s770 + $0x168] sm:$0xff]
        %v817 = vld [vmem:[%s770 + $0x170] sm:$0xff]
        %v818 = vld [vmem:[%s770 + $0x178] sm:$0xff]
        %v819 = vld [vmem:[%s770 + $0x180] sm:$0xff]
        %v820 = vld [vmem:[%s770 + $0x188] sm:$0xff]
        %v821 = vld [vmem:[%s770 + $0x190] sm:$0xff]
        %v822 = vld [vmem:[%s770 + $0x198] sm:$0xff]
        %v823 = vld [vmem:[%s770 + $0x1a0] sm:$0xff]
        %v824 = vld [vmem:[%s770 + $0x1a8] sm:$0xff]
        %v825 = vld [vmem:[%s770 + $0x1b0] sm:$0xff]
        %v826 = vld [vmem:[%s770 + $0x1b8] sm:$0xff]
        %v827 = vld [vmem:[%s770 + $0x1c0] sm:$0xff]
        %v828 = vld [vmem:[%s770 + $0x1c8] sm:$0xff]
        %v829 = vld [vmem:[%s770 + $0x1d0] sm:$0xff]
        %v830 = vld [vmem:[%s770 + $0x1d8] sm:$0xff]
        %v831 = vld [vmem:[%s770 + $0x1e0] sm:$0xff]
        %v832 = vld [vmem:[%s770 + $0x1e8] sm:$0xff]
        %v833 = vld [vmem:[%s770 + $0x1f0] sm:$0xff]
        %v834 = vld [vmem:[%s770 + $0x1f8] sm:$0xff]
        %v835 = vld [vmem:[%s770 + $0x200] sm:$0xff]
        %v836 = vld [vmem:[%s770 + $0x208] sm:$0xff]
        %v837 = vld [vmem:[%s770 + $0x210] sm:$0xff]
        %v838 = vld [vmem:[%s770 + $0x218] sm:$0xff]
        %v839 = vld [vmem:[%s770 + $0x220] sm:$0xff]
        %v840 = vld [vmem:[%s770 + $0x228] sm:$0xff]
        %v841 = vld [vmem:[%s770 + $0x230] sm:$0xff]
        %v842 = vld [vmem:[%s770 + $0x238] sm:$0xff]
        %v843 = vld [vmem:[%s770 + $0x240] sm:$0xff]
        %v844 = vld [vmem:[%s770 + $0x248] sm:$0xff]
        %v845 = vld [vmem:[%s770 + $0x250] sm:$0xff]
        %v846 = vld [vmem:[%s770 + $0x258] sm:$0xff]
        %v847 = vld [vmem:[%s770 + $0x260] sm:$0xff]
        %v848 = vld [vmem:[%s770 + $0x268] sm:$0xff]
        %v849 = vld [vmem:[%s770 + $0x270] sm:$0xff]
        %v850 = vld [vmem:[%s770 + $0x278] sm:$0xff]
        %v851 = vld [vmem:[%s770 + $0x280] sm:$0xff]
        %v852 = vld [vmem:[%s770 + $0x288] sm:$0xff]
        %v853 = vld [vmem:[%s770 + $0x290] sm:$0xff]
        %v854 = vld [vmem:[%s770 + $0x298] sm:$0xff]
        %v855 = vld [vmem:[%s770 + $0x2a0] sm:$0xff]
        %v856 = vld [vmem:[%s770 + $0x2a8] sm:$0xff]
        %v857 = vld [vmem:[%s770 + $0x2b0] sm:$0xff]
        %v858 = vld [vmem:[%s770 + $0x2b8] sm:$0xff]
        %v859 = vld [vmem:[%s770 + $0x2c0] sm:$0xff]
        %v860 = vld [vmem:[%s770 + $0x2c8] sm:$0xff]
        %v861 = vld [vmem:[%s770 + $0x2d0] sm:$0xff]
        %v862 = vld [vmem:[%s770 + $0x2d8] sm:$0xff]
        %v863 = vld [vmem:[%s770 + $0x2e0] sm:$0xff]
        %v864 = vld [vmem:[%s770 + $0x2e8] sm:$0xff]
        %v865 = vld [vmem:[%s770 + $0x2f0] sm:$0xff]
        %v866 = vld [vmem:[%s770 + $0x2f8] sm:$0xff]
        %v867 = vld [vmem:[%s770 + $0x300] sm:$0xff]
        %v868 = vld [vmem:[%s770 + $0x308] sm:$0xff]
        %v869 = vld [vmem:[%s770 + $0x310] sm:$0xff]
        %v870 = vld [vmem:[%s770 + $0x318] sm:$0xff]
        %v871 = vld [vmem:[%s770 + $0x320] sm:$0xff]
        %v872 = vld [vmem:[%s770 + $0x328] sm:$0xff]
        %v873 = vld [vmem:[%s770 + $0x330] sm:$0xff]
        %v874 = vld [vmem:[%s770 + $0x338] sm:$0xff]
        %v875 = vld [vmem:[%s770 + $0x340] sm:$0xff]
        %v876 = vld [vmem:[%s770 + $0x348] sm:$0xff]
        %v877 = vld [vmem:[%s770 + $0x350] sm:$0xff]
        %v878 = vld [vmem:[%s770 + $0x358] sm:$0xff]
        %v879 = vunpack.c.l.b16 %v671
        %v880 = vunpack.c.h.b16 %v671
        %v881 = vunpack.c.l.b16 %v685
        %v882 = vunpack.c.l.b16 %v699
        %v883 = vunpack.c.h.b16 %v699
        %v884 = vunpack.c.l.b16 %v713
        %v885 = vunpack.c.l.b16 %v727
        %v886 = vunpack.c.h.b16 %v727
        %v887 = vunpack.c.l.b16 %v741
        %v888 = vunpack.c.l.b16 %v755
        %v889 = vunpack.c.h.b16 %v755
        %v890 = vunpack.c.l.b16 %v769
        %v891 = vpack.c.b16 %v882, %v879
        %v892 = vpack.c.b16 %v883, %v880
        %v893 = vpack.c.b16 %v884, %v881
        %v894 = vpack.c.b16 %v888, %v885
        %v895 = vpack.c.b16 %v889, %v886
        %v896 = vpack.c.b16 %v890, %v887
        %v1009 = vunpack.c.l.b16 %v771
        %v1010 = vunpack.c.h.b16 %v771
        %v1011 = vunpack.c.l.b16 %v772
        %v1012 = vunpack.c.h.b16 %v772
        %v1013 = vunpack.c.l.b16 %v773
        %v1014 = vunpack.c.h.b16 %v773
        %v1015 = vunpack.c.l.b16 %v774
        %v1016 = vunpack.c.h.b16 %v774
        %v1017 = vunpack.c.l.b16 %v775
        %v1018 = vunpack.c.h.b16 %v775
        %v1019 = vunpack.c.l.b16 %v776
        %v1020 = vunpack.c.h.b16 %v776
        %v1021 = vunpack.c.l.b16 %v777
        %v1022 = vunpack.c.h.b16 %v777
        %v1023 = vunpack.c.l.b16 %v778
        %v1024 = vunpack.c.h.b16 %v778
        %v1025 = vunpack.c.l.b16 %v779
        %v1026 = vunpack.c.h.b16 %v779
        %v1027 = vunpack.c.l.b16 %v780
        %v1028 = vunpack.c.h.b16 %v780
        %v1029 = vunpack.c.l.b16 %v781
        %v1030 = vunpack.c.h.b16 %v781
        %v1031 = vunpack.c.l.b16 %v782
        %v1032 = vunpack.c.h.b16 %v782
        %v1033 = vunpack.c.l.b16 %v783
        %v1034 = vunpack.c.h.b16 %v783
        %v1035 = vunpack.c.l.b16 %v784
        %v1036 = vunpack.c.h.b16 %v784
        %v1037 = vunpack.c.l.b16 %v785
        %v1038 = vunpack.c.h.b16 %v785
        %v1039 = vunpack.c.l.b16 %v786
        %v1040 = vunpack.c.h.b16 %v786
        %v1041 = vunpack.c.l.b16 %v787
        %v1042 = vunpack.c.h.b16 %v787
        %v1043 = vunpack.c.l.b16 %v788
        %v1044 = vunpack.c.h.b16 %v788
        %v1045 = vunpack.c.l.b16 %v789
        %v1046 = vunpack.c.h.b16 %v789
        %v1047 = vunpack.c.l.b16 %v790
        %v1048 = vunpack.c.h.b16 %v790
        %v1049 = vunpack.c.l.b16 %v791
        %v1050 = vunpack.c.h.b16 %v791
        %v1051 = vunpack.c.l.b16 %v792
        %v1052 = vunpack.c.h.b16 %v792
        %v1053 = vunpack.c.l.b16 %v793
        %v1054 = vunpack.c.h.b16 %v793
        %v1055 = vunpack.c.l.b16 %v794
        %v1056 = vunpack.c.h.b16 %v794
        %v1057 = vunpack.c.l.b16 %v795
        %v1058 = vunpack.c.h.b16 %v795
        %v1059 = vunpack.c.l.b16 %v796
        %v1060 = vunpack.c.h.b16 %v796
        %v1061 = vunpack.c.l.b16 %v797
        %v1062 = vunpack.c.h.b16 %v797
        %v1063 = vunpack.c.l.b16 %v798
        %v1064 = vunpack.c.h.b16 %v798
        %v1065 = vunpack.c.l.b16 %v799
        %v1066 = vunpack.c.h.b16 %v799
        %v1067 = vunpack.c.l.b16 %v800
        %v1068 = vunpack.c.h.b16 %v800
        %v1069 = vunpack.c.l.b16 %v801
        %v1070 = vunpack.c.h.b16 %v801
        %v1071 = vunpack.c.l.b16 %v802
        %v1072 = vunpack.c.h.b16 %v802
        %v1073 = vunpack.c.l.b16 %v803
        %v1074 = vunpack.c.h.b16 %v803
        %v1075 = vunpack.c.l.b16 %v804
        %v1076 = vunpack.c.h.b16 %v804
        %v1077 = vunpack.c.l.b16 %v805
        %v1078 = vunpack.c.h.b16 %v805
        %v1079 = vunpack.c.l.b16 %v806
        %v1080 = vunpack.c.h.b16 %v806
        %v1081 = vunpack.c.l.b16 %v807
        %v1082 = vunpack.c.h.b16 %v807
        %v1083 = vunpack.c.l.b16 %v808
        %v1084 = vunpack.c.h.b16 %v808
        %v1085 = vunpack.c.l.b16 %v809
        %v1086 = vunpack.c.h.b16 %v809
        %v1087 = vunpack.c.l.b16 %v810
        %v1088 = vunpack.c.h.b16 %v810
        %v1089 = vunpack.c.l.b16 %v811
        %v1090 = vunpack.c.h.b16 %v811
        %v1091 = vunpack.c.l.b16 %v812
        %v1092 = vunpack.c.h.b16 %v812
        %v1093 = vunpack.c.l.b16 %v813
        %v1094 = vunpack.c.h.b16 %v813
        %v1095 = vunpack.c.l.b16 %v814
        %v1096 = vunpack.c.h.b16 %v814
        %v1097 = vunpack.c.l.b16 %v815
        %v1098 = vunpack.c.h.b16 %v815
        %v1099 = vunpack.c.l.b16 %v816
        %v1100 = vunpack.c.h.b16 %v816
        %v1101 = vunpack.c.l.b16 %v817
        %v1102 = vunpack.c.h.b16 %v817
        %v1103 = vunpack.c.l.b16 %v818
        %v1104 = vunpack.c.h.b16 %v818
        %v1105 = vunpack.c.l.b16 %v819
        %v1106 = vunpack.c.h.b16 %v819
        %v1107 = vunpack.c.l.b16 %v820
        %v1108 = vunpack.c.h.b16 %v820
        %v1109 = vunpack.c.l.b16 %v821
        %v1110 = vunpack.c.h.b16 %v821
        %v1111 = vunpack.c.l.b16 %v822
        %v1112 = vunpack.c.h.b16 %v822
        %v1113 = vunpack.c.l.b16 %v823
        %v1114 = vunpack.c.h.b16 %v823
        %v1115 = vunpack.c.l.b16 %v824
        %v1116 = vunpack.c.h.b16 %v824
        %v1117 = vunpack.c.l.b16 %v825
        %v1118 = vunpack.c.h.b16 %v825
        %v1119 = vunpack.c.l.b16 %v826
        %v1120 = vunpack.c.h.b16 %v826
        %v1121 = vunpack.c.l.b16 %v827
        %v1122 = vunpack.c.h.b16 %v827
        %v1123 = vunpack.c.l.b16 %v828
        %v1124 = vunpack.c.h.b16 %v828
        %v1125 = vunpack.c.l.b16 %v829
        %v1126 = vunpack.c.h.b16 %v829
        %v1127 = vunpack.c.l.b16 %v830
        %v1128 = vunpack.c.h.b16 %v830
        %v1129 = vunpack.c.l.b16 %v831
        %v1130 = vunpack.c.h.b16 %v831
        %v1131 = vunpack.c.l.b16 %v832
        %v1132 = vunpack.c.h.b16 %v832
        %v1133 = vunpack.c.l.b16 %v833
        %v1134 = vunpack.c.h.b16 %v833
        %v1135 = vunpack.c.l.b16 %v834
        %v1136 = vunpack.c.h.b16 %v834
        %v1137 = vunpack.c.l.b16 %v835
        %v1138 = vunpack.c.h.b16 %v835
        %v1139 = vunpack.c.l.b16 %v836
        %v1140 = vunpack.c.h.b16 %v836
        %v1141 = vunpack.c.l.b16 %v837
        %v1142 = vunpack.c.h.b16 %v837
        %v1143 = vunpack.c.l.b16 %v838
        %v1144 = vunpack.c.h.b16 %v838
        %v1145 = vunpack.c.l.b16 %v839
        %v1146 = vunpack.c.h.b16 %v839
        %v1147 = vunpack.c.l.b16 %v840
        %v1148 = vunpack.c.h.b16 %v840
        %v1149 = vunpack.c.l.b16 %v841
        %v1150 = vunpack.c.h.b16 %v841
        %v1151 = vunpack.c.l.b16 %v842
        %v1152 = vunpack.c.h.b16 %v842
        %v1153 = vunpack.c.l.b16 %v843
        %v1154 = vunpack.c.h.b16 %v843
        %v1155 = vunpack.c.l.b16 %v844
        %v1156 = vunpack.c.h.b16 %v844
        %v1157 = vunpack.c.l.b16 %v845
        %v1158 = vunpack.c.h.b16 %v845
        %v1159 = vunpack.c.l.b16 %v846
        %v1160 = vunpack.c.h.b16 %v846
        %v1161 = vunpack.c.l.b16 %v847
        %v1162 = vunpack.c.h.b16 %v847
        %v1163 = vunpack.c.l.b16 %v848
        %v1164 = vunpack.c.h.b16 %v848
        %v1165 = vunpack.c.l.b16 %v849
        %v1166 = vunpack.c.h.b16 %v849
        %v1167 = vunpack.c.l.b16 %v850
        %v1168 = vunpack.c.h.b16 %v850
        %v1169 = vunpack.c.l.b16 %v851
        %v1170 = vunpack.c.h.b16 %v851
        %v1171 = vunpack.c.l.b16 %v852
        %v1172 = vunpack.c.h.b16 %v852
        %v1173 = vunpack.c.l.b16 %v853
        %v1174 = vunpack.c.h.b16 %v853
        %v1175 = vunpack.c.l.b16 %v854
        %v1176 = vunpack.c.h.b16 %v854
        %v1177 = vunpack.c.l.b16 %v855
        %v1178 = vunpack.c.h.b16 %v855
        %v1179 = vunpack.c.l.b16 %v856
        %v1180 = vunpack.c.h.b16 %v856
        %v1181 = vunpack.c.l.b16 %v857
        %v1182 = vunpack.c.h.b16 %v857
        %v1183 = vunpack.c.l.b16 %v858
        %v1184 = vunpack.c.h.b16 %v858
        %v1185 = vunpack.c.l.b16 %v859
        %v1186 = vunpack.c.h.b16 %v859
        %v1187 = vunpack.c.l.b16 %v860
        %v1188 = vunpack.c.h.b16 %v860
        %v1189 = vunpack.c.l.b16 %v861
        %v1190 = vunpack.c.h.b16 %v861
        %v1191 = vunpack.c.l.b16 %v862
        %v1192 = vunpack.c.h.b16 %v862
        %v1193 = vunpack.c.l.b16 %v863
        %v1194 = vunpack.c.h.b16 %v863
        %v1195 = vunpack.c.l.b16 %v864
        %v1196 = vunpack.c.h.b16 %v864
        %v1197 = vunpack.c.l.b16 %v865
        %v1198 = vunpack.c.h.b16 %v865
        %v1199 = vunpack.c.l.b16 %v866
        %v1200 = vunpack.c.h.b16 %v866
        %v1201 = vunpack.c.l.b16 %v867
        %v1202 = vunpack.c.h.b16 %v867
        %v1203 = vunpack.c.l.b16 %v868
        %v1204 = vunpack.c.h.b16 %v868
        %v1205 = vunpack.c.l.b16 %v869
        %v1206 = vunpack.c.h.b16 %v869
        %v1207 = vunpack.c.l.b16 %v870
        %v1208 = vunpack.c.h.b16 %v870
        %v1209 = vunpack.c.l.b16 %v871
        %v1210 = vunpack.c.h.b16 %v871
        %v1211 = vunpack.c.l.b16 %v872
        %v1212 = vunpack.c.h.b16 %v872
        %v1213 = vunpack.c.l.b16 %v873
        %v1214 = vunpack.c.h.b16 %v873
        %v1215 = vunpack.c.l.b16 %v874
        %v1216 = vunpack.c.h.b16 %v874
        %v1217 = vunpack.c.l.b16 %v875
        %v1218 = vunpack.c.h.b16 %v875
        %v1219 = vunpack.c.l.b16 %v876
        %v1220 = vunpack.c.h.b16 %v876
        %v1221 = vunpack.c.l.b16 %v877
        %v1222 = vunpack.c.h.b16 %v877
        %v1223 = vunpack.c.l.b16 %v878
        %v1224 = vunpack.c.h.b16 %v878
        %v1225 = vpack.c.b16 %v1015, %v1009
        %v1226 = vpack.c.b16 %v1016, %v1010
        %v1227 = vpack.c.b16 %v1017, %v1011
        %v1228 = vpack.c.b16 %v1018, %v1012
        %v1229 = vpack.c.b16 %v1019, %v1013
        %v1230 = vpack.c.b16 %v1020, %v1014
        %v1231 = vpack.c.b16 %v1027, %v1021
        %v1232 = vpack.c.b16 %v1028, %v1022
        %v1233 = vpack.c.b16 %v1029, %v1023
        %v1234 = vpack.c.b16 %v1030, %v1024
        %v1235 = vpack.c.b16 %v1031, %v1025
        %v1236 = vpack.c.b16 %v1032, %v1026
        %v1237 = vpack.c.b16 %v1039, %v1033
        %v1238 = vpack.c.b16 %v1040, %v1034
        %v1239 = vpack.c.b16 %v1041, %v1035
        %v1240 = vpack.c.b16 %v1042, %v1036
        %v1241 = vpack.c.b16 %v1043, %v1037
        %v1242 = vpack.c.b16 %v1044, %v1038
        %v1243 = vpack.c.b16 %v1051, %v1045
        %v1244 = vpack.c.b16 %v1052, %v1046
        %v1245 = vpack.c.b16 %v1053, %v1047
        %v1246 = vpack.c.b16 %v1054, %v1048
        %v1247 = vpack.c.b16 %v1055, %v1049
        %v1248 = vpack.c.b16 %v1056, %v1050
        %v1249 = vpack.c.b16 %v1063, %v1057
        %v1250 = vpack.c.b16 %v1064, %v1058
        %v1251 = vpack.c.b16 %v1065, %v1059
        %v1252 = vpack.c.b16 %v1066, %v1060
        %v1253 = vpack.c.b16 %v1067, %v1061
        %v1254 = vpack.c.b16 %v1068, %v1062
        %v1255 = vpack.c.b16 %v1075, %v1069
        %v1256 = vpack.c.b16 %v1076, %v1070
        %v1257 = vpack.c.b16 %v1077, %v1071
        %v1258 = vpack.c.b16 %v1078, %v1072
        %v1259 = vpack.c.b16 %v1079, %v1073
        %v1260 = vpack.c.b16 %v1080, %v1074
        %v1261 = vpack.c.b16 %v1087, %v1081
        %v1262 = vpack.c.b16 %v1088, %v1082
        %v1263 = vpack.c.b16 %v1089, %v1083
        %v1264 = vpack.c.b16 %v1090, %v1084
        %v1265 = vpack.c.b16 %v1091, %v1085
        %v1266 = vpack.c.b16 %v1092, %v1086
        %v1267 = vpack.c.b16 %v1099, %v1093
        %v1268 = vpack.c.b16 %v1100, %v1094
        %v1269 = vpack.c.b16 %v1101, %v1095
        %v1270 = vpack.c.b16 %v1102, %v1096
        %v1271 = vpack.c.b16 %v1103, %v1097
        %v1272 = vpack.c.b16 %v1104, %v1098
        %v1273 = vpack.c.b16 %v1111, %v1105
        %v1274 = vpack.c.b16 %v1112, %v1106
        %v1275 = vpack.c.b16 %v1113, %v1107
        %v1276 = vpack.c.b16 %v1114, %v1108
        %v1277 = vpack.c.b16 %v1115, %v1109
        %v1278 = vpack.c.b16 %v1116, %v1110
        %v1279 = vpack.c.b16 %v1123, %v1117
        %v1280 = vpack.c.b16 %v1124, %v1118
        %v1281 = vpack.c.b16 %v1125, %v1119
        %v1282 = vpack.c.b16 %v1126, %v1120
        %v1283 = vpack.c.b16 %v1127, %v1121
        %v1284 = vpack.c.b16 %v1128, %v1122
        %v1285 = vpack.c.b16 %v1135, %v1129
        %v1286 = vpack.c.b16 %v1136, %v1130
        %v1287 = vpack.c.b16 %v1137, %v1131
        %v1288 = vpack.c.b16 %v1138, %v1132
        %v1289 = vpack.c.b16 %v1139, %v1133
        %v1290 = vpack.c.b16 %v1140, %v1134
        %v1291 = vpack.c.b16 %v1147, %v1141
        %v1292 = vpack.c.b16 %v1148, %v1142
        %v1293 = vpack.c.b16 %v1149, %v1143
        %v1294 = vpack.c.b16 %v1150, %v1144
        %v1295 = vpack.c.b16 %v1151, %v1145
        %v1296 = vpack.c.b16 %v1152, %v1146
        %v1297 = vpack.c.b16 %v1159, %v1153
        %v1298 = vpack.c.b16 %v1160, %v1154
        %v1299 = vpack.c.b16 %v1161, %v1155
        %v1300 = vpack.c.b16 %v1162, %v1156
        %v1301 = vpack.c.b16 %v1163, %v1157
        %v1302 = vpack.c.b16 %v1164, %v1158
        %v1303 = vpack.c.b16 %v1171, %v1165
        %v1304 = vpack.c.b16 %v1172, %v1166
        %v1305 = vpack.c.b16 %v1173, %v1167
        %v1306 = vpack.c.b16 %v1174, %v1168
        %v1307 = vpack.c.b16 %v1175, %v1169
        %v1308 = vpack.c.b16 %v1176, %v1170
        %v1309 = vpack.c.b16 %v1183, %v1177
        %v1310 = vpack.c.b16 %v1184, %v1178
        %v1311 = vpack.c.b16 %v1185, %v1179
        %v1312 = vpack.c.b16 %v1186, %v1180
        %v1313 = vpack.c.b16 %v1187, %v1181
        %v1314 = vpack.c.b16 %v1188, %v1182
        %v1315 = vpack.c.b16 %v1195, %v1189
        %v1316 = vpack.c.b16 %v1196, %v1190
        %v1317 = vpack.c.b16 %v1197, %v1191
        %v1318 = vpack.c.b16 %v1198, %v1192
        %v1319 = vpack.c.b16 %v1199, %v1193
        %v1320 = vpack.c.b16 %v1200, %v1194
        %v1321 = vpack.c.b16 %v1207, %v1201
        %v1322 = vpack.c.b16 %v1208, %v1202
        %v1323 = vpack.c.b16 %v1209, %v1203
        %v1324 = vpack.c.b16 %v1210, %v1204
        %v1325 = vpack.c.b16 %v1211, %v1205
        %v1326 = vpack.c.b16 %v1212, %v1206
        %v1327 = vpack.c.b16 %v1219, %v1213
        %v1328 = vpack.c.b16 %v1220, %v1214
        %v1329 = vpack.c.b16 %v1221, %v1215
        %v1330 = vpack.c.b16 %v1222, %v1216
        %v1331 = vpack.c.b16 %v1223, %v1217
        %v1332 = vpack.c.b16 %v1224, %v1218
        %vm1441 = vcmask 261120
        %v1443 = vsel %vm1441, %v893, 0
        %v1446 = vsel %vm1441, %v896, 0
        %1448 = vmatprep.subr.bf16.mxu0 %v1226
        %1449 = vmatpush1.bf16.msra.mxu0 %v1225
        %1450 = vmatprep.subr.bf16.mxu0 %v1232
        %1451 = vmatpush1.bf16.msra.mxu0 %v1231
        %1452 = vmatprep.subr.bf16.mxu0 %v1238
        %1453 = vmatpush1.bf16.msra.mxu0 %v1237
        %1454 = vmatprep.subr.bf16.mxu0 %v1244
        %1455 = vmatpush1.bf16.msra.mxu0 %v1243
        %1456 = vmatprep.subr.bf16.mxu0 %v1250
        %1457 = vmatpush1.bf16.msra.mxu0 %v1249
        %1458 = vmatprep.subr.bf16.mxu0 %v1256
        %1459 = vmatpush1.bf16.msra.mxu0 %v1255
        %1460 = vmatprep.subr.bf16.mxu0 %v1262
        %1461 = vmatpush1.bf16.msra.mxu0 %v1261
        %1462 = vmatprep.subr.bf16.mxu0 %v1268
        %1463 = vmatpush1.bf16.msra.mxu0 %v1267
        %1464 = vmatprep.subr.bf16.mxu0 %v1274
        %1465 = vmatpush1.bf16.msra.mxu0 %v1273
        %1466 = vmatprep.subr.bf16.mxu0 %v1280
        %1467 = vmatpush1.bf16.msra.mxu0 %v1279
        %1468 = vmatprep.subr.bf16.mxu0 %v1286
        %1469 = vmatpush1.bf16.msra.mxu0 %v1285
        %1470 = vmatprep.subr.bf16.mxu0 %v1292
        %1471 = vmatpush1.bf16.msra.mxu0 %v1291
        %1472 = vmatprep.subr.bf16.mxu0 %v1298
        %1473 = vmatpush1.bf16.msra.mxu0 %v1297
        %1474 = vmatprep.subr.bf16.mxu0 %v1304
        %1475 = vmatpush1.bf16.msra.mxu0 %v1303
        %1476 = vmatprep.subr.bf16.mxu0 %v1310
        %1477 = vmatpush1.bf16.msra.mxu0 %v1309
        %1478 = vmatprep.subr.bf16.mxu0 %v1316
        %1479 = vmatpush1.bf16.msra.mxu0 %v1315
        %1480 = vmatprep.mubr.bf16.mxu0 %v892
        %1481 = vmatmul.mubr.bf16.gmra.mrb[0].mxu0 %v891
        %v1482 = vpop.f32.mrb[0].mxu0
        %v1483 = vadd.f32 0.0, %v1482
        %v1484 = vpop.f32.mrb[0].mxu0
        %v1485 = vadd.f32 0.0, %v1484
        %v1486 = vpop.f32.mrb[0].mxu0
        %v1487 = vadd.f32 0.0, %v1486
        %v1488 = vpop.f32.mrb[0].mxu0
        %v1489 = vadd.f32 0.0, %v1488
        %1490 = vmatprep.mubr.bf16.mxu0 %v895
        %1491 = vmatmul.mubr.bf16.gmra.mrb[0].mxu0 %v894
        %v1492 = vpop.f32.mrb[0].mxu0
        %v1493 = vadd.f32 0.0, %v1492
        %v1494 = vpop.f32.mrb[0].mxu0
        %v1495 = vadd.f32 0.0, %v1494
        %v1496 = vpop.f32.mrb[0].mxu0
        %v1497 = vadd.f32 0.0, %v1496
        %v1498 = vpop.f32.mrb[0].mxu0
        %v1499 = vadd.f32 0.0, %v1498
        %1500 = vdwg.mxu0
        %1501 = vmatprep.subr.bf16.mxu0 %v1322
        %1502 = vmatpush1.bf16.msra.mxu0 %v1321
        %1503 = vmatprep.subr.bf16.mxu0 %v1328
        %1504 = vmatpush1.bf16.msra.mxu0 %v1327
        %1505 = vmatprep.subr.bf16.mxu0 0
        %1506 = vmatpush1.bf16.msra.mxu0 0
        %1507 = vmatprep.subr.bf16.mxu0 0
        %1508 = vmatpush1.bf16.msra.mxu0 0
        %1509 = vmatprep.subr.bf16.mxu0 0
        %1510 = vmatpush1.bf16.msra.mxu0 0
        %1511 = vmatprep.subr.bf16.mxu0 0
        %1512 = vmatpush1.bf16.msra.mxu0 0
        %1513 = vmatprep.subr.bf16.mxu0 0
        %1514 = vmatpush1.bf16.msra.mxu0 0
        %1515 = vmatprep.subr.bf16.mxu0 0
        %1516 = vmatpush1.bf16.msra.mxu0 0
        %1517 = vmatprep.subr.bf16.mxu0 0
        %1518 = vmatpush1.bf16.msra.mxu0 0
        %1519 = vmatprep.subr.bf16.mxu0 0
        %1520 = vmatpush1.bf16.msra.mxu0 0
        %1521 = vmatprep.subr.bf16.mxu0 0
        %1522 = vmatpush1.bf16.msra.mxu0 0
        %1523 = vmatprep.subr.bf16.mxu0 0
        %1524 = vmatpush1.bf16.msra.mxu0 0
        %1525 = vmatprep.subr.bf16.mxu0 0
        %1526 = vmatpush1.bf16.msra.mxu0 0
        %1527 = vmatprep.subr.bf16.mxu0 0
        %1528 = vmatpush1.bf16.msra.mxu0 0
        %1529 = vmatprep.subr.bf16.mxu0 0
        %1530 = vmatpush1.bf16.msra.mxu0 0
        %1531 = vmatprep.subr.bf16.mxu0 0
        %1532 = vmatpush1.bf16.msra.mxu0 0
        %1533 = vmatprep.mubr.bf16.mxu0 0
        %1534 = vmatmul.mubr.bf16.gmra.mrb[0].mxu0 %v1443
        %v1535 = vpop.f32.mrb[0].mxu0
        %v1536 = vadd.f32 %v1483, %v1535
        %v1537 = vpop.f32.mrb[0].mxu0
        %v1538 = vadd.f32 %v1485, %v1537
        %v1539 = vpop.f32.mrb[0].mxu0
        %v1540 = vadd.f32 %v1487, %v1539
        %v1541 = vpop.f32.mrb[0].mxu0
        %v1542 = vadd.f32 %v1489, %v1541
        %1543 = vmatprep.mubr.bf16.mxu0 0
        %1544 = vmatmul.mubr.bf16.gmra.mrb[0].mxu0 %v1446
        %v1545 = vpop.f32.mrb[0].mxu0
        %v1546 = vadd.f32 %v1493, %v1545
        %v1547 = vpop.f32.mrb[0].mxu0
        %v1548 = vadd.f32 %v1495, %v1547
        %v1549 = vpop.f32.mrb[0].mxu0
        %v1550 = vadd.f32 %v1497, %v1549
        %v1551 = vpop.f32.mrb[0].mxu0
        %v1552 = vadd.f32 %v1499, %v1551
        %1553 = vdwg.mxu0
        %1554 = vmatprep.subr.bf16.mxu0 %v1228
        %1555 = vmatpush1.bf16.msra.mxu0 %v1227
        %1556 = vmatprep.subr.bf16.mxu0 %v1234
        %1557 = vmatpush1.bf16.msra.mxu0 %v1233
        %1558 = vmatprep.subr.bf16.mxu0 %v1240
        %1559 = vmatpush1.bf16.msra.mxu0 %v1239
        %1560 = vmatprep.subr.bf16.mxu0 %v1246
        %1561 = vmatpush1.bf16.msra.mxu0 %v1245
        %1562 = vmatprep.subr.bf16.mxu0 %v1252
        %1563 = vmatpush1.bf16.msra.mxu0 %v1251
        %1564 = vmatprep.subr.bf16.mxu0 %v1258
        %1565 = vmatpush1.bf16.msra.mxu0 %v1257
        %1566 = vmatprep.subr.bf16.mxu0 %v1264
        %1567 = vmatpush1.bf16.msra.mxu0 %v1263
        %1568 = vmatprep.subr.bf16.mxu0 %v1270
        %1569 = vmatpush1.bf16.msra.mxu0 %v1269
        %1570 = vmatprep.subr.bf16.mxu0 %v1276
        %1571 = vmatpush1.bf16.msra.mxu0 %v1275
        %1572 = vmatprep.subr.bf16.mxu0 %v1282
        %1573 = vmatpush1.bf16.msra.mxu0 %v1281
        %1574 = vmatprep.subr.bf16.mxu0 %v1288
        %1575 = vmatpush1.bf16.msra.mxu0 %v1287
        %1576 = vmatprep.subr.bf16.mxu0 %v1294
        %1577 = vmatpush1.bf16.msra.mxu0 %v1293
        %1578 = vmatprep.subr.bf16.mxu0 %v1300
        %1579 = vmatpush1.bf16.msra.mxu0 %v1299
        %1580 = vmatprep.subr.bf16.mxu0 %v1306
        %1581 = vmatpush1.bf16.msra.mxu0 %v1305
        %1582 = vmatprep.subr.bf16.mxu0 %v1312
        %1583 = vmatpush1.bf16.msra.mxu0 %v1311
        %1584 = vmatprep.subr.bf16.mxu0 %v1318
        %1585 = vmatpush1.bf16.msra.mxu0 %v1317
        %1586 = vmatprep.mubr.bf16.mxu0 %v892
        %1587 = vmatmul.mubr.bf16.gmra.mrb[0].mxu0 %v891
        %v1588 = vpop.f32.mrb[0].mxu0
        %v1589 = vadd.f32 0.0, %v1588
        %v1590 = vpop.f32.mrb[0].mxu0
        %v1591 = vadd.f32 0.0, %v1590
        %v1592 = vpop.f32.mrb[0].mxu0
        %v1593 = vadd.f32 0.0, %v1592
        %v1594 = vpop.f32.mrb[0].mxu0
        %v1595 = vadd.f32 0.0, %v1594
        %1596 = vmatprep.mubr.bf16.mxu0 %v895
        %1597 = vmatmul.mubr.bf16.gmra.mrb[0].mxu0 %v894
        %v1598 = vpop.f32.mrb[0].mxu0
        %v1599 = vadd.f32 0.0, %v1598
        %v1600 = vpop.f32.mrb[0].mxu0
        %v1601 = vadd.f32 0.0, %v1600
        %v1602 = vpop.f32.mrb[0].mxu0
        %v1603 = vadd.f32 0.0, %v1602
        %v1604 = vpop.f32.mrb[0].mxu0
        %v1605 = vadd.f32 0.0, %v1604
        %1606 = vdwg.mxu0
        %1607 = vmatprep.subr.bf16.mxu0 %v1324
        %1608 = vmatpush1.bf16.msra.mxu0 %v1323
        %1609 = vmatprep.subr.bf16.mxu0 %v1330
        %1610 = vmatpush1.bf16.msra.mxu0 %v1329
        %1611 = vmatprep.subr.bf16.mxu0 0
        %1612 = vmatpush1.bf16.msra.mxu0 0
        %1613 = vmatprep.subr.bf16.mxu0 0
        %1614 = vmatpush1.bf16.msra.mxu0 0
        %1615 = vmatprep.subr.bf16.mxu0 0
        %1616 = vmatpush1.bf16.msra.mxu0 0
        %1617 = vmatprep.subr.bf16.mxu0 0
        %1618 = vmatpush1.bf16.msra.mxu0 0
        %1619 = vmatprep.subr.bf16.mxu0 0
        %1620 = vmatpush1.bf16.msra.mxu0 0
        %1621 = vmatprep.subr.bf16.mxu0 0
        %1622 = vmatpush1.bf16.msra.mxu0 0
        %1623 = vmatprep.subr.bf16.mxu0 0
        %1624 = vmatpush1.bf16.msra.mxu0 0
        %1625 = vmatprep.subr.bf16.mxu0 0
        %1626 = vmatpush1.bf16.msra.mxu0 0
        %1627 = vmatprep.subr.bf16.mxu0 0
        %1628 = vmatpush1.bf16.msra.mxu0 0
        %1629 = vmatprep.subr.bf16.mxu0 0
        %1630 = vmatpush1.bf16.msra.mxu0 0
        %1631 = vmatprep.subr.bf16.mxu0 0
        %1632 = vmatpush1.bf16.msra.mxu0 0
        %1633 = vmatprep.subr.bf16.mxu0 0
        %1634 = vmatpush1.bf16.msra.mxu0 0
        %1635 = vmatprep.subr.bf16.mxu0 0
        %1636 = vmatpush1.bf16.msra.mxu0 0
        %1637 = vmatprep.subr.bf16.mxu0 0
        %1638 = vmatpush1.bf16.msra.mxu0 0
        %1639 = vmatprep.mubr.bf16.mxu0 0
        %1640 = vmatmul.mubr.bf16.gmra.mrb[0].mxu0 %v1443
        %v1641 = vpop.f32.mrb[0].mxu0
        %v1642 = vadd.f32 %v1589, %v1641
        %v1643 = vpop.f32.mrb[0].mxu0
        %v1644 = vadd.f32 %v1591, %v1643
        %v1645 = vpop.f32.mrb[0].mxu0
        %v1646 = vadd.f32 %v1593, %v1645
        %v1647 = vpop.f32.mrb[0].mxu0
        %v1648 = vadd.f32 %v1595, %v1647
        %1649 = vmatprep.mubr.bf16.mxu0 0
        %1650 = vmatmul.mubr.bf16.gmra.mrb[0].mxu0 %v1446
        %v1651 = vpop.f32.mrb[0].mxu0
        %v1652 = vadd.f32 %v1599, %v1651
        %v1653 = vpop.f32.mrb[0].mxu0
        %v1654 = vadd.f32 %v1601, %v1653
        %v1655 = vpop.f32.mrb[0].mxu0
        %v1656 = vadd.f32 %v1603, %v1655
        %v1657 = vpop.f32.mrb[0].mxu0
        %v1658 = vadd.f32 %v1605, %v1657
        %1659 = vdwg.mxu0
        %1660 = vmatprep.subr.bf16.mxu0 %v1230
        %1661 = vmatpush1.bf16.msra.mxu0 %v1229
        %1662 = vmatprep.subr.bf16.mxu0 %v1236
        %1663 = vmatpush1.bf16.msra.mxu0 %v1235
        %1664 = vmatprep.subr.bf16.mxu0 %v1242
        %1665 = vmatpush1.bf16.msra.mxu0 %v1241
        %1666 = vmatprep.subr.bf16.mxu0 %v1248
        %1667 = vmatpush1.bf16.msra.mxu0 %v1247
        %1668 = vmatprep.subr.bf16.mxu0 %v1254
        %1669 = vmatpush1.bf16.msra.mxu0 %v1253
        %1670 = vmatprep.subr.bf16.mxu0 %v1260
        %1671 = vmatpush1.bf16.msra.mxu0 %v1259
        %1672 = vmatprep.subr.bf16.mxu0 %v1266
        %1673 = vmatpush1.bf16.msra.mxu0 %v1265
        %1674 = vmatprep.subr.bf16.mxu0 %v1272
        %1675 = vmatpush1.bf16.msra.mxu0 %v1271
        %1676 = vmatprep.subr.bf16.mxu0 %v1278
        %1677 = vmatpush1.bf16.msra.mxu0 %v1277
        %1678 = vmatprep.subr.bf16.mxu0 %v1284
        %1679 = vmatpush1.bf16.msra.mxu0 %v1283
        %1680 = vmatprep.subr.bf16.mxu0 %v1290
        %1681 = vmatpush1.bf16.msra.mxu0 %v1289
        %1682 = vmatprep.subr.bf16.mxu0 %v1296
        %1683 = vmatpush1.bf16.msra.mxu0 %v1295
        %1684 = vmatprep.subr.bf16.mxu0 %v1302
        %1685 = vmatpush1.bf16.msra.mxu0 %v1301
        %1686 = vmatprep.subr.bf16.mxu0 %v1308
        %1687 = vmatpush1.bf16.msra.mxu0 %v1307
        %1688 = vmatprep.subr.bf16.mxu0 %v1314
        %1689 = vmatpush1.bf16.msra.mxu0 %v1313
        %1690 = vmatprep.subr.bf16.mxu0 %v1320
        %1691 = vmatpush1.bf16.msra.mxu0 %v1319
        %1692 = vmatprep.mubr.bf16.mxu0 %v892
        %1693 = vmatmul.mubr.bf16.gmra.mrb[0].mxu0 %v891
        %v1694 = vpop.f32.mrb[0].mxu0
        %v1695 = vadd.f32 0.0, %v1694
        %v1696 = vpop.f32.mrb[0].mxu0
        %v1697 = vadd.f32 0.0, %v1696
        %v1698 = vpop.f32.mrb[0].mxu0
        %v1699 = vadd.f32 0.0, %v1698
        %v1700 = vpop.f32.mrb[0].mxu0
        %v1701 = vadd.f32 0.0, %v1700
        %1702 = vmatprep.mubr.bf16.mxu0 %v895
        %1703 = vmatmul.mubr.bf16.gmra.mrb[0].mxu0 %v894
        %v1704 = vpop.f32.mrb[0].mxu0
        %v1705 = vadd.f32 0.0, %v1704
        %v1706 = vpop.f32.mrb[0].mxu0
        %v1707 = vadd.f32 0.0, %v1706
        %v1708 = vpop.f32.mrb[0].mxu0
        %v1709 = vadd.f32 0.0, %v1708
        %v1710 = vpop.f32.mrb[0].mxu0
        %v1711 = vadd.f32 0.0, %v1710
        %1712 = vdwg.mxu0
        %1713 = vmatprep.subr.bf16.mxu0 %v1326
        %1714 = vmatpush1.bf16.msra.mxu0 %v1325
        %1715 = vmatprep.subr.bf16.mxu0 %v1332
        %1716 = vmatpush1.bf16.msra.mxu0 %v1331
        %1717 = vmatprep.subr.bf16.mxu0 0
        %1718 = vmatpush1.bf16.msra.mxu0 0
        %1719 = vmatprep.subr.bf16.mxu0 0
        %1720 = vmatpush1.bf16.msra.mxu0 0
        %1721 = vmatprep.subr.bf16.mxu0 0
        %1722 = vmatpush1.bf16.msra.mxu0 0
        %1723 = vmatprep.subr.bf16.mxu0 0
        %1724 = vmatpush1.bf16.msra.mxu0 0
        %1725 = vmatprep.subr.bf16.mxu0 0
        %1726 = vmatpush1.bf16.msra.mxu0 0
        %1727 = vmatprep.subr.bf16.mxu0 0
        %1728 = vmatpush1.bf16.msra.mxu0 0
        %1729 = vmatprep.subr.bf16.mxu0 0
        %1730 = vmatpush1.bf16.msra.mxu0 0
        %1731 = vmatprep.subr.bf16.mxu0 0
        %1732 = vmatpush1.bf16.msra.mxu0 0
        %1733 = vmatprep.subr.bf16.mxu0 0
        %1734 = vmatpush1.bf16.msra.mxu0 0
        %1735 = vmatprep.subr.bf16.mxu0 0
        %1736 = vmatpush1.bf16.msra.mxu0 0
        %1737 = vmatprep.subr.bf16.mxu0 0
        %1738 = vmatpush1.bf16.msra.mxu0 0
        %1739 = vmatprep.subr.bf16.mxu0 0
        %1740 = vmatpush1.bf16.msra.mxu0 0
        %1741 = vmatprep.subr.bf16.mxu0 0
        %1742 = vmatpush1.bf16.msra.mxu0 0
        %1743 = vmatprep.subr.bf16.mxu0 0
        %1744 = vmatpush1.bf16.msra.mxu0 0
        %1745 = vmatprep.mubr.bf16.mxu0 0
        %1746 = vmatmul.mubr.bf16.gmra.mrb[0].mxu0 %v1443
        %v1747 = vpop.f32.mrb[0].mxu0
        %v1748 = vadd.f32 %v1695, %v1747
        %v1749 = vpop.f32.mrb[0].mxu0
        %v1750 = vadd.f32 %v1697, %v1749
        %v1751 = vpop.f32.mrb[0].mxu0
        %v1752 = vadd.f32 %v1699, %v1751
        %v1753 = vpop.f32.mrb[0].mxu0
        %v1754 = vadd.f32 %v1701, %v1753
        %1755 = vmatprep.mubr.bf16.mxu0 0
        %1756 = vmatmul.mubr.bf16.gmra.mrb[0].mxu0 %v1446
        %v1757 = vpop.f32.mrb[0].mxu0
        %v1758 = vadd.f32 %v1705, %v1757
        %v1759 = vpop.f32.mrb[0].mxu0
        %v1760 = vadd.f32 %v1707, %v1759
        %v1761 = vpop.f32.mrb[0].mxu0
        %v1762 = vadd.f32 %v1709, %v1761
        %v1763 = vpop.f32.mrb[0].mxu0
        %v1764 = vadd.f32 %v1711, %v1763
        %1765 = vdwg.mxu0
        %v1774 = vunpack.c.l.b16 %v531
        %v1775 = vunpack.c.h.b16 %v531
        %v1776 = vunpack.c.l.b16 %v532
        %v1777 = vunpack.c.l.b16 %v533
        %v1778 = vunpack.c.h.b16 %v533
        %v1779 = vunpack.c.l.b16 %v534
        %v1780 = vunpack.c.l.b16 %v535
        %v1781 = vunpack.c.h.b16 %v535
        %v1782 = vunpack.c.l.b16 %v536
        %v1783 = vunpack.c.l.b16 %v537
        %v1784 = vunpack.c.h.b16 %v537
        %v1785 = vunpack.c.l.b16 %v538
        %v1786 = vpack.c.b16 %v1777, %v1774
        %v1787 = vpack.c.b16 %v1778, %v1775
        %v1788 = vpack.c.b16 %v1779, %v1776
        %v1789 = vpack.c.b16 %v1783, %v1780
        %v1790 = vpack.c.b16 %v1784, %v1781
        %v1791 = vpack.c.b16 %v1785, %v1782
        %v1904 = vunpack.c.l.b16 %v539
        %v1905 = vunpack.c.h.b16 %v539
        %v1906 = vunpack.c.l.b16 %v540
        %v1907 = vunpack.c.h.b16 %v540
        %v1908 = vunpack.c.l.b16 %v541
        %v1909 = vunpack.c.h.b16 %v541
        %v1910 = vunpack.c.l.b16 %v542
        %v1911 = vunpack.c.h.b16 %v542
        %v1912 = vunpack.c.l.b16 %v543
        %v1913 = vunpack.c.h.b16 %v543
        %v1914 = vunpack.c.l.b16 %v544
        %v1915 = vunpack.c.h.b16 %v544
        %v1916 = vunpack.c.l.b16 %v545
        %v1917 = vunpack.c.h.b16 %v545
        %v1918 = vunpack.c.l.b16 %v546
        %v1919 = vunpack.c.h.b16 %v546
        %v1920 = vunpack.c.l.b16 %v547
        %v1921 = vunpack.c.h.b16 %v547
        %v1922 = vunpack.c.l.b16 %v548
        %v1923 = vunpack.c.h.b16 %v548
        %v1924 = vunpack.c.l.b16 %v549
        %v1925 = vunpack.c.h.b16 %v549
        %v1926 = vunpack.c.l.b16 %v550
        %v1927 = vunpack.c.h.b16 %v550
        %v1928 = vunpack.c.l.b16 %v551
        %v1929 = vunpack.c.h.b16 %v551
        %v1930 = vunpack.c.l.b16 %v552
        %v1931 = vunpack.c.h.b16 %v552
        %v1932 = vunpack.c.l.b16 %v553
        %v1933 = vunpack.c.h.b16 %v553
        %v1934 = vunpack.c.l.b16 %v554
        %v1935 = vunpack.c.h.b16 %v554
        %v1936 = vunpack.c.l.b16 %v555
        %v1937 = vunpack.c.h.b16 %v555
        %v1938 = vunpack.c.l.b16 %v556
        %v1939 = vunpack.c.h.b16 %v556
        %v1940 = vunpack.c.l.b16 %v557
        %v1941 = vunpack.c.h.b16 %v557
        %v1942 = vunpack.c.l.b16 %v558
        %v1943 = vunpack.c.h.b16 %v558
        %v1944 = vunpack.c.l.b16 %v559
        %v1945 = vunpack.c.h.b16 %v559
        %v1946 = vunpack.c.l.b16 %v560
        %v1947 = vunpack.c.h.b16 %v560
        %v1948 = vunpack.c.l.b16 %v561
        %v1949 = vunpack.c.h.b16 %v561
        %v1950 = vunpack.c.l.b16 %v562
        %v1951 = vunpack.c.h.b16 %v562
        %v1952 = vunpack.c.l.b16 %v563
        %v1953 = vunpack.c.h.b16 %v563
        %v1954 = vunpack.c.l.b16 %v564
        %v1955 = vunpack.c.h.b16 %v564
        %v1956 = vunpack.c.l.b16 %v565
        %v1957 = vunpack.c.h.b16 %v565
        %v1958 = vunpack.c.l.b16 %v566
        %v1959 = vunpack.c.h.b16 %v566
        %v1960 = vunpack.c.l.b16 %v567
        %v1961 = vunpack.c.h.b16 %v567
        %v1962 = vunpack.c.l.b16 %v568
        %v1963 = vunpack.c.h.b16 %v568
        %v1964 = vunpack.c.l.b16 %v569
        %v1965 = vunpack.c.h.b16 %v569
        %v1966 = vunpack.c.l.b16 %v570
        %v1967 = vunpack.c.h.b16 %v570
        %v1968 = vunpack.c.l.b16 %v571
        %v1969 = vunpack.c.h.b16 %v571
        %v1970 = vunpack.c.l.b16 %v572
        %v1971 = vunpack.c.h.b16 %v572
        %v1972 = vunpack.c.l.b16 %v573
        %v1973 = vunpack.c.h.b16 %v573
        %v1974 = vunpack.c.l.b16 %v574
        %v1975 = vunpack.c.h.b16 %v574
        %v1976 = vunpack.c.l.b16 %v575
        %v1977 = vunpack.c.h.b16 %v575
        %v1978 = vunpack.c.l.b16 %v576
        %v1979 = vunpack.c.h.b16 %v576
        %v1980 = vunpack.c.l.b16 %v577
        %v1981 = vunpack.c.h.b16 %v577
        %v1982 = vunpack.c.l.b16 %v578
        %v1983 = vunpack.c.h.b16 %v578
        %v1984 = vunpack.c.l.b16 %v579
        %v1985 = vunpack.c.h.b16 %v579
        %v1986 = vunpack.c.l.b16 %v580
        %v1987 = vunpack.c.h.b16 %v580
        %v1988 = vunpack.c.l.b16 %v581
        %v1989 = vunpack.c.h.b16 %v581
        %v1990 = vunpack.c.l.b16 %v582
        %v1991 = vunpack.c.h.b16 %v582
        %v1992 = vunpack.c.l.b16 %v583
        %v1993 = vunpack.c.h.b16 %v583
        %v1994 = vunpack.c.l.b16 %v584
        %v1995 = vunpack.c.h.b16 %v584
        %v1996 = vunpack.c.l.b16 %v585
        %v1997 = vunpack.c.h.b16 %v585
        %v1998 = vunpack.c.l.b16 %v586
        %v1999 = vunpack.c.h.b16 %v586
        %v2000 = vunpack.c.l.b16 %v587
        %v2001 = vunpack.c.h.b16 %v587
        %v2002 = vunpack.c.l.b16 %v588
        %v2003 = vunpack.c.h.b16 %v588
        %v2004 = vunpack.c.l.b16 %v589
        %v2005 = vunpack.c.h.b16 %v589
        %v2006 = vunpack.c.l.b16 %v590
        %v2007 = vunpack.c.h.b16 %v590
        %v2008 = vunpack.c.l.b16 %v591
        %v2009 = vunpack.c.h.b16 %v591
        %v2010 = vunpack.c.l.b16 %v592
        %v2011 = vunpack.c.h.b16 %v592
        %v2012 = vunpack.c.l.b16 %v593
        %v2013 = vunpack.c.h.b16 %v593
        %v2014 = vunpack.c.l.b16 %v594
        %v2015 = vunpack.c.h.b16 %v594
        %v2016 = vunpack.c.l.b16 %v595
        %v2017 = vunpack.c.h.b16 %v595
        %v2018 = vunpack.c.l.b16 %v596
        %v2019 = vunpack.c.h.b16 %v596
        %v2020 = vunpack.c.l.b16 %v597
        %v2021 = vunpack.c.h.b16 %v597
        %v2022 = vunpack.c.l.b16 %v598
        %v2023 = vunpack.c.h.b16 %v598
        %v2024 = vunpack.c.l.b16 %v599
        %v2025 = vunpack.c.h.b16 %v599
        %v2026 = vunpack.c.l.b16 %v600
        %v2027 = vunpack.c.h.b16 %v600
        %v2028 = vunpack.c.l.b16 %v601
        %v2029 = vunpack.c.h.b16 %v601
        %v2030 = vunpack.c.l.b16 %v602
        %v2031 = vunpack.c.h.b16 %v602
        %v2032 = vunpack.c.l.b16 %v603
        %v2033 = vunpack.c.h.b16 %v603
        %v2034 = vunpack.c.l.b16 %v604
        %v2035 = vunpack.c.h.b16 %v604
        %v2036 = vunpack.c.l.b16 %v605
        %v2037 = vunpack.c.h.b16 %v605
        %v2038 = vunpack.c.l.b16 %v606
        %v2039 = vunpack.c.h.b16 %v606
        %v2040 = vunpack.c.l.b16 %v607
        %v2041 = vunpack.c.h.b16 %v607
        %v2042 = vunpack.c.l.b16 %v608
        %v2043 = vunpack.c.h.b16 %v608
        %v2044 = vunpack.c.l.b16 %v609
        %v2045 = vunpack.c.h.b16 %v609
        %v2046 = vunpack.c.l.b16 %v610
        %v2047 = vunpack.c.h.b16 %v610
        %v2048 = vunpack.c.l.b16 %v611
        %v2049 = vunpack.c.h.b16 %v611
        %v2050 = vunpack.c.l.b16 %v612
        %v2051 = vunpack.c.h.b16 %v612
        %v2052 = vunpack.c.l.b16 %v613
        %v2053 = vunpack.c.h.b16 %v613
        %v2054 = vunpack.c.l.b16 %v614
        %v2055 = vunpack.c.h.b16 %v614
        %v2056 = vunpack.c.l.b16 %v615
        %v2057 = vunpack.c.h.b16 %v615
        %v2058 = vunpack.c.l.b16 %v616
        %v2059 = vunpack.c.h.b16 %v616
        %v2060 = vunpack.c.l.b16 %v617
        %v2061 = vunpack.c.h.b16 %v617
        %v2062 = vunpack.c.l.b16 %v618
        %v2063 = vunpack.c.h.b16 %v618
        %v2064 = vunpack.c.l.b16 %v619
        %v2065 = vunpack.c.h.b16 %v619
        %v2066 = vunpack.c.l.b16 %v620
        %v2067 = vunpack.c.h.b16 %v620
        %v2068 = vunpack.c.l.b16 %v621
        %v2069 = vunpack.c.h.b16 %v621
        %v2070 = vunpack.c.l.b16 %v622
        %v2071 = vunpack.c.h.b16 %v622
        %v2072 = vunpack.c.l.b16 %v623
        %v2073 = vunpack.c.h.b16 %v623
        %v2074 = vunpack.c.l.b16 %v624
        %v2075 = vunpack.c.h.b16 %v624
        %v2076 = vunpack.c.l.b16 %v625
        %v2077 = vunpack.c.h.b16 %v625
        %v2078 = vunpack.c.l.b16 %v626
        %v2079 = vunpack.c.h.b16 %v626
        %v2080 = vunpack.c.l.b16 %v627
        %v2081 = vunpack.c.h.b16 %v627
        %v2082 = vunpack.c.l.b16 %v628
        %v2083 = vunpack.c.h.b16 %v628
        %v2084 = vunpack.c.l.b16 %v629
        %v2085 = vunpack.c.h.b16 %v629
        %v2086 = vunpack.c.l.b16 %v630
        %v2087 = vunpack.c.h.b16 %v630
        %v2088 = vunpack.c.l.b16 %v631
        %v2089 = vunpack.c.h.b16 %v631
        %v2090 = vunpack.c.l.b16 %v632
        %v2091 = vunpack.c.h.b16 %v632
        %v2092 = vunpack.c.l.b16 %v633
        %v2093 = vunpack.c.h.b16 %v633
        %v2094 = vunpack.c.l.b16 %v634
        %v2095 = vunpack.c.h.b16 %v634
        %v2096 = vunpack.c.l.b16 %v635
        %v2097 = vunpack.c.h.b16 %v635
        %v2098 = vunpack.c.l.b16 %v636
        %v2099 = vunpack.c.h.b16 %v636
        %v2100 = vunpack.c.l.b16 %v637
        %v2101 = vunpack.c.h.b16 %v637
        %v2102 = vunpack.c.l.b16 %v638
        %v2103 = vunpack.c.h.b16 %v638
        %v2104 = vunpack.c.l.b16 %v639
        %v2105 = vunpack.c.h.b16 %v639
        %v2106 = vunpack.c.l.b16 %v640
        %v2107 = vunpack.c.h.b16 %v640
        %v2108 = vunpack.c.l.b16 %v641
        %v2109 = vunpack.c.h.b16 %v641
        %v2110 = vunpack.c.l.b16 %v642
        %v2111 = vunpack.c.h.b16 %v642
        %v2112 = vunpack.c.l.b16 %v643
        %v2113 = vunpack.c.h.b16 %v643
        %v2114 = vunpack.c.l.b16 %v644
        %v2115 = vunpack.c.h.b16 %v644
        %v2116 = vunpack.c.l.b16 %v645
        %v2117 = vunpack.c.h.b16 %v645
        %v2118 = vunpack.c.l.b16 %v646
        %v2119 = vunpack.c.h.b16 %v646
        %v2120 = vpack.c.b16 %v1910, %v1904
        %v2121 = vpack.c.b16 %v1911, %v1905
        %v2122 = vpack.c.b16 %v1912, %v1906
        %v2123 = vpack.c.b16 %v1913, %v1907
        %v2124 = vpack.c.b16 %v1914, %v1908
        %v2125 = vpack.c.b16 %v1915, %v1909
        %v2126 = vpack.c.b16 %v1922, %v1916
        %v2127 = vpack.c.b16 %v1923, %v1917
        %v2128 = vpack.c.b16 %v1924, %v1918
        %v2129 = vpack.c.b16 %v1925, %v1919
        %v2130 = vpack.c.b16 %v1926, %v1920
        %v2131 = vpack.c.b16 %v1927, %v1921
        %v2132 = vpack.c.b16 %v1934, %v1928
        %v2133 = vpack.c.b16 %v1935, %v1929
        %v2134 = vpack.c.b16 %v1936, %v1930
        %v2135 = vpack.c.b16 %v1937, %v1931
        %v2136 = vpack.c.b16 %v1938, %v1932
        %v2137 = vpack.c.b16 %v1939, %v1933
        %v2138 = vpack.c.b16 %v1946, %v1940
        %v2139 = vpack.c.b16 %v1947, %v1941
        %v2140 = vpack.c.b16 %v1948, %v1942
        %v2141 = vpack.c.b16 %v1949, %v1943
        %v2142 = vpack.c.b16 %v1950, %v1944
        %v2143 = vpack.c.b16 %v1951, %v1945
        %v2144 = vpack.c.b16 %v1958, %v1952
        %v2145 = vpack.c.b16 %v1959, %v1953
        %v2146 = vpack.c.b16 %v1960, %v1954
        %v2147 = vpack.c.b16 %v1961, %v1955
        %v2148 = vpack.c.b16 %v1962, %v1956
        %v2149 = vpack.c.b16 %v1963, %v1957
        %v2150 = vpack.c.b16 %v1970, %v1964
        %v2151 = vpack.c.b16 %v1971, %v1965
        %v2152 = vpack.c.b16 %v1972, %v1966
        %v2153 = vpack.c.b16 %v1973, %v1967
        %v2154 = vpack.c.b16 %v1974, %v1968
        %v2155 = vpack.c.b16 %v1975, %v1969
        %v2156 = vpack.c.b16 %v1982, %v1976
        %v2157 = vpack.c.b16 %v1983, %v1977
        %v2158 = vpack.c.b16 %v1984, %v1978
        %v2159 = vpack.c.b16 %v1985, %v1979
        %v2160 = vpack.c.b16 %v1986, %v1980
        %v2161 = vpack.c.b16 %v1987, %v1981
        %v2162 = vpack.c.b16 %v1994, %v1988
        %v2163 = vpack.c.b16 %v1995, %v1989
        %v2164 = vpack.c.b16 %v1996, %v1990
        %v2165 = vpack.c.b16 %v1997, %v1991
        %v2166 = vpack.c.b16 %v1998, %v1992
        %v2167 = vpack.c.b16 %v1999, %v1993
        %v2168 = vpack.c.b16 %v2006, %v2000
        %v2169 = vpack.c.b16 %v2007, %v2001
        %v2170 = vpack.c.b16 %v2008, %v2002
        %v2171 = vpack.c.b16 %v2009, %v2003
        %v2172 = vpack.c.b16 %v2010, %v2004
        %v2173 = vpack.c.b16 %v2011, %v2005
        %v2174 = vpack.c.b16 %v2018, %v2012
        %v2175 = vpack.c.b16 %v2019, %v2013
        %v2176 = vpack.c.b16 %v2020, %v2014
        %v2177 = vpack.c.b16 %v2021, %v2015
        %v2178 = vpack.c.b16 %v2022, %v2016
        %v2179 = vpack.c.b16 %v2023, %v2017
        %v2180 = vpack.c.b16 %v2030, %v2024
        %v2181 = vpack.c.b16 %v2031, %v2025
        %v2182 = vpack.c.b16 %v2032, %v2026
        %v2183 = vpack.c.b16 %v2033, %v2027
        %v2184 = vpack.c.b16 %v2034, %v2028
        %v2185 = vpack.c.b16 %v2035, %v2029
        %v2186 = vpack.c.b16 %v2042, %v2036
        %v2187 = vpack.c.b16 %v2043, %v2037
        %v2188 = vpack.c.b16 %v2044, %v2038
        %v2189 = vpack.c.b16 %v2045, %v2039
        %v2190 = vpack.c.b16 %v2046, %v2040
        %v2191 = vpack.c.b16 %v2047, %v2041
        %v2192 = vpack.c.b16 %v2054, %v2048
        %v2193 = vpack.c.b16 %v2055, %v2049
        %v2194 = vpack.c.b16 %v2056, %v2050
        %v2195 = vpack.c.b16 %v2057, %v2051
        %v2196 = vpack.c.b16 %v2058, %v2052
        %v2197 = vpack.c.b16 %v2059, %v2053
        %v2198 = vpack.c.b16 %v2066, %v2060
        %v2199 = vpack.c.b16 %v2067, %v2061
        %v2200 = vpack.c.b16 %v2068, %v2062
        %v2201 = vpack.c.b16 %v2069, %v2063
        %v2202 = vpack.c.b16 %v2070, %v2064
        %v2203 = vpack.c.b16 %v2071, %v2065
        %v2204 = vpack.c.b16 %v2078, %v2072
        %v2205 = vpack.c.b16 %v2079, %v2073
        %v2206 = vpack.c.b16 %v2080, %v2074
        %v2207 = vpack.c.b16 %v2081, %v2075
        %v2208 = vpack.c.b16 %v2082, %v2076
        %v2209 = vpack.c.b16 %v2083, %v2077
        %v2210 = vpack.c.b16 %v2090, %v2084
        %v2211 = vpack.c.b16 %v2091, %v2085
        %v2212 = vpack.c.b16 %v2092, %v2086
        %v2213 = vpack.c.b16 %v2093, %v2087
        %v2214 = vpack.c.b16 %v2094, %v2088
        %v2215 = vpack.c.b16 %v2095, %v2089
        %v2216 = vpack.c.b16 %v2102, %v2096
        %v2217 = vpack.c.b16 %v2103, %v2097
        %v2218 = vpack.c.b16 %v2104, %v2098
        %v2219 = vpack.c.b16 %v2105, %v2099
        %v2220 = vpack.c.b16 %v2106, %v2100
        %v2221 = vpack.c.b16 %v2107, %v2101
        %v2222 = vpack.c.b16 %v2114, %v2108
        %v2223 = vpack.c.b16 %v2115, %v2109
        %v2224 = vpack.c.b16 %v2116, %v2110
        %v2225 = vpack.c.b16 %v2117, %v2111
        %v2226 = vpack.c.b16 %v2118, %v2112
        %v2227 = vpack.c.b16 %v2119, %v2113
        %v2337 = vsel %vm1441, %v1788, 0
        %v2340 = vsel %vm1441, %v1791, 0
        %2342 = vmatprep.subr.bf16.mxu0 %v2121
        %2343 = vmatpush1.bf16.msra.mxu0 %v2120
        %2344 = vmatprep.subr.bf16.mxu0 %v2127
        %2345 = vmatpush1.bf16.msra.mxu0 %v2126
        %2346 = vmatprep.subr.bf16.mxu0 %v2133
        %2347 = vmatpush1.bf16.msra.mxu0 %v2132
        %2348 = vmatprep.subr.bf16.mxu0 %v2139
        %2349 = vmatpush1.bf16.msra.mxu0 %v2138
        %2350 = vmatprep.subr.bf16.mxu0 %v2145
        %2351 = vmatpush1.bf16.msra.mxu0 %v2144
        %2352 = vmatprep.subr.bf16.mxu0 %v2151
        %2353 = vmatpush1.bf16.msra.mxu0 %v2150
        %2354 = vmatprep.subr.bf16.mxu0 %v2157
        %2355 = vmatpush1.bf16.msra.mxu0 %v2156
        %2356 = vmatprep.subr.bf16.mxu0 %v2163
        %2357 = vmatpush1.bf16.msra.mxu0 %v2162
        %2358 = vmatprep.subr.bf16.mxu0 %v2169
        %2359 = vmatpush1.bf16.msra.mxu0 %v2168
        %2360 = vmatprep.subr.bf16.mxu0 %v2175
        %2361 = vmatpush1.bf16.msra.mxu0 %v2174
        %2362 = vmatprep.subr.bf16.mxu0 %v2181
        %2363 = vmatpush1.bf16.msra.mxu0 %v2180
        %2364 = vmatprep.subr.bf16.mxu0 %v2187
        %2365 = vmatpush1.bf16.msra.mxu0 %v2186
        %2366 = vmatprep.subr.bf16.mxu0 %v2193
        %2367 = vmatpush1.bf16.msra.mxu0 %v2192
        %2368 = vmatprep.subr.bf16.mxu0 %v2199
        %2369 = vmatpush1.bf16.msra.mxu0 %v2198
        %2370 = vmatprep.subr.bf16.mxu0 %v2205
        %2371 = vmatpush1.bf16.msra.mxu0 %v2204
        %2372 = vmatprep.subr.bf16.mxu0 %v2211
        %2373 = vmatpush1.bf16.msra.mxu0 %v2210
        %2374 = vmatprep.mubr.bf16.mxu0 %v1787
        %2375 = vmatmul.mubr.bf16.gmra.mrb[0].mxu0 %v1786
        %v2376 = vpop.f32.mrb[0].mxu0
        %v2377 = vadd.f32 %v1536, %v2376
        %v2378 = vpop.f32.mrb[0].mxu0
        %v2379 = vadd.f32 %v1538, %v2378
        %v2380 = vpop.f32.mrb[0].mxu0
        %v2381 = vadd.f32 %v1540, %v2380
        %v2382 = vpop.f32.mrb[0].mxu0
        %v2383 = vadd.f32 %v1542, %v2382
        %2384 = vmatprep.mubr.bf16.mxu0 %v1790
        %2385 = vmatmul.mubr.bf16.gmra.mrb[0].mxu0 %v1789
        %v2386 = vpop.f32.mrb[0].mxu0
        %v2387 = vadd.f32 %v1546, %v2386
        %v2388 = vpop.f32.mrb[0].mxu0
        %v2389 = vadd.f32 %v1548, %v2388
        %v2390 = vpop.f32.mrb[0].mxu0
        %v2391 = vadd.f32 %v1550, %v2390
        %v2392 = vpop.f32.mrb[0].mxu0
        %v2393 = vadd.f32 %v1552, %v2392
        %2394 = vdwg.mxu0
        %2395 = vmatprep.subr.bf16.mxu0 %v2217
        %2396 = vmatpush1.bf16.msra.mxu0 %v2216
        %2397 = vmatprep.subr.bf16.mxu0 %v2223
        %2398 = vmatpush1.bf16.msra.mxu0 %v2222
        %2399 = vmatprep.subr.bf16.mxu0 0
        %2400 = vmatpush1.bf16.msra.mxu0 0
        %2401 = vmatprep.subr.bf16.mxu0 0
        %2402 = vmatpush1.bf16.msra.mxu0 0
        %2403 = vmatprep.subr.bf16.mxu0 0
        %2404 = vmatpush1.bf16.msra.mxu0 0
        %2405 = vmatprep.subr.bf16.mxu0 0
        %2406 = vmatpush1.bf16.msra.mxu0 0
        %2407 = vmatprep.subr.bf16.mxu0 0
        %2408 = vmatpush1.bf16.msra.mxu0 0
        %2409 = vmatprep.subr.bf16.mxu0 0
        %2410 = vmatpush1.bf16.msra.mxu0 0
        %2411 = vmatprep.subr.bf16.mxu0 0
        %2412 = vmatpush1.bf16.msra.mxu0 0
        %2413 = vmatprep.subr.bf16.mxu0 0
        %2414 = vmatpush1.bf16.msra.mxu0 0
        %2415 = vmatprep.subr.bf16.mxu0 0
        %2416 = vmatpush1.bf16.msra.mxu0 0
        %2417 = vmatprep.subr.bf16.mxu0 0
        %2418 = vmatpush1.bf16.msra.mxu0 0
        %2419 = vmatprep.subr.bf16.mxu0 0
        %2420 = vmatpush1.bf16.msra.mxu0 0
        %2421 = vmatprep.subr.bf16.mxu0 0
        %2422 = vmatpush1.bf16.msra.mxu0 0
        %2423 = vmatprep.subr.bf16.mxu0 0
        %2424 = vmatpush1.bf16.msra.mxu0 0
        %2425 = vmatprep.subr.bf16.mxu0 0
        %2426 = vmatpush1.bf16.msra.mxu0 0
        %2427 = vmatprep.mubr.bf16.mxu0 0
        %2428 = vmatmul.mubr.bf16.gmra.mrb[0].mxu0 %v2337
        %v2429 = vpop.f32.mrb[0].mxu0
        %v2430 = vadd.f32 %v2377, %v2429
        %v2431 = vpop.f32.mrb[0].mxu0
        %v2432 = vadd.f32 %v2379, %v2431
        %v2433 = vpop.f32.mrb[0].mxu0
        %v2434 = vadd.f32 %v2381, %v2433
        %v2435 = vpop.f32.mrb[0].mxu0
        %v2436 = vadd.f32 %v2383, %v2435
        %2437 = vmatprep.mubr.bf16.mxu0 0
        %2438 = vmatmul.mubr.bf16.gmra.mrb[0].mxu0 %v2340
        %v2439 = vpop.f32.mrb[0].mxu0
        %v2440 = vadd.f32 %v2387, %v2439
        %v2441 = vpop.f32.mrb[0].mxu0
        %v2442 = vadd.f32 %v2389, %v2441
        %v2443 = vpop.f32.mrb[0].mxu0
        %v2444 = vadd.f32 %v2391, %v2443
        %v2445 = vpop.f32.mrb[0].mxu0
        %v2446 = vadd.f32 %v2393, %v2445
        %2447 = vdwg.mxu0
        %2448 = vmatprep.subr.bf16.mxu0 %v2123
        %2449 = vmatpush1.bf16.msra.mxu0 %v2122
        %2450 = vmatprep.subr.bf16.mxu0 %v2129
        %2451 = vmatpush1.bf16.msra.mxu0 %v2128
        %2452 = vmatprep.subr.bf16.mxu0 %v2135
        %2453 = vmatpush1.bf16.msra.mxu0 %v2134
        %2454 = vmatprep.subr.bf16.mxu0 %v2141
        %2455 = vmatpush1.bf16.msra.mxu0 %v2140
        %2456 = vmatprep.subr.bf16.mxu0 %v2147
        %2457 = vmatpush1.bf16.msra.mxu0 %v2146
        %2458 = vmatprep.subr.bf16.mxu0 %v2153
        %2459 = vmatpush1.bf16.msra.mxu0 %v2152
        %2460 = vmatprep.subr.bf16.mxu0 %v2159
        %2461 = vmatpush1.bf16.msra.mxu0 %v2158
        %2462 = vmatprep.subr.bf16.mxu0 %v2165
        %2463 = vmatpush1.bf16.msra.mxu0 %v2164
        %2464 = vmatprep.subr.bf16.mxu0 %v2171
        %2465 = vmatpush1.bf16.msra.mxu0 %v2170
        %2466 = vmatprep.subr.bf16.mxu0 %v2177
        %2467 = vmatpush1.bf16.msra.mxu0 %v2176
        %2468 = vmatprep.subr.bf16.mxu0 %v2183
        %2469 = vmatpush1.bf16.msra.mxu0 %v2182
        %2470 = vmatprep.subr.bf16.mxu0 %v2189
        %2471 = vmatpush1.bf16.msra.mxu0 %v2188
        %2472 = vmatprep.subr.bf16.mxu0 %v2195
        %2473 = vmatpush1.bf16.msra.mxu0 %v2194
        %2474 = vmatprep.subr.bf16.mxu0 %v2201
        %2475 = vmatpush1.bf16.msra.mxu0 %v2200
        %2476 = vmatprep.subr.bf16.mxu0 %v2207
        %2477 = vmatpush1.bf16.msra.mxu0 %v2206
        %2478 = vmatprep.subr.bf16.mxu0 %v2213
        %2479 = vmatpush1.bf16.msra.mxu0 %v2212
        %2480 = vmatprep.mubr.bf16.mxu0 %v1787
        %2481 = vmatmul.mubr.bf16.gmra.mrb[0].mxu0 %v1786
        %v2482 = vpop.f32.mrb[0].mxu0
        %v2483 = vadd.f32 %v1642, %v2482
        %v2484 = vpop.f32.mrb[0].mxu0
        %v2485 = vadd.f32 %v1644, %v2484
        %v2486 = vpop.f32.mrb[0].mxu0
        %v2487 = vadd.f32 %v1646, %v2486
        %v2488 = vpop.f32.mrb[0].mxu0
        %v2489 = vadd.f32 %v1648, %v2488
        %2490 = vmatprep.mubr.bf16.mxu0 %v1790
        %2491 = vmatmul.mubr.bf16.gmra.mrb[0].mxu0 %v1789
        %v2492 = vpop.f32.mrb[0].mxu0
        %v2493 = vadd.f32 %v1652, %v2492
        %v2494 = vpop.f32.mrb[0].mxu0
        %v2495 = vadd.f32 %v1654, %v2494
        %v2496 = vpop.f32.mrb[0].mxu0
        %v2497 = vadd.f32 %v1656, %v2496
        %v2498 = vpop.f32.mrb[0].mxu0
        %v2499 = vadd.f32 %v1658, %v2498
        %2500 = vdwg.mxu0
        %2501 = vmatprep.subr.bf16.mxu0 %v2219
        %2502 = vmatpush1.bf16.msra.mxu0 %v2218
        %2503 = vmatprep.subr.bf16.mxu0 %v2225
        %2504 = vmatpush1.bf16.msra.mxu0 %v2224
        %2505 = vmatprep.subr.bf16.mxu0 0
        %2506 = vmatpush1.bf16.msra.mxu0 0
        %2507 = vmatprep.subr.bf16.mxu0 0
        %2508 = vmatpush1.bf16.msra.mxu0 0
        %2509 = vmatprep.subr.bf16.mxu0 0
        %2510 = vmatpush1.bf16.msra.mxu0 0
        %2511 = vmatprep.subr.bf16.mxu0 0
        %2512 = vmatpush1.bf16.msra.mxu0 0
        %2513 = vmatprep.subr.bf16.mxu0 0
        %2514 = vmatpush1.bf16.msra.mxu0 0
        %2515 = vmatprep.subr.bf16.mxu0 0
        %2516 = vmatpush1.bf16.msra.mxu0 0
        %2517 = vmatprep.subr.bf16.mxu0 0
        %2518 = vmatpush1.bf16.msra.mxu0 0
        %2519 = vmatprep.subr.bf16.mxu0 0
        %2520 = vmatpush1.bf16.msra.mxu0 0
        %2521 = vmatprep.subr.bf16.mxu0 0
        %2522 = vmatpush1.bf16.msra.mxu0 0
        %2523 = vmatprep.subr.bf16.mxu0 0
        %2524 = vmatpush1.bf16.msra.mxu0 0
        %2525 = vmatprep.subr.bf16.mxu0 0
        %2526 = vmatpush1.bf16.msra.mxu0 0
        %2527 = vmatprep.subr.bf16.mxu0 0
        %2528 = vmatpush1.bf16.msra.mxu0 0
        %2529 = vmatprep.subr.bf16.mxu0 0
        %2530 = vmatpush1.bf16.msra.mxu0 0
        %2531 = vmatprep.subr.bf16.mxu0 0
        %2532 = vmatpush1.bf16.msra.mxu0 0
        %2533 = vmatprep.mubr.bf16.mxu0 0
        %2534 = vmatmul.mubr.bf16.gmra.mrb[0].mxu0 %v2337
        %v2535 = vpop.f32.mrb[0].mxu0
        %v2536 = vadd.f32 %v2483, %v2535
        %v2537 = vpop.f32.mrb[0].mxu0
        %v2538 = vadd.f32 %v2485, %v2537
        %v2539 = vpop.f32.mrb[0].mxu0
        %v2540 = vadd.f32 %v2487, %v2539
        %v2541 = vpop.f32.mrb[0].mxu0
        %v2542 = vadd.f32 %v2489, %v2541
        %2543 = vmatprep.mubr.bf16.mxu0 0
        %2544 = vmatmul.mubr.bf16.gmra.mrb[0].mxu0 %v2340
        %v2545 = vpop.f32.mrb[0].mxu0
        %v2546 = vadd.f32 %v2493, %v2545
        %v2547 = vpop.f32.mrb[0].mxu0
        %v2548 = vadd.f32 %v2495, %v2547
        %v2549 = vpop.f32.mrb[0].mxu0
        %v2550 = vadd.f32 %v2497, %v2549
        %v2551 = vpop.f32.mrb[0].mxu0
        %v2552 = vadd.f32 %v2499, %v2551
        %2553 = vdwg.mxu0
        %2554 = vmatprep.subr.bf16.mxu0 %v2125
        %2555 = vmatpush1.bf16.msra.mxu0 %v2124
        %2556 = vmatprep.subr.bf16.mxu0 %v2131
        %2557 = vmatpush1.bf16.msra.mxu0 %v2130
        %2558 = vmatprep.subr.bf16.mxu0 %v2137
        %2559 = vmatpush1.bf16.msra.mxu0 %v2136
        %2560 = vmatprep.subr.bf16.mxu0 %v2143
        %2561 = vmatpush1.bf16.msra.mxu0 %v2142
        %2562 = vmatprep.subr.bf16.mxu0 %v2149
        %2563 = vmatpush1.bf16.msra.mxu0 %v2148
        %2564 = vmatprep.subr.bf16.mxu0 %v2155
        %2565 = vmatpush1.bf16.msra.mxu0 %v2154
        %2566 = vmatprep.subr.bf16.mxu0 %v2161
        %2567 = vmatpush1.bf16.msra.mxu0 %v2160
        %2568 = vmatprep.subr.bf16.mxu0 %v2167
        %2569 = vmatpush1.bf16.msra.mxu0 %v2166
        %2570 = vmatprep.subr.bf16.mxu0 %v2173
        %2571 = vmatpush1.bf16.msra.mxu0 %v2172
        %2572 = vmatprep.subr.bf16.mxu0 %v2179
        %2573 = vmatpush1.bf16.msra.mxu0 %v2178
        %2574 = vmatprep.subr.bf16.mxu0 %v2185
        %2575 = vmatpush1.bf16.msra.mxu0 %v2184
        %2576 = vmatprep.subr.bf16.mxu0 %v2191
        %2577 = vmatpush1.bf16.msra.mxu0 %v2190
        %2578 = vmatprep.subr.bf16.mxu0 %v2197
        %2579 = vmatpush1.bf16.msra.mxu0 %v2196
        %2580 = vmatprep.subr.bf16.mxu0 %v2203
        %2581 = vmatpush1.bf16.msra.mxu0 %v2202
        %2582 = vmatprep.subr.bf16.mxu0 %v2209
        %2583 = vmatpush1.bf16.msra.mxu0 %v2208
        %2584 = vmatprep.subr.bf16.mxu0 %v2215
        %2585 = vmatpush1.bf16.msra.mxu0 %v2214
        %2586 = vmatprep.mubr.bf16.mxu0 %v1787
        %2587 = vmatmul.mubr.bf16.gmra.mrb[0].mxu0 %v1786
        %v2588 = vpop.f32.mrb[0].mxu0
        %v2589 = vadd.f32 %v1748, %v2588
        %v2590 = vpop.f32.mrb[0].mxu0
        %v2591 = vadd.f32 %v1750, %v2590
        %v2592 = vpop.f32.mrb[0].mxu0
        %v2593 = vadd.f32 %v1752, %v2592
        %v2594 = vpop.f32.mrb[0].mxu0
        %v2595 = vadd.f32 %v1754, %v2594
        %2596 = vmatprep.mubr.bf16.mxu0 %v1790
        %2597 = vmatmul.mubr.bf16.gmra.mrb[0].mxu0 %v1789
        %v2598 = vpop.f32.mrb[0].mxu0
        %v2599 = vadd.f32 %v1758, %v2598
        %v2600 = vpop.f32.mrb[0].mxu0
        %v2601 = vadd.f32 %v1760, %v2600
        %v2602 = vpop.f32.mrb[0].mxu0
        %v2603 = vadd.f32 %v1762, %v2602
        %v2604 = vpop.f32.mrb[0].mxu0
        %v2605 = vadd.f32 %v1764, %v2604
        %2606 = vdwg.mxu0
        %2607 = vmatprep.subr.bf16.mxu0 %v2221
        %2608 = vmatpush1.bf16.msra.mxu0 %v2220
        %2609 = vmatprep.subr.bf16.mxu0 %v2227
        %2610 = vmatpush1.bf16.msra.mxu0 %v2226
        %2611 = vmatprep.subr.bf16.mxu0 0
        %2612 = vmatpush1.bf16.msra.mxu0 0
        %2613 = vmatprep.subr.bf16.mxu0 0
        %2614 = vmatpush1.bf16.msra.mxu0 0
        %2615 = vmatprep.subr.bf16.mxu0 0
        %2616 = vmatpush1.bf16.msra.mxu0 0
        %2617 = vmatprep.subr.bf16.mxu0 0
        %2618 = vmatpush1.bf16.msra.mxu0 0
        %2619 = vmatprep.subr.bf16.mxu0 0
        %2620 = vmatpush1.bf16.msra.mxu0 0
        %2621 = vmatprep.subr.bf16.mxu0 0
        %2622 = vmatpush1.bf16.msra.mxu0 0
        %2623 = vmatprep.subr.bf16.mxu0 0
        %2624 = vmatpush1.bf16.msra.mxu0 0
        %2625 = vmatprep.subr.bf16.mxu0 0
        %2626 = vmatpush1.bf16.msra.mxu0 0
        %2627 = vmatprep.subr.bf16.mxu0 0
        %2628 = vmatpush1.bf16.msra.mxu0 0
        %2629 = vmatprep.subr.bf16.mxu0 0
        %2630 = vmatpush1.bf16.msra.mxu0 0
        %2631 = vmatprep.subr.bf16.mxu0 0
        %2632 = vmatpush1.bf16.msra.mxu0 0
        %2633 = vmatprep.subr.bf16.mxu0 0
        %2634 = vmatpush1.bf16.msra.mxu0 0
        %2635 = vmatprep.subr.bf16.mxu0 0
        %2636 = vmatpush1.bf16.msra.mxu0 0
        %2637 = vmatprep.subr.bf16.mxu0 0
        %2638 = vmatpush1.bf16.msra.mxu0 0
        %2639 = vmatprep.mubr.bf16.mxu0 0
        %2640 = vmatmul.mubr.bf16.gmra.mrb[0].mxu0 %v2337
        %v2641 = vpop.f32.mrb[0].mxu0
        %v2642 = vadd.f32 %v2589, %v2641
        %v2643 = vpop.f32.mrb[0].mxu0
        %v2644 = vadd.f32 %v2591, %v2643
        %v2645 = vpop.f32.mrb[0].mxu0
        %v2646 = vadd.f32 %v2593, %v2645
        %v2647 = vpop.f32.mrb[0].mxu0
        %v2648 = vadd.f32 %v2595, %v2647
        %2649 = vmatprep.mubr.bf16.mxu0 0
        %2650 = vmatmul.mubr.bf16.gmra.mrb[0].mxu0 %v2340
        %v2651 = vpop.f32.mrb[0].mxu0
        %v2652 = vadd.f32 %v2599, %v2651
        %v2653 = vpop.f32.mrb[0].mxu0
        %v2654 = vadd.f32 %v2601, %v2653
        %v2655 = vpop.f32.mrb[0].mxu0
        %v2656 = vadd.f32 %v2603, %v2655
        %v2657 = vpop.f32.mrb[0].mxu0
        %v2658 = vadd.f32 %v2605, %v2657
        %2659 = vdwg.mxu0
        %v2660 = vld [vmem:[#allocation2] sm:$0xee]
        %v2661 = vld [vmem:[#allocation2 + $0x8] sm:$0xe]
        %v2662 = vld [vmem:[#allocation2 + $0x18] sm:$0xee]
        %v2663 = vld [vmem:[#allocation2 + $0x20] sm:$0xe]
        %v2664 = vld [vmem:[#allocation2 + $0x30] sm:$0xee]
        %v2665 = vld [vmem:[#allocation2 + $0x38] sm:$0xe]
        %v2666 = vld [vmem:[#allocation2 + $0x48] sm:$0xee]
        %v2667 = vld [vmem:[#allocation2 + $0x50] sm:$0xe]
        %vm2684 = vcmask 1042432
        %vm2685 = vcmask 1046532
        %vm2686 = vmor %vm2684, %vm2685
        %v2687 = vrot.slane %v2660, 5
        %v2688 = vrot.slane %v2687, 4
        %v2689 = vrot.slane %v647, 5
        %v2690 = vsel %vm2686, %v2688, %v2689
        %v2691 = vrot.slane %v2661, 5
        %v2692 = vrot.slane %v2691, 4
        %v2693 = vrot.slane %v648, 5
        %v2694 = vsel %vm2686, %v2692, %v2693
        %v2695 = vrot.slane %v2662, 5
        %v2696 = vrot.slane %v2695, 4
        %v2697 = vrot.slane %v649, 5
        %v2698 = vsel %vm2686, %v2696, %v2697
        %v2699 = vrot.slane %v2663, 5
        %v2700 = vrot.slane %v2699, 4
        %v2701 = vrot.slane %v650, 5
        %v2702 = vsel %vm2686, %v2700, %v2701
        %v2703 = vrot.slane %v2664, 5
        %v2704 = vrot.slane %v2703, 4
        %v2705 = vrot.slane %v651, 5
        %v2706 = vsel %vm2686, %v2704, %v2705
        %v2707 = vrot.slane %v2665, 5
        %v2708 = vrot.slane %v2707, 4
        %v2709 = vrot.slane %v652, 5
        %v2710 = vsel %vm2686, %v2708, %v2709
        %v2711 = vrot.slane %v2666, 5
        %v2712 = vrot.slane %v2711, 4
        %v2713 = vrot.slane %v653, 5
        %v2714 = vsel %vm2686, %v2712, %v2713
        %v2715 = vrot.slane %v2667, 5
        %v2716 = vrot.slane %v2715, 4
        %v2717 = vrot.slane %v654, 5
        %v2718 = vsel %vm2686, %v2716, %v2717
        %s2719 = scalar_lea.vmem [#allocation8], 1728
        %v2720 = vld [vmem:[%s2719] sm:$0xff]
        %v2721 = vld [vmem:[%s2719 + $0x8] sm:$0xff]
        %v2722 = vld [vmem:[%s2719 + $0x10] sm:$0xff]
        %v2723 = vld [vmem:[%s2719 + $0x18] sm:$0xff]
        %v2724 = vld [vmem:[%s2719 + $0x20] sm:$0xff]
        %v2725 = vld [vmem:[%s2719 + $0x28] sm:$0xff]
        %v2726 = vld [vmem:[%s2719 + $0x30] sm:$0xff]
        %v2727 = vld [vmem:[%s2719 + $0x38] sm:$0xff]
        %v2728 = vld [vmem:[%s2719 + $0x40] sm:$0xff]
        %v2729 = vld [vmem:[%s2719 + $0x48] sm:$0xff]
        %v2730 = vld [vmem:[%s2719 + $0x50] sm:$0xff]
        %v2731 = vld [vmem:[%s2719 + $0x58] sm:$0xff]
        %v2732 = vld [vmem:[%s2719 + $0x60] sm:$0xff]
        %v2733 = vld [vmem:[%s2719 + $0x68] sm:$0xff]
        %v2734 = vld [vmem:[%s2719 + $0x70] sm:$0xff]
        %v2735 = vld [vmem:[%s2719 + $0x78] sm:$0xff]
        %v2736 = vld [vmem:[%s2719 + $0x80] sm:$0xff]
        %v2737 = vld [vmem:[%s2719 + $0x88] sm:$0xff]
        %v2738 = vld [vmem:[%s2719 + $0x90] sm:$0xff]
        %v2739 = vld [vmem:[%s2719 + $0x98] sm:$0xff]
        %v2740 = vld [vmem:[%s2719 + $0xa0] sm:$0xff]
        %v2741 = vld [vmem:[%s2719 + $0xa8] sm:$0xff]
        %v2742 = vld [vmem:[%s2719 + $0xb0] sm:$0xff]
        %v2743 = vld [vmem:[%s2719 + $0xb8] sm:$0xff]
        %v2744 = vld [vmem:[%s2719 + $0xc0] sm:$0xff]
        %v2745 = vld [vmem:[%s2719 + $0xc8] sm:$0xff]
        %v2746 = vld [vmem:[%s2719 + $0xd0] sm:$0xff]
        %v2747 = vld [vmem:[%s2719 + $0xd8] sm:$0xff]
        %v2748 = vld [vmem:[%s2719 + $0xe0] sm:$0xff]
        %v2749 = vld [vmem:[%s2719 + $0xe8] sm:$0xff]
        %v2750 = vld [vmem:[%s2719 + $0xf0] sm:$0xff]
        %v2751 = vld [vmem:[%s2719 + $0xf8] sm:$0xff]
        %v2752 = vld [vmem:[%s2719 + $0x100] sm:$0xff]
        %v2753 = vld [vmem:[%s2719 + $0x108] sm:$0xff]
        %v2754 = vld [vmem:[%s2719 + $0x110] sm:$0xff]
        %v2755 = vld [vmem:[%s2719 + $0x118] sm:$0xff]
        %v2756 = vld [vmem:[%s2719 + $0x120] sm:$0xff]
        %v2757 = vld [vmem:[%s2719 + $0x128] sm:$0xff]
        %v2758 = vld [vmem:[%s2719 + $0x130] sm:$0xff]
        %v2759 = vld [vmem:[%s2719 + $0x138] sm:$0xff]
        %v2760 = vld [vmem:[%s2719 + $0x140] sm:$0xff]
        %v2761 = vld [vmem:[%s2719 + $0x148] sm:$0xff]
        %v2762 = vld [vmem:[%s2719 + $0x150] sm:$0xff]
        %v2763 = vld [vmem:[%s2719 + $0x158] sm:$0xff]
        %v2764 = vld [vmem:[%s2719 + $0x160] sm:$0xff]
        %v2765 = vld [vmem:[%s2719 + $0x168] sm:$0xff]
        %v2766 = vld [vmem:[%s2719 + $0x170] sm:$0xff]
        %v2767 = vld [vmem:[%s2719 + $0x178] sm:$0xff]
        %v2768 = vld [vmem:[%s2719 + $0x180] sm:$0xff]
        %v2769 = vld [vmem:[%s2719 + $0x188] sm:$0xff]
        %v2770 = vld [vmem:[%s2719 + $0x190] sm:$0xff]
        %v2771 = vld [vmem:[%s2719 + $0x198] sm:$0xff]
        %v2772 = vld [vmem:[%s2719 + $0x1a0] sm:$0xff]
        %v2773 = vld [vmem:[%s2719 + $0x1a8] sm:$0xff]
        %v2774 = vld [vmem:[%s2719 + $0x1b0] sm:$0xff]
        %v2775 = vld [vmem:[%s2719 + $0x1b8] sm:$0xff]
        %v2776 = vld [vmem:[%s2719 + $0x1c0] sm:$0xff]
        %v2777 = vld [vmem:[%s2719 + $0x1c8] sm:$0xff]
        %v2778 = vld [vmem:[%s2719 + $0x1d0] sm:$0xff]
        %v2779 = vld [vmem:[%s2719 + $0x1d8] sm:$0xff]
        %v2780 = vld [vmem:[%s2719 + $0x1e0] sm:$0xff]
        %v2781 = vld [vmem:[%s2719 + $0x1e8] sm:$0xff]
        %v2782 = vld [vmem:[%s2719 + $0x1f0] sm:$0xff]
        %v2783 = vld [vmem:[%s2719 + $0x1f8] sm:$0xff]
        %v2784 = vld [vmem:[%s2719 + $0x200] sm:$0xff]
        %v2785 = vld [vmem:[%s2719 + $0x208] sm:$0xff]
        %v2786 = vld [vmem:[%s2719 + $0x210] sm:$0xff]
        %v2787 = vld [vmem:[%s2719 + $0x218] sm:$0xff]
        %v2788 = vld [vmem:[%s2719 + $0x220] sm:$0xff]
        %v2789 = vld [vmem:[%s2719 + $0x228] sm:$0xff]
        %v2790 = vld [vmem:[%s2719 + $0x230] sm:$0xff]
        %v2791 = vld [vmem:[%s2719 + $0x238] sm:$0xff]
        %v2792 = vld [vmem:[%s2719 + $0x240] sm:$0xff]
        %v2793 = vld [vmem:[%s2719 + $0x248] sm:$0xff]
        %v2794 = vld [vmem:[%s2719 + $0x250] sm:$0xff]
        %v2795 = vld [vmem:[%s2719 + $0x258] sm:$0xff]
        %v2796 = vld [vmem:[%s2719 + $0x260] sm:$0xff]
        %v2797 = vld [vmem:[%s2719 + $0x268] sm:$0xff]
        %v2798 = vld [vmem:[%s2719 + $0x270] sm:$0xff]
        %v2799 = vld [vmem:[%s2719 + $0x278] sm:$0xff]
        %v2800 = vld [vmem:[%s2719 + $0x280] sm:$0xff]
        %v2801 = vld [vmem:[%s2719 + $0x288] sm:$0xff]
        %v2802 = vld [vmem:[%s2719 + $0x290] sm:$0xff]
        %v2803 = vld [vmem:[%s2719 + $0x298] sm:$0xff]
        %v2804 = vld [vmem:[%s2719 + $0x2a0] sm:$0xff]
        %v2805 = vld [vmem:[%s2719 + $0x2a8] sm:$0xff]
        %v2806 = vld [vmem:[%s2719 + $0x2b0] sm:$0xff]
        %v2807 = vld [vmem:[%s2719 + $0x2b8] sm:$0xff]
        %v2808 = vld [vmem:[%s2719 + $0x2c0] sm:$0xff]
        %v2809 = vld [vmem:[%s2719 + $0x2c8] sm:$0xff]
        %v2810 = vld [vmem:[%s2719 + $0x2d0] sm:$0xff]
        %v2811 = vld [vmem:[%s2719 + $0x2d8] sm:$0xff]
        %v2812 = vld [vmem:[%s2719 + $0x2e0] sm:$0xff]
        %v2813 = vld [vmem:[%s2719 + $0x2e8] sm:$0xff]
        %v2814 = vld [vmem:[%s2719 + $0x2f0] sm:$0xff]
        %v2815 = vld [vmem:[%s2719 + $0x2f8] sm:$0xff]
        %v2816 = vld [vmem:[%s2719 + $0x300] sm:$0xff]
        %v2817 = vld [vmem:[%s2719 + $0x308] sm:$0xff]
        %v2818 = vld [vmem:[%s2719 + $0x310] sm:$0xff]
        %v2819 = vld [vmem:[%s2719 + $0x318] sm:$0xff]
        %v2820 = vld [vmem:[%s2719 + $0x320] sm:$0xff]
        %v2821 = vld [vmem:[%s2719 + $0x328] sm:$0xff]
        %v2822 = vld [vmem:[%s2719 + $0x330] sm:$0xff]
        %v2823 = vld [vmem:[%s2719 + $0x338] sm:$0xff]
        %v2824 = vld [vmem:[%s2719 + $0x340] sm:$0xff]
        %v2825 = vld [vmem:[%s2719 + $0x348] sm:$0xff]
        %v2826 = vld [vmem:[%s2719 + $0x350] sm:$0xff]
        %v2827 = vld [vmem:[%s2719 + $0x358] sm:$0xff]
        %v2828 = vunpack.c.l.b16 %v2690
        %v2829 = vunpack.c.h.b16 %v2690
        %v2830 = vunpack.c.l.b16 %v2694
        %v2831 = vunpack.c.l.b16 %v2698
        %v2832 = vunpack.c.h.b16 %v2698
        %v2833 = vunpack.c.l.b16 %v2702
        %v2834 = vunpack.c.l.b16 %v2706
        %v2835 = vunpack.c.h.b16 %v2706
        %v2836 = vunpack.c.l.b16 %v2710
        %v2837 = vunpack.c.l.b16 %v2714
        %v2838 = vunpack.c.h.b16 %v2714
        %v2839 = vunpack.c.l.b16 %v2718
        %v2840 = vpack.c.b16 %v2831, %v2828
        %v2841 = vpack.c.b16 %v2832, %v2829
        %v2842 = vpack.c.b16 %v2833, %v2830
        %v2843 = vpack.c.b16 %v2837, %v2834
        %v2844 = vpack.c.b16 %v2838, %v2835
        %v2845 = vpack.c.b16 %v2839, %v2836
        %v2958 = vunpack.c.l.b16 %v2720
        %v2959 = vunpack.c.h.b16 %v2720
        %v2960 = vunpack.c.l.b16 %v2721
        %v2961 = vunpack.c.h.b16 %v2721
        %v2962 = vunpack.c.l.b16 %v2722
        %v2963 = vunpack.c.h.b16 %v2722
        %v2964 = vunpack.c.l.b16 %v2723
        %v2965 = vunpack.c.h.b16 %v2723
        %v2966 = vunpack.c.l.b16 %v2724
        %v2967 = vunpack.c.h.b16 %v2724
        %v2968 = vunpack.c.l.b16 %v2725
        %v2969 = vunpack.c.h.b16 %v2725
        %v2970 = vunpack.c.l.b16 %v2726
        %v2971 = vunpack.c.h.b16 %v2726
        %v2972 = vunpack.c.l.b16 %v2727
        %v2973 = vunpack.c.h.b16 %v2727
        %v2974 = vunpack.c.l.b16 %v2728
        %v2975 = vunpack.c.h.b16 %v2728
        %v2976 = vunpack.c.l.b16 %v2729
        %v2977 = vunpack.c.h.b16 %v2729
        %v2978 = vunpack.c.l.b16 %v2730
        %v2979 = vunpack.c.h.b16 %v2730
        %v2980 = vunpack.c.l.b16 %v2731
        %v2981 = vunpack.c.h.b16 %v2731
        %v2982 = vunpack.c.l.b16 %v2732
        %v2983 = vunpack.c.h.b16 %v2732
        %v2984 = vunpack.c.l.b16 %v2733
        %v2985 = vunpack.c.h.b16 %v2733
        %v2986 = vunpack.c.l.b16 %v2734
        %v2987 = vunpack.c.h.b16 %v2734
        %v2988 = vunpack.c.l.b16 %v2735
        %v2989 = vunpack.c.h.b16 %v2735
        %v2990 = vunpack.c.l.b16 %v2736
        %v2991 = vunpack.c.h.b16 %v2736
        %v2992 = vunpack.c.l.b16 %v2737
        %v2993 = vunpack.c.h.b16 %v2737
        %v2994 = vunpack.c.l.b16 %v2738
        %v2995 = vunpack.c.h.b16 %v2738
        %v2996 = vunpack.c.l.b16 %v2739
        %v2997 = vunpack.c.h.b16 %v2739
        %v2998 = vunpack.c.l.b16 %v2740
        %v2999 = vunpack.c.h.b16 %v2740
        %v3000 = vunpack.c.l.b16 %v2741
        %v3001 = vunpack.c.h.b16 %v2741
        %v3002 = vunpack.c.l.b16 %v2742
        %v3003 = vunpack.c.h.b16 %v2742
        %v3004 = vunpack.c.l.b16 %v2743
        %v3005 = vunpack.c.h.b16 %v2743
        %v3006 = vunpack.c.l.b16 %v2744
        %v3007 = vunpack.c.h.b16 %v2744
        %v3008 = vunpack.c.l.b16 %v2745
        %v3009 = vunpack.c.h.b16 %v2745
        %v3010 = vunpack.c.l.b16 %v2746
        %v3011 = vunpack.c.h.b16 %v2746
        %v3012 = vunpack.c.l.b16 %v2747
        %v3013 = vunpack.c.h.b16 %v2747
        %v3014 = vunpack.c.l.b16 %v2748
        %v3015 = vunpack.c.h.b16 %v2748
        %v3016 = vunpack.c.l.b16 %v2749
        %v3017 = vunpack.c.h.b16 %v2749
        %v3018 = vunpack.c.l.b16 %v2750
        %v3019 = vunpack.c.h.b16 %v2750
        %v3020 = vunpack.c.l.b16 %v2751
        %v3021 = vunpack.c.h.b16 %v2751
        %v3022 = vunpack.c.l.b16 %v2752
        %v3023 = vunpack.c.h.b16 %v2752
        %v3024 = vunpack.c.l.b16 %v2753
        %v3025 = vunpack.c.h.b16 %v2753
        %v3026 = vunpack.c.l.b16 %v2754
        %v3027 = vunpack.c.h.b16 %v2754
        %v3028 = vunpack.c.l.b16 %v2755
        %v3029 = vunpack.c.h.b16 %v2755
        %v3030 = vunpack.c.l.b16 %v2756
        %v3031 = vunpack.c.h.b16 %v2756
        %v3032 = vunpack.c.l.b16 %v2757
        %v3033 = vunpack.c.h.b16 %v2757
        %v3034 = vunpack.c.l.b16 %v2758
        %v3035 = vunpack.c.h.b16 %v2758
        %v3036 = vunpack.c.l.b16 %v2759
        %v3037 = vunpack.c.h.b16 %v2759
        %v3038 = vunpack.c.l.b16 %v2760
        %v3039 = vunpack.c.h.b16 %v2760
        %v3040 = vunpack.c.l.b16 %v2761
        %v3041 = vunpack.c.h.b16 %v2761
        %v3042 = vunpack.c.l.b16 %v2762
        %v3043 = vunpack.c.h.b16 %v2762
        %v3044 = vunpack.c.l.b16 %v2763
        %v3045 = vunpack.c.h.b16 %v2763
        %v3046 = vunpack.c.l.b16 %v2764
        %v3047 = vunpack.c.h.b16 %v2764
        %v3048 = vunpack.c.l.b16 %v2765
        %v3049 = vunpack.c.h.b16 %v2765
        %v3050 = vunpack.c.l.b16 %v2766
        %v3051 = vunpack.c.h.b16 %v2766
        %v3052 = vunpack.c.l.b16 %v2767
        %v3053 = vunpack.c.h.b16 %v2767
        %v3054 = vunpack.c.l.b16 %v2768
        %v3055 = vunpack.c.h.b16 %v2768
        %v3056 = vunpack.c.l.b16 %v2769
        %v3057 = vunpack.c.h.b16 %v2769
        %v3058 = vunpack.c.l.b16 %v2770
        %v3059 = vunpack.c.h.b16 %v2770
        %v3060 = vunpack.c.l.b16 %v2771
        %v3061 = vunpack.c.h.b16 %v2771
        %v3062 = vunpack.c.l.b16 %v2772
        %v3063 = vunpack.c.h.b16 %v2772
        %v3064 = vunpack.c.l.b16 %v2773
        %v3065 = vunpack.c.h.b16 %v2773
        %v3066 = vunpack.c.l.b16 %v2774
        %v3067 = vunpack.c.h.b16 %v2774
        %v3068 = vunpack.c.l.b16 %v2775
        %v3069 = vunpack.c.h.b16 %v2775
        %v3070 = vunpack.c.l.b16 %v2776
        %v3071 = vunpack.c.h.b16 %v2776
        %v3072 = vunpack.c.l.b16 %v2777
        %v3073 = vunpack.c.h.b16 %v2777
        %v3074 = vunpack.c.l.b16 %v2778
        %v3075 = vunpack.c.h.b16 %v2778
        %v3076 = vunpack.c.l.b16 %v2779
        %v3077 = vunpack.c.h.b16 %v2779
        %v3078 = vunpack.c.l.b16 %v2780
        %v3079 = vunpack.c.h.b16 %v2780
        %v3080 = vunpack.c.l.b16 %v2781
        %v3081 = vunpack.c.h.b16 %v2781
        %v3082 = vunpack.c.l.b16 %v2782
        %v3083 = vunpack.c.h.b16 %v2782
        %v3084 = vunpack.c.l.b16 %v2783
        %v3085 = vunpack.c.h.b16 %v2783
        %v3086 = vunpack.c.l.b16 %v2784
        %v3087 = vunpack.c.h.b16 %v2784
        %v3088 = vunpack.c.l.b16 %v2785
        %v3089 = vunpack.c.h.b16 %v2785
        %v3090 = vunpack.c.l.b16 %v2786
        %v3091 = vunpack.c.h.b16 %v2786
        %v3092 = vunpack.c.l.b16 %v2787
        %v3093 = vunpack.c.h.b16 %v2787
        %v3094 = vunpack.c.l.b16 %v2788
        %v3095 = vunpack.c.h.b16 %v2788
        %v3096 = vunpack.c.l.b16 %v2789
        %v3097 = vunpack.c.h.b16 %v2789
        %v3098 = vunpack.c.l.b16 %v2790
        %v3099 = vunpack.c.h.b16 %v2790
        %v3100 = vunpack.c.l.b16 %v2791
        %v3101 = vunpack.c.h.b16 %v2791
        %v3102 = vunpack.c.l.b16 %v2792
        %v3103 = vunpack.c.h.b16 %v2792
        %v3104 = vunpack.c.l.b16 %v2793
        %v3105 = vunpack.c.h.b16 %v2793
        %v3106 = vunpack.c.l.b16 %v2794
        %v3107 = vunpack.c.h.b16 %v2794
        %v3108 = vunpack.c.l.b16 %v2795
        %v3109 = vunpack.c.h.b16 %v2795
        %v3110 = vunpack.c.l.b16 %v2796
        %v3111 = vunpack.c.h.b16 %v2796
        %v3112 = vunpack.c.l.b16 %v2797
        %v3113 = vunpack.c.h.b16 %v2797
        %v3114 = vunpack.c.l.b16 %v2798
        %v3115 = vunpack.c.h.b16 %v2798
        %v3116 = vunpack.c.l.b16 %v2799
        %v3117 = vunpack.c.h.b16 %v2799
        %v3118 = vunpack.c.l.b16 %v2800
        %v3119 = vunpack.c.h.b16 %v2800
        %v3120 = vunpack.c.l.b16 %v2801
        %v3121 = vunpack.c.h.b16 %v2801
        %v3122 = vunpack.c.l.b16 %v2802
        %v3123 = vunpack.c.h.b16 %v2802
        %v3124 = vunpack.c.l.b16 %v2803
        %v3125 = vunpack.c.h.b16 %v2803
        %v3126 = vunpack.c.l.b16 %v2804
        %v3127 = vunpack.c.h.b16 %v2804
        %v3128 = vunpack.c.l.b16 %v2805
        %v3129 = vunpack.c.h.b16 %v2805
        %v3130 = vunpack.c.l.b16 %v2806
        %v3131 = vunpack.c.h.b16 %v2806
        %v3132 = vunpack.c.l.b16 %v2807
        %v3133 = vunpack.c.h.b16 %v2807
        %v3134 = vunpack.c.l.b16 %v2808
        %v3135 = vunpack.c.h.b16 %v2808
        %v3136 = vunpack.c.l.b16 %v2809
        %v3137 = vunpack.c.h.b16 %v2809
        %v3138 = vunpack.c.l.b16 %v2810
        %v3139 = vunpack.c.h.b16 %v2810
        %v3140 = vunpack.c.l.b16 %v2811
        %v3141 = vunpack.c.h.b16 %v2811
        %v3142 = vunpack.c.l.b16 %v2812
        %v3143 = vunpack.c.h.b16 %v2812
        %v3144 = vunpack.c.l.b16 %v2813
        %v3145 = vunpack.c.h.b16 %v2813
        %v3146 = vunpack.c.l.b16 %v2814
        %v3147 = vunpack.c.h.b16 %v2814
        %v3148 = vunpack.c.l.b16 %v2815
        %v3149 = vunpack.c.h.b16 %v2815
        %v3150 = vunpack.c.l.b16 %v2816
        %v3151 = vunpack.c.h.b16 %v2816
        %v3152 = vunpack.c.l.b16 %v2817
        %v3153 = vunpack.c.h.b16 %v2817
        %v3154 = vunpack.c.l.b16 %v2818
        %v3155 = vunpack.c.h.b16 %v2818
        %v3156 = vunpack.c.l.b16 %v2819
        %v3157 = vunpack.c.h.b16 %v2819
        %v3158 = vunpack.c.l.b16 %v2820
        %v3159 = vunpack.c.h.b16 %v2820
        %v3160 = vunpack.c.l.b16 %v2821
        %v3161 = vunpack.c.h.b16 %v2821
        %v3162 = vunpack.c.l.b16 %v2822
        %v3163 = vunpack.c.h.b16 %v2822
        %v3164 = vunpack.c.l.b16 %v2823
        %v3165 = vunpack.c.h.b16 %v2823
        %v3166 = vunpack.c.l.b16 %v2824
        %v3167 = vunpack.c.h.b16 %v2824
        %v3168 = vunpack.c.l.b16 %v2825
        %v3169 = vunpack.c.h.b16 %v2825
        %v3170 = vunpack.c.l.b16 %v2826
        %v3171 = vunpack.c.h.b16 %v2826
        %v3172 = vunpack.c.l.b16 %v2827
        %v3173 = vunpack.c.h.b16 %v2827
        %v3174 = vpack.c.b16 %v2964, %v2958
        %v3175 = vpack.c.b16 %v2965, %v2959
        %v3176 = vpack.c.b16 %v2966, %v2960
        %v3177 = vpack.c.b16 %v2967, %v2961
        %v3178 = vpack.c.b16 %v2968, %v2962
        %v3179 = vpack.c.b16 %v2969, %v2963
        %v3180 = vpack.c.b16 %v2976, %v2970
        %v3181 = vpack.c.b16 %v2977, %v2971
        %v3182 = vpack.c.b16 %v2978, %v2972
        %v3183 = vpack.c.b16 %v2979, %v2973
        %v3184 = vpack.c.b16 %v2980, %v2974
        %v3185 = vpack.c.b16 %v2981, %v2975
        %v3186 = vpack.c.b16 %v2988, %v2982
        %v3187 = vpack.c.b16 %v2989, %v2983
        %v3188 = vpack.c.b16 %v2990, %v2984
        %v3189 = vpack.c.b16 %v2991, %v2985
        %v3190 = vpack.c.b16 %v2992, %v2986
        %v3191 = vpack.c.b16 %v2993, %v2987
        %v3192 = vpack.c.b16 %v3000, %v2994
        %v3193 = vpack.c.b16 %v3001, %v2995
        %v3194 = vpack.c.b16 %v3002, %v2996
        %v3195 = vpack.c.b16 %v3003, %v2997
        %v3196 = vpack.c.b16 %v3004, %v2998
        %v3197 = vpack.c.b16 %v3005, %v2999
        %v3198 = vpack.c.b16 %v3012, %v3006
        %v3199 = vpack.c.b16 %v3013, %v3007
        %v3200 = vpack.c.b16 %v3014, %v3008
        %v3201 = vpack.c.b16 %v3015, %v3009
        %v3202 = vpack.c.b16 %v3016, %v3010
        %v3203 = vpack.c.b16 %v3017, %v3011
        %v3204 = vpack.c.b16 %v3024, %v3018
        %v3205 = vpack.c.b16 %v3025, %v3019
        %v3206 = vpack.c.b16 %v3026, %v3020
        %v3207 = vpack.c.b16 %v3027, %v3021
        %v3208 = vpack.c.b16 %v3028, %v3022
        %v3209 = vpack.c.b16 %v3029, %v3023
        %v3210 = vpack.c.b16 %v3036, %v3030
        %v3211 = vpack.c.b16 %v3037, %v3031
        %v3212 = vpack.c.b16 %v3038, %v3032
        %v3213 = vpack.c.b16 %v3039, %v3033
        %v3214 = vpack.c.b16 %v3040, %v3034
        %v3215 = vpack.c.b16 %v3041, %v3035
        %v3216 = vpack.c.b16 %v3048, %v3042
        %v3217 = vpack.c.b16 %v3049, %v3043
        %v3218 = vpack.c.b16 %v3050, %v3044
        %v3219 = vpack.c.b16 %v3051, %v3045
        %v3220 = vpack.c.b16 %v3052, %v3046
        %v3221 = vpack.c.b16 %v3053, %v3047
        %v3222 = vpack.c.b16 %v3060, %v3054
        %v3223 = vpack.c.b16 %v3061, %v3055
        %v3224 = vpack.c.b16 %v3062, %v3056
        %v3225 = vpack.c.b16 %v3063, %v3057
        %v3226 = vpack.c.b16 %v3064, %v3058
        %v3227 = vpack.c.b16 %v3065, %v3059
        %v3228 = vpack.c.b16 %v3072, %v3066
        %v3229 = vpack.c.b16 %v3073, %v3067
        %v3230 = vpack.c.b16 %v3074, %v3068
        %v3231 = vpack.c.b16 %v3075, %v3069
        %v3232 = vpack.c.b16 %v3076, %v3070
        %v3233 = vpack.c.b16 %v3077, %v3071
        %v3234 = vpack.c.b16 %v3084, %v3078
        %v3235 = vpack.c.b16 %v3085, %v3079
        %v3236 = vpack.c.b16 %v3086, %v3080
        %v3237 = vpack.c.b16 %v3087, %v3081
        %v3238 = vpack.c.b16 %v3088, %v3082
        %v3239 = vpack.c.b16 %v3089, %v3083
        %v3240 = vpack.c.b16 %v3096, %v3090
        %v3241 = vpack.c.b16 %v3097, %v3091
        %v3242 = vpack.c.b16 %v3098, %v3092
        %v3243 = vpack.c.b16 %v3099, %v3093
        %v3244 = vpack.c.b16 %v3100, %v3094
        %v3245 = vpack.c.b16 %v3101, %v3095
        %v3246 = vpack.c.b16 %v3108, %v3102
        %v3247 = vpack.c.b16 %v3109, %v3103
        %v3248 = vpack.c.b16 %v3110, %v3104
        %v3249 = vpack.c.b16 %v3111, %v3105
        %v3250 = vpack.c.b16 %v3112, %v3106
        %v3251 = vpack.c.b16 %v3113, %v3107
        %v3252 = vpack.c.b16 %v3120, %v3114
        %v3253 = vpack.c.b16 %v3121, %v3115
        %v3254 = vpack.c.b16 %v3122, %v3116
        %v3255 = vpack.c.b16 %v3123, %v3117
        %v3256 = vpack.c.b16 %v3124, %v3118
        %v3257 = vpack.c.b16 %v3125, %v3119
        %v3258 = vpack.c.b16 %v3132, %v3126
        %v3259 = vpack.c.b16 %v3133, %v3127
        %v3260 = vpack.c.b16 %v3134, %v3128
        %v3261 = vpack.c.b16 %v3135, %v3129
        %v3262 = vpack.c.b16 %v3136, %v3130
        %v3263 = vpack.c.b16 %v3137, %v3131
        %v3264 = vpack.c.b16 %v3144, %v3138
        %v3265 = vpack.c.b16 %v3145, %v3139
        %v3266 = vpack.c.b16 %v3146, %v3140
        %v3267 = vpack.c.b16 %v3147, %v3141
        %v3268 = vpack.c.b16 %v3148, %v3142
        %v3269 = vpack.c.b16 %v3149, %v3143
        %v3270 = vpack.c.b16 %v3156, %v3150
        %v3271 = vpack.c.b16 %v3157, %v3151
        %v3272 = vpack.c.b16 %v3158, %v3152
        %v3273 = vpack.c.b16 %v3159, %v3153
        %v3274 = vpack.c.b16 %v3160, %v3154
        %v3275 = vpack.c.b16 %v3161, %v3155
        %v3276 = vpack.c.b16 %v3168, %v3162
        %v3277 = vpack.c.b16 %v3169, %v3163
        %v3278 = vpack.c.b16 %v3170, %v3164
        %v3279 = vpack.c.b16 %v3171, %v3165
        %v3280 = vpack.c.b16 %v3172, %v3166
        %v3281 = vpack.c.b16 %v3173, %v3167
        %v3391 = vsel %vm1441, %v2842, 0
        %v3394 = vsel %vm1441, %v2845, 0
        %3396 = vmatprep.subr.bf16.mxu0 %v3175
        %3397 = vmatpush1.bf16.msra.mxu0 %v3174
        %3398 = vmatprep.subr.bf16.mxu0 %v3181
        %3399 = vmatpush1.bf16.msra.mxu0 %v3180
        %3400 = vmatprep.subr.bf16.mxu0 %v3187
        %3401 = vmatpush1.bf16.msra.mxu0 %v3186
        %3402 = vmatprep.subr.bf16.mxu0 %v3193
        %3403 = vmatpush1.bf16.msra.mxu0 %v3192
        %3404 = vmatprep.subr.bf16.mxu0 %v3199
        %3405 = vmatpush1.bf16.msra.mxu0 %v3198
        %3406 = vmatprep.subr.bf16.mxu0 %v3205
        %3407 = vmatpush1.bf16.msra.mxu0 %v3204
        %3408 = vmatprep.subr.bf16.mxu0 %v3211
        %3409 = vmatpush1.bf16.msra.mxu0 %v3210
        %3410 = vmatprep.subr.bf16.mxu0 %v3217
        %3411 = vmatpush1.bf16.msra.mxu0 %v3216
        %3412 = vmatprep.subr.bf16.mxu0 %v3223
        %3413 = vmatpush1.bf16.msra.mxu0 %v3222
        %3414 = vmatprep.subr.bf16.mxu0 %v3229
        %3415 = vmatpush1.bf16.msra.mxu0 %v3228
        %3416 = vmatprep.subr.bf16.mxu0 %v3235
        %3417 = vmatpush1.bf16.msra.mxu0 %v3234
        %3418 = vmatprep.subr.bf16.mxu0 %v3241
        %3419 = vmatpush1.bf16.msra.mxu0 %v3240
        %3420 = vmatprep.subr.bf16.mxu0 %v3247
        %3421 = vmatpush1.bf16.msra.mxu0 %v3246
        %3422 = vmatprep.subr.bf16.mxu0 %v3253
        %3423 = vmatpush1.bf16.msra.mxu0 %v3252
        %3424 = vmatprep.subr.bf16.mxu0 %v3259
        %3425 = vmatpush1.bf16.msra.mxu0 %v3258
        %3426 = vmatprep.subr.bf16.mxu0 %v3265
        %3427 = vmatpush1.bf16.msra.mxu0 %v3264
        %3428 = vmatprep.mubr.bf16.mxu0 %v2841
        %3429 = vmatmul.mubr.bf16.gmra.mrb[0].mxu0 %v2840
        %v3430 = vpop.f32.mrb[0].mxu0
        %v3431 = vadd.f32 0.0, %v3430
        %v3432 = vpop.f32.mrb[0].mxu0
        %v3433 = vadd.f32 0.0, %v3432
        %v3434 = vpop.f32.mrb[0].mxu0
        %v3435 = vadd.f32 0.0, %v3434
        %v3436 = vpop.f32.mrb[0].mxu0
        %v3437 = vadd.f32 0.0, %v3436
        %3438 = vmatprep.mubr.bf16.mxu0 %v2844
        %3439 = vmatmul.mubr.bf16.gmra.mrb[0].mxu0 %v2843
        %v3440 = vpop.f32.mrb[0].mxu0
        %v3441 = vadd.f32 0.0, %v3440
        %v3442 = vpop.f32.mrb[0].mxu0
        %v3443 = vadd.f32 0.0, %v3442
        %v3444 = vpop.f32.mrb[0].mxu0
        %v3445 = vadd.f32 0.0, %v3444
        %v3446 = vpop.f32.mrb[0].mxu0
        %v3447 = vadd.f32 0.0, %v3446
        %3448 = vdwg.mxu0
        %3449 = vmatprep.subr.bf16.mxu0 %v3271
        %3450 = vmatpush1.bf16.msra.mxu0 %v3270
        %3451 = vmatprep.subr.bf16.mxu0 %v3277
        %3452 = vmatpush1.bf16.msra.mxu0 %v3276
        %3453 = vmatprep.subr.bf16.mxu0 0
        %3454 = vmatpush1.bf16.msra.mxu0 0
        %3455 = vmatprep.subr.bf16.mxu0 0
        %3456 = vmatpush1.bf16.msra.mxu0 0
        %3457 = vmatprep.subr.bf16.mxu0 0
        %3458 = vmatpush1.bf16.msra.mxu0 0
        %3459 = vmatprep.subr.bf16.mxu0 0
        %3460 = vmatpush1.bf16.msra.mxu0 0
        %3461 = vmatprep.subr.bf16.mxu0 0
        %3462 = vmatpush1.bf16.msra.mxu0 0
        %3463 = vmatprep.subr.bf16.mxu0 0
        %3464 = vmatpush1.bf16.msra.mxu0 0
        %3465 = vmatprep.subr.bf16.mxu0 0
        %3466 = vmatpush1.bf16.msra.mxu0 0
        %3467 = vmatprep.subr.bf16.mxu0 0
        %3468 = vmatpush1.bf16.msra.mxu0 0
        %3469 = vmatprep.subr.bf16.mxu0 0
        %3470 = vmatpush1.bf16.msra.mxu0 0
        %3471 = vmatprep.subr.bf16.mxu0 0
        %3472 = vmatpush1.bf16.msra.mxu0 0
        %3473 = vmatprep.subr.bf16.mxu0 0
        %3474 = vmatpush1.bf16.msra.mxu0 0
        %3475 = vmatprep.subr.bf16.mxu0 0
        %3476 = vmatpush1.bf16.msra.mxu0 0
        %3477 = vmatprep.subr.bf16.mxu0 0
        %3478 = vmatpush1.bf16.msra.mxu0 0
        %3479 = vmatprep.subr.bf16.mxu0 0
        %3480 = vmatpush1.bf16.msra.mxu0 0
        %3481 = vmatprep.mubr.bf16.mxu0 0
        %3482 = vmatmul.mubr.bf16.gmra.mrb[0].mxu0 %v3391
        %v3483 = vpop.f32.mrb[0].mxu0
        %v3484 = vadd.f32 %v3431, %v3483
        %v3485 = vpop.f32.mrb[0].mxu0
        %v3486 = vadd.f32 %v3433, %v3485
        %v3487 = vpop.f32.mrb[0].mxu0
        %v3488 = vadd.f32 %v3435, %v3487
        %v3489 = vpop.f32.mrb[0].mxu0
        %v3490 = vadd.f32 %v3437, %v3489
        %3491 = vmatprep.mubr.bf16.mxu0 0
        %3492 = vmatmul.mubr.bf16.gmra.mrb[0].mxu0 %v3394
        %v3493 = vpop.f32.mrb[0].mxu0
        %v3494 = vadd.f32 %v3441, %v3493
        %v3495 = vpop.f32.mrb[0].mxu0
        %v3496 = vadd.f32 %v3443, %v3495
        %v3497 = vpop.f32.mrb[0].mxu0
        %v3498 = vadd.f32 %v3445, %v3497
        %v3499 = vpop.f32.mrb[0].mxu0
        %v3500 = vadd.f32 %v3447, %v3499
        %3501 = vdwg.mxu0
        %3502 = vmatprep.subr.bf16.mxu0 %v3177
        %3503 = vmatpush1.bf16.msra.mxu0 %v3176
        %3504 = vmatprep.subr.bf16.mxu0 %v3183
        %3505 = vmatpush1.bf16.msra.mxu0 %v3182
        %3506 = vmatprep.subr.bf16.mxu0 %v3189
        %3507 = vmatpush1.bf16.msra.mxu0 %v3188
        %3508 = vmatprep.subr.bf16.mxu0 %v3195
        %3509 = vmatpush1.bf16.msra.mxu0 %v3194
        %3510 = vmatprep.subr.bf16.mxu0 %v3201
        %3511 = vmatpush1.bf16.msra.mxu0 %v3200
        %3512 = vmatprep.subr.bf16.mxu0 %v3207
        %3513 = vmatpush1.bf16.msra.mxu0 %v3206
        %3514 = vmatprep.subr.bf16.mxu0 %v3213
        %3515 = vmatpush1.bf16.msra.mxu0 %v3212
        %3516 = vmatprep.subr.bf16.mxu0 %v3219
        %3517 = vmatpush1.bf16.msra.mxu0 %v3218
        %3518 = vmatprep.subr.bf16.mxu0 %v3225
        %3519 = vmatpush1.bf16.msra.mxu0 %v3224
        %3520 = vmatprep.subr.bf16.mxu0 %v3231
        %3521 = vmatpush1.bf16.msra.mxu0 %v3230
        %3522 = vmatprep.subr.bf16.mxu0 %v3237
        %3523 = vmatpush1.bf16.msra.mxu0 %v3236
        %3524 = vmatprep.subr.bf16.mxu0 %v3243
        %3525 = vmatpush1.bf16.msra.mxu0 %v3242
        %3526 = vmatprep.subr.bf16.mxu0 %v3249
        %3527 = vmatpush1.bf16.msra.mxu0 %v3248
        %3528 = vmatprep.subr.bf16.mxu0 %v3255
        %3529 = vmatpush1.bf16.msra.mxu0 %v3254
        %3530 = vmatprep.subr.bf16.mxu0 %v3261
        %3531 = vmatpush1.bf16.msra.mxu0 %v3260
        %3532 = vmatprep.subr.bf16.mxu0 %v3267
        %3533 = vmatpush1.bf16.msra.mxu0 %v3266
        %3534 = vmatprep.mubr.bf16.mxu0 %v2841
        %3535 = vmatmul.mubr.bf16.gmra.mrb[0].mxu0 %v2840
        %v3536 = vpop.f32.mrb[0].mxu0
        %v3537 = vadd.f32 0.0, %v3536
        %v3538 = vpop.f32.mrb[0].mxu0
        %v3539 = vadd.f32 0.0, %v3538
        %v3540 = vpop.f32.mrb[0].mxu0
        %v3541 = vadd.f32 0.0, %v3540
        %v3542 = vpop.f32.mrb[0].mxu0
        %v3543 = vadd.f32 0.0, %v3542
        %3544 = vmatprep.mubr.bf16.mxu0 %v2844
        %3545 = vmatmul.mubr.bf16.gmra.mrb[0].mxu0 %v2843
        %v3546 = vpop.f32.mrb[0].mxu0
        %v3547 = vadd.f32 0.0, %v3546
        %v3548 = vpop.f32.mrb[0].mxu0
        %v3549 = vadd.f32 0.0, %v3548
        %v3550 = vpop.f32.mrb[0].mxu0
        %v3551 = vadd.f32 0.0, %v3550
        %v3552 = vpop.f32.mrb[0].mxu0
        %v3553 = vadd.f32 0.0, %v3552
        %3554 = vdwg.mxu0
        %3555 = vmatprep.subr.bf16.mxu0 %v3273
        %3556 = vmatpush1.bf16.msra.mxu0 %v3272
        %3557 = vmatprep.subr.bf16.mxu0 %v3279
        %3558 = vmatpush1.bf16.msra.mxu0 %v3278
        %3559 = vmatprep.subr.bf16.mxu0 0
        %3560 = vmatpush1.bf16.msra.mxu0 0
        %3561 = vmatprep.subr.bf16.mxu0 0
        %3562 = vmatpush1.bf16.msra.mxu0 0
        %3563 = vmatprep.subr.bf16.mxu0 0
        %3564 = vmatpush1.bf16.msra.mxu0 0
        %3565 = vmatprep.subr.bf16.mxu0 0
        %3566 = vmatpush1.bf16.msra.mxu0 0
        %3567 = vmatprep.subr.bf16.mxu0 0
        %3568 = vmatpush1.bf16.msra.mxu0 0
        %3569 = vmatprep.subr.bf16.mxu0 0
        %3570 = vmatpush1.bf16.msra.mxu0 0
        %3571 = vmatprep.subr.bf16.mxu0 0
        %3572 = vmatpush1.bf16.msra.mxu0 0
        %3573 = vmatprep.subr.bf16.mxu0 0
        %3574 = vmatpush1.bf16.msra.mxu0 0
        %3575 = vmatprep.subr.bf16.mxu0 0
        %3576 = vmatpush1.bf16.msra.mxu0 0
        %3577 = vmatprep.subr.bf16.mxu0 0
        %3578 = vmatpush1.bf16.msra.mxu0 0
        %3579 = vmatprep.subr.bf16.mxu0 0
        %3580 = vmatpush1.bf16.msra.mxu0 0
        %3581 = vmatprep.subr.bf16.mxu0 0
        %3582 = vmatpush1.bf16.msra.mxu0 0
        %3583 = vmatprep.subr.bf16.mxu0 0
        %3584 = vmatpush1.bf16.msra.mxu0 0
        %3585 = vmatprep.subr.bf16.mxu0 0
        %3586 = vmatpush1.bf16.msra.mxu0 0
        %3587 = vmatprep.mubr.bf16.mxu0 0
        %3588 = vmatmul.mubr.bf16.gmra.mrb[0].mxu0 %v3391
        %v3589 = vpop.f32.mrb[0].mxu0
        %v3590 = vadd.f32 %v3537, %v3589
        %v3591 = vpop.f32.mrb[0].mxu0
        %v3592 = vadd.f32 %v3539, %v3591
        %v3593 = vpop.f32.mrb[0].mxu0
        %v3594 = vadd.f32 %v3541, %v3593
        %v3595 = vpop.f32.mrb[0].mxu0
        %v3596 = vadd.f32 %v3543, %v3595
        %3597 = vmatprep.mubr.bf16.mxu0 0
        %3598 = vmatmul.mubr.bf16.gmra.mrb[0].mxu0 %v3394
        %v3599 = vpop.f32.mrb[0].mxu0
        %v3600 = vadd.f32 %v3547, %v3599
        %v3601 = vpop.f32.mrb[0].mxu0
        %v3602 = vadd.f32 %v3549, %v3601
        %v3603 = vpop.f32.mrb[0].mxu0
        %v3604 = vadd.f32 %v3551, %v3603
        %v3605 = vpop.f32.mrb[0].mxu0
        %v3606 = vadd.f32 %v3553, %v3605
        %3607 = vdwg.mxu0
        %3608 = vmatprep.subr.bf16.mxu0 %v3179
        %3609 = vmatpush1.bf16.msra.mxu0 %v3178
        %3610 = vmatprep.subr.bf16.mxu0 %v3185
        %3611 = vmatpush1.bf16.msra.mxu0 %v3184
        %3612 = vmatprep.subr.bf16.mxu0 %v3191
        %3613 = vmatpush1.bf16.msra.mxu0 %v3190
        %3614 = vmatprep.subr.bf16.mxu0 %v3197
        %3615 = vmatpush1.bf16.msra.mxu0 %v3196
        %3616 = vmatprep.subr.bf16.mxu0 %v3203
        %3617 = vmatpush1.bf16.msra.mxu0 %v3202
        %3618 = vmatprep.subr.bf16.mxu0 %v3209
        %3619 = vmatpush1.bf16.msra.mxu0 %v3208
        %3620 = vmatprep.subr.bf16.mxu0 %v3215
        %3621 = vmatpush1.bf16.msra.mxu0 %v3214
        %3622 = vmatprep.subr.bf16.mxu0 %v3221
        %3623 = vmatpush1.bf16.msra.mxu0 %v3220
        %3624 = vmatprep.subr.bf16.mxu0 %v3227
        %3625 = vmatpush1.bf16.msra.mxu0 %v3226
        %3626 = vmatprep.subr.bf16.mxu0 %v3233
        %3627 = vmatpush1.bf16.msra.mxu0 %v3232
        %3628 = vmatprep.subr.bf16.mxu0 %v3239
        %3629 = vmatpush1.bf16.msra.mxu0 %v3238
        %3630 = vmatprep.subr.bf16.mxu0 %v3245
        %3631 = vmatpush1.bf16.msra.mxu0 %v3244
        %3632 = vmatprep.subr.bf16.mxu0 %v3251
        %3633 = vmatpush1.bf16.msra.mxu0 %v3250
        %3634 = vmatprep.subr.bf16.mxu0 %v3257
        %3635 = vmatpush1.bf16.msra.mxu0 %v3256
        %3636 = vmatprep.subr.bf16.mxu0 %v3263
        %3637 = vmatpush1.bf16.msra.mxu0 %v3262
        %3638 = vmatprep.subr.bf16.mxu0 %v3269
        %3639 = vmatpush1.bf16.msra.mxu0 %v3268
        %3640 = vmatprep.mubr.bf16.mxu0 %v2841
        %3641 = vmatmul.mubr.bf16.gmra.mrb[0].mxu0 %v2840
        %v3642 = vpop.f32.mrb[0].mxu0
        %v3643 = vadd.f32 0.0, %v3642
        %v3644 = vpop.f32.mrb[0].mxu0
        %v3645 = vadd.f32 0.0, %v3644
        %v3646 = vpop.f32.mrb[0].mxu0
        %v3647 = vadd.f32 0.0, %v3646
        %v3648 = vpop.f32.mrb[0].mxu0
        %v3649 = vadd.f32 0.0, %v3648
        %3650 = vmatprep.mubr.bf16.mxu0 %v2844
        %3651 = vmatmul.mubr.bf16.gmra.mrb[0].mxu0 %v2843
        %v3652 = vpop.f32.mrb[0].mxu0
        %v3653 = vadd.f32 0.0, %v3652
        %v3654 = vpop.f32.mrb[0].mxu0
        %v3655 = vadd.f32 0.0, %v3654
        %v3656 = vpop.f32.mrb[0].mxu0
        %v3657 = vadd.f32 0.0, %v3656
        %v3658 = vpop.f32.mrb[0].mxu0
        %v3659 = vadd.f32 0.0, %v3658
        %3660 = vdwg.mxu0
        %3661 = vmatprep.subr.bf16.mxu0 %v3275
        %3662 = vmatpush1.bf16.msra.mxu0 %v3274
        %3663 = vmatprep.subr.bf16.mxu0 %v3281
        %3664 = vmatpush1.bf16.msra.mxu0 %v3280
        %3665 = vmatprep.subr.bf16.mxu0 0
        %3666 = vmatpush1.bf16.msra.mxu0 0
        %3667 = vmatprep.subr.bf16.mxu0 0
        %3668 = vmatpush1.bf16.msra.mxu0 0
        %3669 = vmatprep.subr.bf16.mxu0 0
        %3670 = vmatpush1.bf16.msra.mxu0 0
        %3671 = vmatprep.subr.bf16.mxu0 0
        %3672 = vmatpush1.bf16.msra.mxu0 0
        %3673 = vmatprep.subr.bf16.mxu0 0
        %3674 = vmatpush1.bf16.msra.mxu0 0
        %3675 = vmatprep.subr.bf16.mxu0 0
        %3676 = vmatpush1.bf16.msra.mxu0 0
        %3677 = vmatprep.subr.bf16.mxu0 0
        %3678 = vmatpush1.bf16.msra.mxu0 0
        %3679 = vmatprep.subr.bf16.mxu0 0
        %3680 = vmatpush1.bf16.msra.mxu0 0
        %3681 = vmatprep.subr.bf16.mxu0 0
        %3682 = vmatpush1.bf16.msra.mxu0 0
        %3683 = vmatprep.subr.bf16.mxu0 0
        %3684 = vmatpush1.bf16.msra.mxu0 0
        %3685 = vmatprep.subr.bf16.mxu0 0
        %3686 = vmatpush1.bf16.msra.mxu0 0
        %3687 = vmatprep.subr.bf16.mxu0 0
        %3688 = vmatpush1.bf16.msra.mxu0 0
        %3689 = vmatprep.subr.bf16.mxu0 0
        %3690 = vmatpush1.bf16.msra.mxu0 0
        %3691 = vmatprep.subr.bf16.mxu0 0
        %3692 = vmatpush1.bf16.msra.mxu0 0
        %3693 = vmatprep.mubr.bf16.mxu0 0
        %3694 = vmatmul.mubr.bf16.gmra.mrb[0].mxu0 %v3391
        %v3695 = vpop.f32.mrb[0].mxu0
        %v3696 = vadd.f32 %v3643, %v3695
        %v3697 = vpop.f32.mrb[0].mxu0
        %v3698 = vadd.f32 %v3645, %v3697
        %v3699 = vpop.f32.mrb[0].mxu0
        %v3700 = vadd.f32 %v3647, %v3699
        %v3701 = vpop.f32.mrb[0].mxu0
        %v3702 = vadd.f32 %v3649, %v3701
        %3703 = vmatprep.mubr.bf16.mxu0 0
        %3704 = vmatmul.mubr.bf16.gmra.mrb[0].mxu0 %v3394
        %v3705 = vpop.f32.mrb[0].mxu0
        %v3706 = vadd.f32 %v3653, %v3705
        %v3707 = vpop.f32.mrb[0].mxu0
        %v3708 = vadd.f32 %v3655, %v3707
        %v3709 = vpop.f32.mrb[0].mxu0
        %v3710 = vadd.f32 %v3657, %v3709
        %v3711 = vpop.f32.mrb[0].mxu0
        %v3712 = vadd.f32 %v3659, %v3711
        %3713 = vdwg.mxu0
        %v3714 = vadd.f32 %v2430, %v3484
        %v3715 = vadd.f32 %v2432, %v3486
        %v3716 = vadd.f32 %v2536, %v3590
        %v3717 = vadd.f32 %v2538, %v3592
        %v3718 = vadd.f32 %v2642, %v3696
        %v3719 = vadd.f32 %v2644, %v3698
        %v3720 = vadd.f32 %v2434, %v3488
        %v3721 = vadd.f32 %v2436, %v3490
        %v3722 = vadd.f32 %v2540, %v3594
        %v3723 = vadd.f32 %v2542, %v3596
        %v3724 = vadd.f32 %v2646, %v3700
        %v3725 = vadd.f32 %v2648, %v3702
        %v3726 = vadd.f32 %v2440, %v3494
        %v3727 = vadd.f32 %v2442, %v3496
        %v3728 = vadd.f32 %v2546, %v3600
        %v3729 = vadd.f32 %v2548, %v3602
        %v3730 = vadd.f32 %v2652, %v3706
        %v3731 = vadd.f32 %v2654, %v3708
        %v3732 = vadd.f32 %v2444, %v3498
        %v3733 = vadd.f32 %v2446, %v3500
        %v3734 = vadd.f32 %v2550, %v3604
        %v3735 = vadd.f32 %v2552, %v3606
        %v3736 = vadd.f32 %v2656, %v3710
        %v3737 = vadd.f32 %v2658, %v3712
        %v3738 = vld [vmem:[#allocation11] sm:$0x3f]
        %v3740 = vlaneseq
        %v3741 = vshrl.u32 %v3740, 7
        %v3742 = vsub.s32 0, %v3741
        %v3743 = vrot.slane %v3738, %v3742
        %v3744 = vlaneseq
        %v3745 = vshrl.u32 %v3744, 7
        %v3746 = vsub.s32 1, %v3745
        %v3747 = vrot.slane %v3738, %v3746
        %v3748 = vlaneseq
        %v3749 = vshrl.u32 %v3748, 7
        %v3750 = vsub.s32 2, %v3749
        %v3751 = vrot.slane %v3738, %v3750
        %v3752 = vlaneseq
        %v3753 = vshrl.u32 %v3752, 7
        %v3754 = vsub.s32 3, %v3753
        %v3755 = vrot.slane %v3738, %v3754
        %v3756 = vlaneseq
        %v3757 = vshrl.u32 %v3756, 7
        %v3758 = vsub.s32 4, %v3757
        %v3759 = vrot.slane %v3738, %v3758
        %v3760 = vlaneseq
        %v3761 = vshrl.u32 %v3760, 7
        %v3762 = vsub.s32 5, %v3761
        %v3763 = vrot.slane %v3738, %v3762
        %v3770 = vadd.f32 %v3714, %v3743
        %v3771 = vadd.f32 %v3715, %v3747
        %v3772 = vadd.f32 %v3716, %v3751
        %v3773 = vadd.f32 %v3717, %v3755
        %v3774 = vadd.f32 %v3718, %v3759
        %v3775 = vadd.f32 %v3719, %v3763
        %v3776 = vadd.f32 %v3720, %v3743
        %v3777 = vadd.f32 %v3721, %v3747
        %v3778 = vadd.f32 %v3722, %v3751
        %v3779 = vadd.f32 %v3723, %v3755
        %v3780 = vadd.f32 %v3724, %v3759
        %v3781 = vadd.f32 %v3725, %v3763
        %v3782 = vadd.f32 %v3726, %v3743
        %v3783 = vadd.f32 %v3727, %v3747
        %v3784 = vadd.f32 %v3728, %v3751
        %v3785 = vadd.f32 %v3729, %v3755
        %v3786 = vadd.f32 %v3730, %v3759
        %v3787 = vadd.f32 %v3731, %v3763
        %v3788 = vadd.f32 %v3732, %v3743
        %v3789 = vadd.f32 %v3733, %v3747
        %v3790 = vadd.f32 %v3734, %v3751
        %v3791 = vadd.f32 %v3735, %v3755
        %v3792 = vadd.f32 %v3736, %v3759
        %v3793 = vadd.f32 %v3737, %v3763
        %v3794 = vxor.u32 %v3770, 2147483648
        %v3795 = vxor.u32 %v3771, 2147483648
        %v3796 = vxor.u32 %v3776, 2147483648
        %v3797 = vxor.u32 %v3777, 2147483648
        %v3798 = vxor.u32 %v3782, 2147483648
        %v3799 = vxor.u32 %v3783, 2147483648
        %v3800 = vxor.u32 %v3788, 2147483648
        %v3801 = vxor.u32 %v3789, 2147483648
        %v3802 = vmul.f32 %v3794, 1.442695
        %v3803 = vpow.pop %v3802
        %v3804 = vmul.f32 %v3795, 1.442695
        %v3805 = vpow.pop %v3804
        %v3806 = vmul.f32 %v3796, 1.442695
        %v3807 = vpow.pop %v3806
        %v3808 = vmul.f32 %v3797, 1.442695
        %v3809 = vpow.pop %v3808
        %v3810 = vmul.f32 %v3798, 1.442695
        %v3811 = vpow.pop %v3810
        %v3812 = vmul.f32 %v3799, 1.442695
        %v3813 = vpow.pop %v3812
        %v3814 = vmul.f32 %v3800, 1.442695
        %v3815 = vpow.pop %v3814
        %v3816 = vmul.f32 %v3801, 1.442695
        %v3817 = vpow.pop %v3816
        %v3818 = vadd.f32 %v3803, 1.0
        %v3819 = vadd.f32 %v3805, 1.0
        %v3820 = vadd.f32 %v3807, 1.0
        %v3821 = vadd.f32 %v3809, 1.0
        %v3822 = vadd.f32 %v3811, 1.0
        %v3823 = vadd.f32 %v3813, 1.0
        %v3824 = vadd.f32 %v3815, 1.0
        %v3825 = vadd.f32 %v3817, 1.0
        %v3826 = vrcp.pop %v3818
        %v3827 = vmul.f32 1.0, %v3826
        %v3828 = vrcp.pop %v3819
        %v3829 = vmul.f32 1.0, %v3828
        %v3830 = vrcp.pop %v3820
        %v3831 = vmul.f32 1.0, %v3830
        %v3832 = vrcp.pop %v3821
        %v3833 = vmul.f32 1.0, %v3832
        %v3834 = vrcp.pop %v3822
        %v3835 = vmul.f32 1.0, %v3834
        %v3836 = vrcp.pop %v3823
        %v3837 = vmul.f32 1.0, %v3836
        %v3838 = vrcp.pop %v3824
        %v3839 = vmul.f32 1.0, %v3838
        %v3840 = vrcp.pop %v3825
        %v3841 = vmul.f32 1.0, %v3840
        %v3842 = vxor.u32 %v3772, 2147483648
        %v3843 = vxor.u32 %v3773, 2147483648
        %v3844 = vxor.u32 %v3778, 2147483648
        %v3845 = vxor.u32 %v3779, 2147483648
        %v3846 = vxor.u32 %v3784, 2147483648
        %v3847 = vxor.u32 %v3785, 2147483648
        %v3848 = vxor.u32 %v3790, 2147483648
        %v3849 = vxor.u32 %v3791, 2147483648
        %v3850 = vmul.f32 %v3842, 1.442695
        %v3851 = vpow.pop %v3850
        %v3852 = vmul.f32 %v3843, 1.442695
        %v3853 = vpow.pop %v3852
        %v3854 = vmul.f32 %v3844, 1.442695
        %v3855 = vpow.pop %v3854
        %v3856 = vmul.f32 %v3845, 1.442695
        %v3857 = vpow.pop %v3856
        %v3858 = vmul.f32 %v3846, 1.442695
        %v3859 = vpow.pop %v3858
        %v3860 = vmul.f32 %v3847, 1.442695
        %v3861 = vpow.pop %v3860
        %v3862 = vmul.f32 %v3848, 1.442695
        %v3863 = vpow.pop %v3862
        %v3864 = vmul.f32 %v3849, 1.442695
        %v3865 = vpow.pop %v3864
        %v3866 = vadd.f32 %v3851, 1.0
        %v3867 = vadd.f32 %v3853, 1.0
        %v3868 = vadd.f32 %v3855, 1.0
        %v3869 = vadd.f32 %v3857, 1.0
        %v3870 = vadd.f32 %v3859, 1.0
        %v3871 = vadd.f32 %v3861, 1.0
        %v3872 = vadd.f32 %v3863, 1.0
        %v3873 = vadd.f32 %v3865, 1.0
        %v3874 = vrcp.pop %v3866
        %v3875 = vmul.f32 1.0, %v3874
        %v3876 = vrcp.pop %v3867
        %v3877 = vmul.f32 1.0, %v3876
        %v3878 = vrcp.pop %v3868
        %v3879 = vmul.f32 1.0, %v3878
        %v3880 = vrcp.pop %v3869
        %v3881 = vmul.f32 1.0, %v3880
        %v3882 = vrcp.pop %v3870
        %v3883 = vmul.f32 1.0, %v3882
        %v3884 = vrcp.pop %v3871
        %v3885 = vmul.f32 1.0, %v3884
        %v3886 = vrcp.pop %v3872
        %v3887 = vmul.f32 1.0, %v3886
        %v3888 = vrcp.pop %v3873
        %v3889 = vmul.f32 1.0, %v3888
        %v3890 = vunpack.c.l.bf16 %v388
        %v3891 = vunpack.c.h.bf16 %v388
        %v3892 = vunpack.c.l.bf16 %v389
        %v3893 = vunpack.c.h.bf16 %v389
        %v3894 = vunpack.c.l.bf16 %v390
        %v3895 = vunpack.c.h.bf16 %v390
        %v3896 = vunpack.c.l.bf16 %v391
        %v3897 = vunpack.c.h.bf16 %v391
        %v3898 = vmul.f32 %v3890, %v3875
        %v3899 = vmul.f32 %v3891, %v3877
        %v3900 = vmul.f32 %v3892, %v3879
        %v3901 = vmul.f32 %v3893, %v3881
        %v3902 = vmul.f32 %v3894, %v3883
        %v3903 = vmul.f32 %v3895, %v3885
        %v3904 = vmul.f32 %v3896, %v3887
        %v3905 = vmul.f32 %v3897, %v3889
        %v3906 = vpack.c.bf16 %v3900, %v3898
        %v3907 = vpack.c.bf16 %v3901, %v3899
        %v3908 = vpack.c.bf16 %v3904, %v3902
        %v3909 = vpack.c.bf16 %v3905, %v3903
        %v3914 = vunpack.c.l.b16 %v3906
        %v3915 = vunpack.c.l.b16 %v3907
        %v3916 = vunpack.c.h.b16 %v3906
        %v3917 = vunpack.c.h.b16 %v3907
        %v3918 = vunpack.c.l.b16 %v3908
        %v3919 = vunpack.c.l.b16 %v3909
        %v3920 = vunpack.c.h.b16 %v3908
        %v3921 = vunpack.c.h.b16 %v3909
        %v3922 = vpack.c.b16 %v3915, %v3914
        %v3923 = vpack.c.b16 %v3917, %v3916
        %v3924 = vpack.c.b16 %v3919, %v3918
        %v3925 = vpack.c.b16 %v3921, %v3920
        %v3927 = vshrl.u32 %v3922, 16
        %v3929 = vrot.slane %v3927, 7
        %v3930 = vshll.u32 %v3922, 16
        %v3932 = vor.u32 %v3929, %v3930
        %v3933 = vrot.slane %v3929, 4
        %v3935 = vshrl.u32 %v3923, 16
        %v3937 = vrot.slane %v3935, 7
        %v3938 = vshll.u32 %v3923, 16
        %v3940 = vor.u32 %v3937, %v3938
        %v3941 = vrot.slane %v3937, 4
        %v3943 = vshrl.u32 %v3924, 16
        %v3945 = vrot.slane %v3943, 7
        %v3946 = vshll.u32 %v3924, 16
        %v3948 = vor.u32 %v3945, %v3946
        %v3949 = vrot.slane %v3945, 4
        %v3951 = vshrl.u32 %v3925, 16
        %v3953 = vrot.slane %v3951, 7
        %v3954 = vshll.u32 %v3925, 16
        %v3956 = vor.u32 %v3953, %v3954
        %v3957 = vrot.slane %v3953, 4
        %v3966 = vld [vmem:[#allocation2] sm:$0xff]
        %v3967 = vsel %vm436, %v3932, %v3966
        %3968 = vst [vmem:[#allocation2] sm:$0xff] %v3967
        %v3969 = vld [vmem:[#allocation2 + $0xc] sm:$0x11]
        %v3970 = vsel %vm331, %v3933, %v3969
        %3971 = vst [vmem:[#allocation2 + $0xc] sm:$0x11] %v3970
        %v3972 = vld [vmem:[#allocation2 + $0x18] sm:$0xff]
        %v3973 = vsel %vm436, %v3940, %v3972
        %3974 = vst [vmem:[#allocation2 + $0x18] sm:$0xff] %v3973
        %v3975 = vld [vmem:[#allocation2 + $0x24] sm:$0x11]
        %v3976 = vsel %vm331, %v3941, %v3975
        %3977 = vst [vmem:[#allocation2 + $0x24] sm:$0x11] %v3976
        %v3978 = vld [vmem:[#allocation2 + $0x30] sm:$0xff]
        %v3979 = vsel %vm436, %v3948, %v3978
        %3980 = vst [vmem:[#allocation2 + $0x30] sm:$0xff] %v3979
        %v3981 = vld [vmem:[#allocation2 + $0x3c] sm:$0x11]
        %v3982 = vsel %vm331, %v3949, %v3981
        %3983 = vst [vmem:[#allocation2 + $0x3c] sm:$0x11] %v3982
        %v3984 = vld [vmem:[#allocation2 + $0x48] sm:$0xff]
        %v3985 = vsel %vm436, %v3956, %v3984
        %3986 = vst [vmem:[#allocation2 + $0x48] sm:$0xff] %v3985
        %v3987 = vld [vmem:[#allocation2 + $0x54] sm:$0x11]
        %v3988 = vsel %vm331, %v3957, %v3987
        %3989 = vst [vmem:[#allocation2 + $0x54] sm:$0x11] %v3988
        %v3990 = vld [vmem:[#allocation2] sm:$0xff]
        %v3991 = vld [vmem:[#allocation2 + $0x18] sm:$0xff]
        %v3992 = vld [vmem:[#allocation2 + $0x30] sm:$0xff]
        %v3993 = vld [vmem:[#allocation2 + $0x48] sm:$0xff]
        %v3994 = vld [vmem:[#allocation9] sm:$0xff]
        %v3995 = vld [vmem:[#allocation9 + $0x8] sm:$0xff]
        %v3996 = vld [vmem:[#allocation9 + $0x10] sm:$0xff]
        %v3997 = vld [vmem:[#allocation9 + $0x18] sm:$0xff]
        %v3998 = vld [vmem:[#allocation9 + $0x20] sm:$0xff]
        %v3999 = vld [vmem:[#allocation9 + $0x28] sm:$0xff]
        %v4000 = vld [vmem:[#allocation9 + $0x30] sm:$0xff]
        %v4001 = vld [vmem:[#allocation9 + $0x38] sm:$0xff]
        %v4002 = vld [vmem:[#allocation9 + $0x40] sm:$0xff]
        %v4003 = vld [vmem:[#allocation9 + $0x48] sm:$0xff]
        %v4004 = vld [vmem:[#allocation9 + $0x50] sm:$0xff]
        %v4005 = vld [vmem:[#allocation9 + $0x58] sm:$0xff]
        %v4006 = vld [vmem:[#allocation9 + $0x60] sm:$0xff]
        %v4007 = vld [vmem:[#allocation9 + $0x68] sm:$0xff]
        %v4008 = vld [vmem:[#allocation9 + $0x70] sm:$0xff]
        %v4009 = vld [vmem:[#allocation9 + $0x78] sm:$0xff]
        %v4010 = vld [vmem:[#allocation9 + $0x80] sm:$0xff]
        %v4011 = vld [vmem:[#allocation9 + $0x88] sm:$0xff]
        %v4012 = vld [vmem:[#allocation9 + $0x90] sm:$0xff]
        %v4013 = vld [vmem:[#allocation9 + $0x98] sm:$0xff]
        %v4014 = vld [vmem:[#allocation9 + $0xa0] sm:$0xff]
        %v4015 = vld [vmem:[#allocation9 + $0xa8] sm:$0xff]
        %v4016 = vld [vmem:[#allocation9 + $0xb0] sm:$0xff]
        %v4017 = vld [vmem:[#allocation9 + $0xb8] sm:$0xff]
        %v4018 = vld [vmem:[#allocation9 + $0xc0] sm:$0xff]
        %v4019 = vld [vmem:[#allocation9 + $0xc8] sm:$0xff]
        %v4020 = vld [vmem:[#allocation9 + $0xd0] sm:$0xff]
        %v4021 = vld [vmem:[#allocation9 + $0xd8] sm:$0xff]
        %v4022 = vld [vmem:[#allocation9 + $0xe0] sm:$0xff]
        %v4023 = vld [vmem:[#allocation9 + $0xe8] sm:$0xff]
        %v4024 = vld [vmem:[#allocation9 + $0xf0] sm:$0xff]
        %v4025 = vld [vmem:[#allocation9 + $0xf8] sm:$0xff]
        %v4030 = vunpack.c.l.b16 %v3990
        %v4031 = vunpack.c.h.b16 %v3990
        %v4032 = vunpack.c.l.b16 %v3991
        %v4033 = vunpack.c.h.b16 %v3991
        %v4034 = vunpack.c.l.b16 %v3992
        %v4035 = vunpack.c.h.b16 %v3992
        %v4036 = vunpack.c.l.b16 %v3993
        %v4037 = vunpack.c.h.b16 %v3993
        %v4038 = vpack.c.b16 %v4032, %v4030
        %v4039 = vpack.c.b16 %v4033, %v4031
        %v4040 = vpack.c.b16 %v4036, %v4034
        %v4041 = vpack.c.b16 %v4037, %v4035
        %v4078 = vunpack.c.l.b16 %v3994
        %v4079 = vunpack.c.h.b16 %v3994
        %v4080 = vunpack.c.l.b16 %v3995
        %v4081 = vunpack.c.h.b16 %v3995
        %v4082 = vunpack.c.l.b16 %v3996
        %v4083 = vunpack.c.h.b16 %v3996
        %v4084 = vunpack.c.l.b16 %v3997
        %v4085 = vunpack.c.h.b16 %v3997
        %v4086 = vunpack.c.l.b16 %v3998
        %v4087 = vunpack.c.h.b16 %v3998
        %v4088 = vunpack.c.l.b16 %v3999
        %v4089 = vunpack.c.h.b16 %v3999
        %v4090 = vunpack.c.l.b16 %v4000
        %v4091 = vunpack.c.h.b16 %v4000
        %v4092 = vunpack.c.l.b16 %v4001
        %v4093 = vunpack.c.h.b16 %v4001
        %v4094 = vunpack.c.l.b16 %v4002
        %v4095 = vunpack.c.h.b16 %v4002
        %v4096 = vunpack.c.l.b16 %v4003
        %v4097 = vunpack.c.h.b16 %v4003
        %v4098 = vunpack.c.l.b16 %v4004
        %v4099 = vunpack.c.h.b16 %v4004
        %v4100 = vunpack.c.l.b16 %v4005
        %v4101 = vunpack.c.h.b16 %v4005
        %v4102 = vunpack.c.l.b16 %v4006
        %v4103 = vunpack.c.h.b16 %v4006
        %v4104 = vunpack.c.l.b16 %v4007
        %v4105 = vunpack.c.h.b16 %v4007
        %v4106 = vunpack.c.l.b16 %v4008
        %v4107 = vunpack.c.h.b16 %v4008
        %v4108 = vunpack.c.l.b16 %v4009
        %v4109 = vunpack.c.h.b16 %v4009
        %v4110 = vunpack.c.l.b16 %v4010
        %v4111 = vunpack.c.h.b16 %v4010
        %v4112 = vunpack.c.l.b16 %v4011
        %v4113 = vunpack.c.h.b16 %v4011
        %v4114 = vunpack.c.l.b16 %v4012
        %v4115 = vunpack.c.h.b16 %v4012
        %v4116 = vunpack.c.l.b16 %v4013
        %v4117 = vunpack.c.h.b16 %v4013
        %v4118 = vunpack.c.l.b16 %v4014
        %v4119 = vunpack.c.h.b16 %v4014
        %v4120 = vunpack.c.l.b16 %v4015
        %v4121 = vunpack.c.h.b16 %v4015
        %v4122 = vunpack.c.l.b16 %v4016
        %v4123 = vunpack.c.h.b16 %v4016
        %v4124 = vunpack.c.l.b16 %v4017
        %v4125 = vunpack.c.h.b16 %v4017
        %v4126 = vunpack.c.l.b16 %v4018
        %v4127 = vunpack.c.h.b16 %v4018
        %v4128 = vunpack.c.l.b16 %v4019
        %v4129 = vunpack.c.h.b16 %v4019
        %v4130 = vunpack.c.l.b16 %v4020
        %v4131 = vunpack.c.h.b16 %v4020
        %v4132 = vunpack.c.l.b16 %v4021
        %v4133 = vunpack.c.h.b16 %v4021
        %v4134 = vunpack.c.l.b16 %v4022
        %v4135 = vunpack.c.h.b16 %v4022
        %v4136 = vunpack.c.l.b16 %v4023
        %v4137 = vunpack.c.h.b16 %v4023
        %v4138 = vunpack.c.l.b16 %v4024
        %v4139 = vunpack.c.h.b16 %v4024
        %v4140 = vunpack.c.l.b16 %v4025
        %v4141 = vunpack.c.h.b16 %v4025
        %v4142 = vpack.c.b16 %v4080, %v4078
        %v4143 = vpack.c.b16 %v4081, %v4079
        %v4144 = vpack.c.b16 %v4084, %v4082
        %v4145 = vpack.c.b16 %v4085, %v4083
        %v4146 = vpack.c.b16 %v4088, %v4086
        %v4147 = vpack.c.b16 %v4089, %v4087
        %v4148 = vpack.c.b16 %v4092, %v4090
        %v4149 = vpack.c.b16 %v4093, %v4091
        %v4150 = vpack.c.b16 %v4096, %v4094
        %v4151 = vpack.c.b16 %v4097, %v4095
        %v4152 = vpack.c.b16 %v4100, %v4098
        %v4153 = vpack.c.b16 %v4101, %v4099
        %v4154 = vpack.c.b16 %v4104, %v4102
        %v4155 = vpack.c.b16 %v4105, %v4103
        %v4156 = vpack.c.b16 %v4108, %v4106
        %v4157 = vpack.c.b16 %v4109, %v4107
        %v4158 = vpack.c.b16 %v4112, %v4110
        %v4159 = vpack.c.b16 %v4113, %v4111
        %v4160 = vpack.c.b16 %v4116, %v4114
        %v4161 = vpack.c.b16 %v4117, %v4115
        %v4162 = vpack.c.b16 %v4120, %v4118
        %v4163 = vpack.c.b16 %v4121, %v4119
        %v4164 = vpack.c.b16 %v4124, %v4122
        %v4165 = vpack.c.b16 %v4125, %v4123
        %v4166 = vpack.c.b16 %v4128, %v4126
        %v4167 = vpack.c.b16 %v4129, %v4127
        %v4168 = vpack.c.b16 %v4132, %v4130
        %v4169 = vpack.c.b16 %v4133, %v4131
        %v4170 = vpack.c.b16 %v4136, %v4134
        %v4171 = vpack.c.b16 %v4137, %v4135
        %v4172 = vpack.c.b16 %v4140, %v4138
        %v4173 = vpack.c.b16 %v4141, %v4139
        %4206 = vmatprep.subr.bf16.mxu0 %v4143
        %4207 = vmatpush1.bf16.msra.mxu0 %v4142
        %4208 = vmatprep.subr.bf16.mxu0 %v4145
        %4209 = vmatpush1.bf16.msra.mxu0 %v4144
        %4210 = vmatprep.subr.bf16.mxu0 %v4147
        %4211 = vmatpush1.bf16.msra.mxu0 %v4146
        %4212 = vmatprep.subr.bf16.mxu0 %v4149
        %4213 = vmatpush1.bf16.msra.mxu0 %v4148
        %4214 = vmatprep.subr.bf16.mxu0 %v4151
        %4215 = vmatpush1.bf16.msra.mxu0 %v4150
        %4216 = vmatprep.subr.bf16.mxu0 %v4153
        %4217 = vmatpush1.bf16.msra.mxu0 %v4152
        %4218 = vmatprep.subr.bf16.mxu0 %v4155
        %4219 = vmatpush1.bf16.msra.mxu0 %v4154
        %4220 = vmatprep.subr.bf16.mxu0 %v4157
        %4221 = vmatpush1.bf16.msra.mxu0 %v4156
        %4222 = vmatprep.subr.bf16.mxu0 %v4159
        %4223 = vmatpush1.bf16.msra.mxu0 %v4158
        %4224 = vmatprep.subr.bf16.mxu0 %v4161
        %4225 = vmatpush1.bf16.msra.mxu0 %v4160
        %4226 = vmatprep.subr.bf16.mxu0 %v4163
        %4227 = vmatpush1.bf16.msra.mxu0 %v4162
        %4228 = vmatprep.subr.bf16.mxu0 %v4165
        %4229 = vmatpush1.bf16.msra.mxu0 %v4164
        %4230 = vmatprep.subr.bf16.mxu0 %v4167
        %4231 = vmatpush1.bf16.msra.mxu0 %v4166
        %4232 = vmatprep.subr.bf16.mxu0 %v4169
        %4233 = vmatpush1.bf16.msra.mxu0 %v4168
        %4234 = vmatprep.subr.bf16.mxu0 %v4171
        %4235 = vmatpush1.bf16.msra.mxu0 %v4170
        %4236 = vmatprep.subr.bf16.mxu0 %v4173
        %4237 = vmatpush1.bf16.msra.mxu0 %v4172
        %4238 = vmatprep.mubr.bf16.mxu0 %v4039
        %4239 = vmatmul.mubr.bf16.gmra.mrb[0].mxu0 %v4038
        %v4240 = vpop.f32.mrb[0].mxu0
        %v4241 = vadd.f32 0.0, %v4240
        %v4242 = vpop.f32.mrb[0].mxu0
        %v4243 = vadd.f32 0.0, %v4242
        %v4244 = vpop.f32.mrb[0].mxu0
        %v4245 = vadd.f32 0.0, %v4244
        %v4246 = vpop.f32.mrb[0].mxu0
        %v4247 = vadd.f32 0.0, %v4246
        %4248 = vmatprep.mubr.bf16.mxu0 %v4041
        %4249 = vmatmul.mubr.bf16.gmra.mrb[0].mxu0 %v4040
        %v4250 = vpop.f32.mrb[0].mxu0
        %v4251 = vadd.f32 0.0, %v4250
        %v4252 = vpop.f32.mrb[0].mxu0
        %v4253 = vadd.f32 0.0, %v4252
        %v4254 = vpop.f32.mrb[0].mxu0
        %v4255 = vadd.f32 0.0, %v4254
        %v4256 = vpop.f32.mrb[0].mxu0
        %v4257 = vadd.f32 0.0, %v4256
        %4258 = vdwg.mxu0
        %v4259 = vadd.f32 %v3774, %v4241
        %v4260 = vadd.f32 %v3775, %v4243
        %v4261 = vadd.f32 %v3780, %v4245
        %v4262 = vadd.f32 %v3781, %v4247
        %v4263 = vadd.f32 %v3786, %v4251
        %v4264 = vadd.f32 %v3787, %v4253
        %v4265 = vadd.f32 %v3792, %v4255
        %v4266 = vadd.f32 %v3793, %v4257
        %v4267 = vld [vmem:[#allocation2] sm:$0xff]
        %v4268 = vld [vmem:[#allocation2 + $0xc] sm:$0x11]
        %v4269 = vld [vmem:[#allocation2 + $0x18] sm:$0xff]
        %v4270 = vld [vmem:[#allocation2 + $0x24] sm:$0x11]
        %v4271 = vld [vmem:[#allocation2 + $0x30] sm:$0xff]
        %v4272 = vld [vmem:[#allocation2 + $0x3c] sm:$0x11]
        %v4273 = vld [vmem:[#allocation2 + $0x48] sm:$0xff]
        %v4274 = vld [vmem:[#allocation2 + $0x54] sm:$0x11]
        %v4276 = vshrl.u32 %v4267, 16
        %v4278 = vrot.slane %v4276, 4
        %v4279 = vshll.u32 %v4267, 16
        %v4281 = vrot.slane %v4279, 5
        %v4282 = vor.u32 %v4278, %v4281
        %v4283 = vrot.slane %v4282, 4
        %v4285 = vshll.u32 %v4268, 16
        %v4287 = vrot.slane %v4285, 5
        %v4288 = vsel %vm657, %v4283, %v4287
        %v4290 = vshrl.u32 %v4269, 16
        %v4292 = vrot.slane %v4290, 4
        %v4293 = vshll.u32 %v4269, 16
        %v4295 = vrot.slane %v4293, 5
        %v4296 = vor.u32 %v4292, %v4295
        %v4297 = vrot.slane %v4296, 4
        %v4299 = vshll.u32 %v4270, 16
        %v4301 = vrot.slane %v4299, 5
        %v4302 = vsel %vm657, %v4297, %v4301
        %v4304 = vshrl.u32 %v4271, 16
        %v4306 = vrot.slane %v4304, 4
        %v4307 = vshll.u32 %v4271, 16
        %v4309 = vrot.slane %v4307, 5
        %v4310 = vor.u32 %v4306, %v4309
        %v4311 = vrot.slane %v4310, 4
        %v4313 = vshll.u32 %v4272, 16
        %v4315 = vrot.slane %v4313, 5
        %v4316 = vsel %vm657, %v4311, %v4315
        %v4318 = vshrl.u32 %v4273, 16
        %v4320 = vrot.slane %v4318, 4
        %v4321 = vshll.u32 %v4273, 16
        %v4323 = vrot.slane %v4321, 5
        %v4324 = vor.u32 %v4320, %v4323
        %v4325 = vrot.slane %v4324, 4
        %v4327 = vshll.u32 %v4274, 16
        %v4329 = vrot.slane %v4327, 5
        %v4330 = vsel %vm657, %v4325, %v4329
        %s4331 = scalar_lea.vmem [#allocation9], 256
        %v4332 = vld [vmem:[%s4331] sm:$0xff]
        %v4333 = vld [vmem:[%s4331 + $0x8] sm:$0xff]
        %v4334 = vld [vmem:[%s4331 + $0x10] sm:$0xff]
        %v4335 = vld [vmem:[%s4331 + $0x18] sm:$0xff]
        %v4336 = vld [vmem:[%s4331 + $0x20] sm:$0xff]
        %v4337 = vld [vmem:[%s4331 + $0x28] sm:$0xff]
        %v4338 = vld [vmem:[%s4331 + $0x30] sm:$0xff]
        %v4339 = vld [vmem:[%s4331 + $0x38] sm:$0xff]
        %v4340 = vld [vmem:[%s4331 + $0x40] sm:$0xff]
        %v4341 = vld [vmem:[%s4331 + $0x48] sm:$0xff]
        %v4342 = vld [vmem:[%s4331 + $0x50] sm:$0xff]
        %v4343 = vld [vmem:[%s4331 + $0x58] sm:$0xff]
        %v4344 = vld [vmem:[%s4331 + $0x60] sm:$0xff]
        %v4345 = vld [vmem:[%s4331 + $0x68] sm:$0xff]
        %v4346 = vld [vmem:[%s4331 + $0x70] sm:$0xff]
        %v4347 = vld [vmem:[%s4331 + $0x78] sm:$0xff]
        %v4348 = vld [vmem:[%s4331 + $0x80] sm:$0xff]
        %v4349 = vld [vmem:[%s4331 + $0x88] sm:$0xff]
        %v4350 = vld [vmem:[%s4331 + $0x90] sm:$0xff]
        %v4351 = vld [vmem:[%s4331 + $0x98] sm:$0xff]
        %v4352 = vld [vmem:[%s4331 + $0xa0] sm:$0xff]
        %v4353 = vld [vmem:[%s4331 + $0xa8] sm:$0xff]
        %v4354 = vld [vmem:[%s4331 + $0xb0] sm:$0xff]
        %v4355 = vld [vmem:[%s4331 + $0xb8] sm:$0xff]
        %v4356 = vld [vmem:[%s4331 + $0xc0] sm:$0xff]
        %v4357 = vld [vmem:[%s4331 + $0xc8] sm:$0xff]
        %v4358 = vld [vmem:[%s4331 + $0xd0] sm:$0xff]
        %v4359 = vld [vmem:[%s4331 + $0xd8] sm:$0xff]
        %v4360 = vld [vmem:[%s4331 + $0xe0] sm:$0xff]
        %v4361 = vld [vmem:[%s4331 + $0xe8] sm:$0xff]
        %v4362 = vld [vmem:[%s4331 + $0xf0] sm:$0xff]
        %v4363 = vld [vmem:[%s4331 + $0xf8] sm:$0xff]
        %v4364 = vunpack.c.l.b16 %v4288
        %v4365 = vunpack.c.h.b16 %v4288
        %v4366 = vunpack.c.l.b16 %v4302
        %v4367 = vunpack.c.h.b16 %v4302
        %v4368 = vunpack.c.l.b16 %v4316
        %v4369 = vunpack.c.h.b16 %v4316
        %v4370 = vunpack.c.l.b16 %v4330
        %v4371 = vunpack.c.h.b16 %v4330
        %v4372 = vpack.c.b16 %v4366, %v4364
        %v4373 = vpack.c.b16 %v4367, %v4365
        %v4374 = vpack.c.b16 %v4370, %v4368
        %v4375 = vpack.c.b16 %v4371, %v4369
        %v4412 = vunpack.c.l.b16 %v4332
        %v4413 = vunpack.c.h.b16 %v4332
        %v4414 = vunpack.c.l.b16 %v4333
        %v4415 = vunpack.c.h.b16 %v4333
        %v4416 = vunpack.c.l.b16 %v4334
        %v4417 = vunpack.c.h.b16 %v4334
        %v4418 = vunpack.c.l.b16 %v4335
        %v4419 = vunpack.c.h.b16 %v4335
        %v4420 = vunpack.c.l.b16 %v4336
        %v4421 = vunpack.c.h.b16 %v4336
        %v4422 = vunpack.c.l.b16 %v4337
        %v4423 = vunpack.c.h.b16 %v4337
        %v4424 = vunpack.c.l.b16 %v4338
        %v4425 = vunpack.c.h.b16 %v4338
        %v4426 = vunpack.c.l.b16 %v4339
        %v4427 = vunpack.c.h.b16 %v4339
        %v4428 = vunpack.c.l.b16 %v4340
        %v4429 = vunpack.c.h.b16 %v4340
        %v4430 = vunpack.c.l.b16 %v4341
        %v4431 = vunpack.c.h.b16 %v4341
        %v4432 = vunpack.c.l.b16 %v4342
        %v4433 = vunpack.c.h.b16 %v4342
        %v4434 = vunpack.c.l.b16 %v4343
        %v4435 = vunpack.c.h.b16 %v4343
        %v4436 = vunpack.c.l.b16 %v4344
        %v4437 = vunpack.c.h.b16 %v4344
        %v4438 = vunpack.c.l.b16 %v4345
        %v4439 = vunpack.c.h.b16 %v4345
        %v4440 = vunpack.c.l.b16 %v4346
        %v4441 = vunpack.c.h.b16 %v4346
        %v4442 = vunpack.c.l.b16 %v4347
        %v4443 = vunpack.c.h.b16 %v4347
        %v4444 = vunpack.c.l.b16 %v4348
        %v4445 = vunpack.c.h.b16 %v4348
        %v4446 = vunpack.c.l.b16 %v4349
        %v4447 = vunpack.c.h.b16 %v4349
        %v4448 = vunpack.c.l.b16 %v4350
        %v4449 = vunpack.c.h.b16 %v4350
        %v4450 = vunpack.c.l.b16 %v4351
        %v4451 = vunpack.c.h.b16 %v4351
        %v4452 = vunpack.c.l.b16 %v4352
        %v4453 = vunpack.c.h.b16 %v4352
        %v4454 = vunpack.c.l.b16 %v4353
        %v4455 = vunpack.c.h.b16 %v4353
        %v4456 = vunpack.c.l.b16 %v4354
        %v4457 = vunpack.c.h.b16 %v4354
        %v4458 = vunpack.c.l.b16 %v4355
        %v4459 = vunpack.c.h.b16 %v4355
        %v4460 = vunpack.c.l.b16 %v4356
        %v4461 = vunpack.c.h.b16 %v4356
        %v4462 = vunpack.c.l.b16 %v4357
        %v4463 = vunpack.c.h.b16 %v4357
        %v4464 = vunpack.c.l.b16 %v4358
        %v4465 = vunpack.c.h.b16 %v4358
        %v4466 = vunpack.c.l.b16 %v4359
        %v4467 = vunpack.c.h.b16 %v4359
        %v4468 = vunpack.c.l.b16 %v4360
        %v4469 = vunpack.c.h.b16 %v4360
        %v4470 = vunpack.c.l.b16 %v4361
        %v4471 = vunpack.c.h.b16 %v4361
        %v4472 = vunpack.c.l.b16 %v4362
        %v4473 = vunpack.c.h.b16 %v4362
        %v4474 = vunpack.c.l.b16 %v4363
        %v4475 = vunpack.c.h.b16 %v4363
        %v4476 = vpack.c.b16 %v4414, %v4412
        %v4477 = vpack.c.b16 %v4415, %v4413
        %v4478 = vpack.c.b16 %v4418, %v4416
        %v4479 = vpack.c.b16 %v4419, %v4417
        %v4480 = vpack.c.b16 %v4422, %v4420
        %v4481 = vpack.c.b16 %v4423, %v4421
        %v4482 = vpack.c.b16 %v4426, %v4424
        %v4483 = vpack.c.b16 %v4427, %v4425
        %v4484 = vpack.c.b16 %v4430, %v4428
        %v4485 = vpack.c.b16 %v4431, %v4429
        %v4486 = vpack.c.b16 %v4434, %v4432
        %v4487 = vpack.c.b16 %v4435, %v4433
        %v4488 = vpack.c.b16 %v4438, %v4436
        %v4489 = vpack.c.b16 %v4439, %v4437
        %v4490 = vpack.c.b16 %v4442, %v4440
        %v4491 = vpack.c.b16 %v4443, %v4441
        %v4492 = vpack.c.b16 %v4446, %v4444
        %v4493 = vpack.c.b16 %v4447, %v4445
        %v4494 = vpack.c.b16 %v4450, %v4448
        %v4495 = vpack.c.b16 %v4451, %v4449
        %v4496 = vpack.c.b16 %v4454, %v4452
        %v4497 = vpack.c.b16 %v4455, %v4453
        %v4498 = vpack.c.b16 %v4458, %v4456
        %v4499 = vpack.c.b16 %v4459, %v4457
        %v4500 = vpack.c.b16 %v4462, %v4460
        %v4501 = vpack.c.b16 %v4463, %v4461
        %v4502 = vpack.c.b16 %v4466, %v4464
        %v4503 = vpack.c.b16 %v4467, %v4465
        %v4504 = vpack.c.b16 %v4470, %v4468
        %v4505 = vpack.c.b16 %v4471, %v4469
        %v4506 = vpack.c.b16 %v4474, %v4472
        %v4507 = vpack.c.b16 %v4475, %v4473
        %4540 = vmatprep.subr.bf16.mxu0 %v4477
        %4541 = vmatpush1.bf16.msra.mxu0 %v4476
        %4542 = vmatprep.subr.bf16.mxu0 %v4479
        %4543 = vmatpush1.bf16.msra.mxu0 %v4478
        %4544 = vmatprep.subr.bf16.mxu0 %v4481
        %4545 = vmatpush1.bf16.msra.mxu0 %v4480
        %4546 = vmatprep.subr.bf16.mxu0 %v4483
        %4547 = vmatpush1.bf16.msra.mxu0 %v4482
        %4548 = vmatprep.subr.bf16.mxu0 %v4485
        %4549 = vmatpush1.bf16.msra.mxu0 %v4484
        %4550 = vmatprep.subr.bf16.mxu0 %v4487
        %4551 = vmatpush1.bf16.msra.mxu0 %v4486
        %4552 = vmatprep.subr.bf16.mxu0 %v4489
        %4553 = vmatpush1.bf16.msra.mxu0 %v4488
        %4554 = vmatprep.subr.bf16.mxu0 %v4491
        %4555 = vmatpush1.bf16.msra.mxu0 %v4490
        %4556 = vmatprep.subr.bf16.mxu0 %v4493
        %4557 = vmatpush1.bf16.msra.mxu0 %v4492
        %4558 = vmatprep.subr.bf16.mxu0 %v4495
        %4559 = vmatpush1.bf16.msra.mxu0 %v4494
        %4560 = vmatprep.subr.bf16.mxu0 %v4497
        %4561 = vmatpush1.bf16.msra.mxu0 %v4496
        %4562 = vmatprep.subr.bf16.mxu0 %v4499
        %4563 = vmatpush1.bf16.msra.mxu0 %v4498
        %4564 = vmatprep.subr.bf16.mxu0 %v4501
        %4565 = vmatpush1.bf16.msra.mxu0 %v4500
        %4566 = vmatprep.subr.bf16.mxu0 %v4503
        %4567 = vmatpush1.bf16.msra.mxu0 %v4502
        %4568 = vmatprep.subr.bf16.mxu0 %v4505
        %4569 = vmatpush1.bf16.msra.mxu0 %v4504
        %4570 = vmatprep.subr.bf16.mxu0 %v4507
        %4571 = vmatpush1.bf16.msra.mxu0 %v4506
        %4572 = vmatprep.mubr.bf16.mxu0 %v4373
        %4573 = vmatmul.mubr.bf16.gmra.mrb[0].mxu0 %v4372
        %v4574 = vpop.f32.mrb[0].mxu0
        %v4575 = vadd.f32 0.0, %v4574
        %v4576 = vpop.f32.mrb[0].mxu0
        %v4577 = vadd.f32 0.0, %v4576
        %v4578 = vpop.f32.mrb[0].mxu0
        %v4579 = vadd.f32 0.0, %v4578
        %v4580 = vpop.f32.mrb[0].mxu0
        %v4581 = vadd.f32 0.0, %v4580
        %4582 = vmatprep.mubr.bf16.mxu0 %v4375
        %4583 = vmatmul.mubr.bf16.gmra.mrb[0].mxu0 %v4374
        %v4584 = vpop.f32.mrb[0].mxu0
        %v4585 = vadd.f32 0.0, %v4584
        %v4586 = vpop.f32.mrb[0].mxu0
        %v4587 = vadd.f32 0.0, %v4586
        %v4588 = vpop.f32.mrb[0].mxu0
        %v4589 = vadd.f32 0.0, %v4588
        %v4590 = vpop.f32.mrb[0].mxu0
        %v4591 = vadd.f32 0.0, %v4590
        %4592 = vdwg.mxu0
        %v4593 = vadd.f32 %v4259, %v4575
        %v4594 = vadd.f32 %v4260, %v4577
        %v4595 = vadd.f32 %v4261, %v4579
        %v4596 = vadd.f32 %v4262, %v4581
        %v4597 = vadd.f32 %v4263, %v4585
        %v4598 = vadd.f32 %v4264, %v4587
        %v4599 = vadd.f32 %v4265, %v4589
        %v4600 = vadd.f32 %v4266, %v4591
        %v4601 = vld [vmem:[#allocation2] sm:$0xee]
        %v4602 = vld [vmem:[#allocation2 + $0x18] sm:$0xee]
        %v4603 = vld [vmem:[#allocation2 + $0x30] sm:$0xee]
        %v4604 = vld [vmem:[#allocation2 + $0x48] sm:$0xee]
        %v4613 = vrot.slane %v4601, 5
        %v4614 = vrot.slane %v4613, 4
        %v4615 = vrot.slane %v4268, 5
        %v4616 = vsel %vm2686, %v4614, %v4615
        %v4617 = vrot.slane %v4602, 5
        %v4618 = vrot.slane %v4617, 4
        %v4619 = vrot.slane %v4270, 5
        %v4620 = vsel %vm2686, %v4618, %v4619
        %v4621 = vrot.slane %v4603, 5
        %v4622 = vrot.slane %v4621, 4
        %v4623 = vrot.slane %v4272, 5
        %v4624 = vsel %vm2686, %v4622, %v4623
        %v4625 = vrot.slane %v4604, 5
        %v4626 = vrot.slane %v4625, 4
        %v4627 = vrot.slane %v4274, 5
        %v4628 = vsel %vm2686, %v4626, %v4627
        %s4629 = scalar_lea.vmem [#allocation9], 512
        %v4630 = vld [vmem:[%s4629] sm:$0xff]
        %v4631 = vld [vmem:[%s4629 + $0x8] sm:$0xff]
        %v4632 = vld [vmem:[%s4629 + $0x10] sm:$0xff]
        %v4633 = vld [vmem:[%s4629 + $0x18] sm:$0xff]
        %v4634 = vld [vmem:[%s4629 + $0x20] sm:$0xff]
        %v4635 = vld [vmem:[%s4629 + $0x28] sm:$0xff]
        %v4636 = vld [vmem:[%s4629 + $0x30] sm:$0xff]
        %v4637 = vld [vmem:[%s4629 + $0x38] sm:$0xff]
        %v4638 = vld [vmem:[%s4629 + $0x40] sm:$0xff]
        %v4639 = vld [vmem:[%s4629 + $0x48] sm:$0xff]
        %v4640 = vld [vmem:[%s4629 + $0x50] sm:$0xff]
        %v4641 = vld [vmem:[%s4629 + $0x58] sm:$0xff]
        %v4642 = vld [vmem:[%s4629 + $0x60] sm:$0xff]
        %v4643 = vld [vmem:[%s4629 + $0x68] sm:$0xff]
        %v4644 = vld [vmem:[%s4629 + $0x70] sm:$0xff]
        %v4645 = vld [vmem:[%s4629 + $0x78] sm:$0xff]
        %v4646 = vld [vmem:[%s4629 + $0x80] sm:$0xff]
        %v4647 = vld [vmem:[%s4629 + $0x88] sm:$0xff]
        %v4648 = vld [vmem:[%s4629 + $0x90] sm:$0xff]
        %v4649 = vld [vmem:[%s4629 + $0x98] sm:$0xff]
        %v4650 = vld [vmem:[%s4629 + $0xa0] sm:$0xff]
        %v4651 = vld [vmem:[%s4629 + $0xa8] sm:$0xff]
        %v4652 = vld [vmem:[%s4629 + $0xb0] sm:$0xff]
        %v4653 = vld [vmem:[%s4629 + $0xb8] sm:$0xff]
        %v4654 = vld [vmem:[%s4629 + $0xc0] sm:$0xff]
        %v4655 = vld [vmem:[%s4629 + $0xc8] sm:$0xff]
        %v4656 = vld [vmem:[%s4629 + $0xd0] sm:$0xff]
        %v4657 = vld [vmem:[%s4629 + $0xd8] sm:$0xff]
        %v4658 = vld [vmem:[%s4629 + $0xe0] sm:$0xff]
        %v4659 = vld [vmem:[%s4629 + $0xe8] sm:$0xff]
        %v4660 = vld [vmem:[%s4629 + $0xf0] sm:$0xff]
        %v4661 = vld [vmem:[%s4629 + $0xf8] sm:$0xff]
        %v4662 = vunpack.c.l.b16 %v4616
        %v4663 = vunpack.c.h.b16 %v4616
        %v4664 = vunpack.c.l.b16 %v4620
        %v4665 = vunpack.c.h.b16 %v4620
        %v4666 = vunpack.c.l.b16 %v4624
        %v4667 = vunpack.c.h.b16 %v4624
        %v4668 = vunpack.c.l.b16 %v4628
        %v4669 = vunpack.c.h.b16 %v4628
        %v4670 = vpack.c.b16 %v4664, %v4662
        %v4671 = vpack.c.b16 %v4665, %v4663
        %v4672 = vpack.c.b16 %v4668, %v4666
        %v4673 = vpack.c.b16 %v4669, %v4667
        %v4710 = vunpack.c.l.b16 %v4630
        %v4711 = vunpack.c.h.b16 %v4630
        %v4712 = vunpack.c.l.b16 %v4631
        %v4713 = vunpack.c.h.b16 %v4631
        %v4714 = vunpack.c.l.b16 %v4632
        %v4715 = vunpack.c.h.b16 %v4632
        %v4716 = vunpack.c.l.b16 %v4633
        %v4717 = vunpack.c.h.b16 %v4633
        %v4718 = vunpack.c.l.b16 %v4634
        %v4719 = vunpack.c.h.b16 %v4634
        %v4720 = vunpack.c.l.b16 %v4635
        %v4721 = vunpack.c.h.b16 %v4635
        %v4722 = vunpack.c.l.b16 %v4636
        %v4723 = vunpack.c.h.b16 %v4636
        %v4724 = vunpack.c.l.b16 %v4637
        %v4725 = vunpack.c.h.b16 %v4637
        %v4726 = vunpack.c.l.b16 %v4638
        %v4727 = vunpack.c.h.b16 %v4638
        %v4728 = vunpack.c.l.b16 %v4639
        %v4729 = vunpack.c.h.b16 %v4639
        %v4730 = vunpack.c.l.b16 %v4640
        %v4731 = vunpack.c.h.b16 %v4640
        %v4732 = vunpack.c.l.b16 %v4641
        %v4733 = vunpack.c.h.b16 %v4641
        %v4734 = vunpack.c.l.b16 %v4642
        %v4735 = vunpack.c.h.b16 %v4642
        %v4736 = vunpack.c.l.b16 %v4643
        %v4737 = vunpack.c.h.b16 %v4643
        %v4738 = vunpack.c.l.b16 %v4644
        %v4739 = vunpack.c.h.b16 %v4644
        %v4740 = vunpack.c.l.b16 %v4645
        %v4741 = vunpack.c.h.b16 %v4645
        %v4742 = vunpack.c.l.b16 %v4646
        %v4743 = vunpack.c.h.b16 %v4646
        %v4744 = vunpack.c.l.b16 %v4647
        %v4745 = vunpack.c.h.b16 %v4647
        %v4746 = vunpack.c.l.b16 %v4648
        %v4747 = vunpack.c.h.b16 %v4648
        %v4748 = vunpack.c.l.b16 %v4649
        %v4749 = vunpack.c.h.b16 %v4649
        %v4750 = vunpack.c.l.b16 %v4650
        %v4751 = vunpack.c.h.b16 %v4650
        %v4752 = vunpack.c.l.b16 %v4651
        %v4753 = vunpack.c.h.b16 %v4651
        %v4754 = vunpack.c.l.b16 %v4652
        %v4755 = vunpack.c.h.b16 %v4652
        %v4756 = vunpack.c.l.b16 %v4653
        %v4757 = vunpack.c.h.b16 %v4653
        %v4758 = vunpack.c.l.b16 %v4654
        %v4759 = vunpack.c.h.b16 %v4654
        %v4760 = vunpack.c.l.b16 %v4655
        %v4761 = vunpack.c.h.b16 %v4655
        %v4762 = vunpack.c.l.b16 %v4656
        %v4763 = vunpack.c.h.b16 %v4656
        %v4764 = vunpack.c.l.b16 %v4657
        %v4765 = vunpack.c.h.b16 %v4657
        %v4766 = vunpack.c.l.b16 %v4658
        %v4767 = vunpack.c.h.b16 %v4658
        %v4768 = vunpack.c.l.b16 %v4659
        %v4769 = vunpack.c.h.b16 %v4659
        %v4770 = vunpack.c.l.b16 %v4660
        %v4771 = vunpack.c.h.b16 %v4660
        %v4772 = vunpack.c.l.b16 %v4661
        %v4773 = vunpack.c.h.b16 %v4661
        %v4774 = vpack.c.b16 %v4712, %v4710
        %v4775 = vpack.c.b16 %v4713, %v4711
        %v4776 = vpack.c.b16 %v4716, %v4714
        %v4777 = vpack.c.b16 %v4717, %v4715
        %v4778 = vpack.c.b16 %v4720, %v4718
        %v4779 = vpack.c.b16 %v4721, %v4719
        %v4780 = vpack.c.b16 %v4724, %v4722
        %v4781 = vpack.c.b16 %v4725, %v4723
        %v4782 = vpack.c.b16 %v4728, %v4726
        %v4783 = vpack.c.b16 %v4729, %v4727
        %v4784 = vpack.c.b16 %v4732, %v4730
        %v4785 = vpack.c.b16 %v4733, %v4731
        %v4786 = vpack.c.b16 %v4736, %v4734
        %v4787 = vpack.c.b16 %v4737, %v4735
        %v4788 = vpack.c.b16 %v4740, %v4738
        %v4789 = vpack.c.b16 %v4741, %v4739
        %v4790 = vpack.c.b16 %v4744, %v4742
        %v4791 = vpack.c.b16 %v4745, %v4743
        %v4792 = vpack.c.b16 %v4748, %v4746
        %v4793 = vpack.c.b16 %v4749, %v4747
        %v4794 = vpack.c.b16 %v4752, %v4750
        %v4795 = vpack.c.b16 %v4753, %v4751
        %v4796 = vpack.c.b16 %v4756, %v4754
        %v4797 = vpack.c.b16 %v4757, %v4755
        %v4798 = vpack.c.b16 %v4760, %v4758
        %v4799 = vpack.c.b16 %v4761, %v4759
        %v4800 = vpack.c.b16 %v4764, %v4762
        %v4801 = vpack.c.b16 %v4765, %v4763
        %v4802 = vpack.c.b16 %v4768, %v4766
        %v4803 = vpack.c.b16 %v4769, %v4767
        %v4804 = vpack.c.b16 %v4772, %v4770
        %v4805 = vpack.c.b16 %v4773, %v4771
        %4838 = vmatprep.subr.bf16.mxu0 %v4775
        %4839 = vmatpush1.bf16.msra.mxu0 %v4774
        %4840 = vmatprep.subr.bf16.mxu0 %v4777
        %4841 = vmatpush1.bf16.msra.mxu0 %v4776
        %4842 = vmatprep.subr.bf16.mxu0 %v4779
        %4843 = vmatpush1.bf16.msra.mxu0 %v4778
        %4844 = vmatprep.subr.bf16.mxu0 %v4781
        %4845 = vmatpush1.bf16.msra.mxu0 %v4780
        %4846 = vmatprep.subr.bf16.mxu0 %v4783
        %4847 = vmatpush1.bf16.msra.mxu0 %v4782
        %4848 = vmatprep.subr.bf16.mxu0 %v4785
        %4849 = vmatpush1.bf16.msra.mxu0 %v4784
        %4850 = vmatprep.subr.bf16.mxu0 %v4787
        %4851 = vmatpush1.bf16.msra.mxu0 %v4786
        %4852 = vmatprep.subr.bf16.mxu0 %v4789
        %4853 = vmatpush1.bf16.msra.mxu0 %v4788
        %4854 = vmatprep.subr.bf16.mxu0 %v4791
        %4855 = vmatpush1.bf16.msra.mxu0 %v4790
        %4856 = vmatprep.subr.bf16.mxu0 %v4793
        %4857 = vmatpush1.bf16.msra.mxu0 %v4792
        %4858 = vmatprep.subr.bf16.mxu0 %v4795
        %4859 = vmatpush1.bf16.msra.mxu0 %v4794
        %4860 = vmatprep.subr.bf16.mxu0 %v4797
        %4861 = vmatpush1.bf16.msra.mxu0 %v4796
        %4862 = vmatprep.subr.bf16.mxu0 %v4799
        %4863 = vmatpush1.bf16.msra.mxu0 %v4798
        %4864 = vmatprep.subr.bf16.mxu0 %v4801
        %4865 = vmatpush1.bf16.msra.mxu0 %v4800
        %4866 = vmatprep.subr.bf16.mxu0 %v4803
        %4867 = vmatpush1.bf16.msra.mxu0 %v4802
        %4868 = vmatprep.subr.bf16.mxu0 %v4805
        %4869 = vmatpush1.bf16.msra.mxu0 %v4804
        %4870 = vmatprep.mubr.bf16.mxu0 %v4671
        %4871 = vmatmul.mubr.bf16.gmra.mrb[0].mxu0 %v4670
        %v4872 = vpop.f32.mrb[0].mxu0
        %v4873 = vadd.f32 0.0, %v4872
        %v4874 = vpop.f32.mrb[0].mxu0
        %v4875 = vadd.f32 0.0, %v4874
        %v4876 = vpop.f32.mrb[0].mxu0
        %v4877 = vadd.f32 0.0, %v4876
        %v4878 = vpop.f32.mrb[0].mxu0
        %v4879 = vadd.f32 0.0, %v4878
        %4880 = vmatprep.mubr.bf16.mxu0 %v4673
        %4881 = vmatmul.mubr.bf16.gmra.mrb[0].mxu0 %v4672
        %v4882 = vpop.f32.mrb[0].mxu0
        %v4883 = vadd.f32 0.0, %v4882
        %v4884 = vpop.f32.mrb[0].mxu0
        %v4885 = vadd.f32 0.0, %v4884
        %v4886 = vpop.f32.mrb[0].mxu0
        %v4887 = vadd.f32 0.0, %v4886
        %v4888 = vpop.f32.mrb[0].mxu0
        %v4889 = vadd.f32 0.0, %v4888
        %4890 = vdwg.mxu0
        %v4891 = vadd.f32 %v4593, %v4873
        %v4892 = vadd.f32 %v4594, %v4875
        %v4893 = vadd.f32 %v4595, %v4877
        %v4894 = vadd.f32 %v4596, %v4879
        %v4895 = vadd.f32 %v4597, %v4883
        %v4896 = vadd.f32 %v4598, %v4885
        %v4897 = vadd.f32 %v4599, %v4887
        %v4898 = vadd.f32 %v4600, %v4889
        %v4899 = vtanh.pop %v4891
        %v4900 = vtanh.pop %v4892
        %v4901 = vtanh.pop %v4893
        %v4902 = vtanh.pop %v4894
        %v4903 = vtanh.pop %v4895
        %v4904 = vtanh.pop %v4896
        %v4905 = vtanh.pop %v4897
        %v4906 = vtanh.pop %v4898
        %v4907 = vsub.f32 1.0, %v3827
        %v4908 = vsub.f32 1.0, %v3829
        %v4909 = vsub.f32 1.0, %v3831
        %v4910 = vsub.f32 1.0, %v3833
        %v4911 = vsub.f32 1.0, %v3835
        %v4912 = vsub.f32 1.0, %v3837
        %v4913 = vsub.f32 1.0, %v3839
        %v4914 = vsub.f32 1.0, %v3841
        %v4915 = vmul.f32 %v3890, %v4907
        %v4916 = vmul.f32 %v3891, %v4908
        %v4917 = vmul.f32 %v3892, %v4909
        %v4918 = vmul.f32 %v3893, %v4910
        %v4919 = vmul.f32 %v3894, %v4911
        %v4920 = vmul.f32 %v3895, %v4912
        %v4921 = vmul.f32 %v3896, %v4913
        %v4922 = vmul.f32 %v3897, %v4914
        %v4923 = vmul.f32 %v4899, %v3827
        %v4924 = vmul.f32 %v4900, %v3829
        %v4925 = vmul.f32 %v4901, %v3831
        %v4926 = vmul.f32 %v4902, %v3833
        %v4927 = vmul.f32 %v4903, %v3835
        %v4928 = vmul.f32 %v4904, %v3837
        %v4929 = vmul.f32 %v4905, %v3839
        %v4930 = vmul.f32 %v4906, %v3841
        %v4931 = vadd.f32 %v4915, %v4923
        %v4932 = vadd.f32 %v4916, %v4924
        %v4933 = vadd.f32 %v4917, %v4925
        %v4934 = vadd.f32 %v4918, %v4926
        %v4935 = vadd.f32 %v4919, %v4927
        %v4936 = vadd.f32 %v4920, %v4928
        %v4937 = vadd.f32 %v4921, %v4929
        %v4938 = vadd.f32 %v4922, %v4930
        %4939 = vst [vmem:[%s323] sm:$0xff] %v4931
        %4940 = vst [vmem:[%s323 + $0x8] sm:$0xff] %v4932
        %4941 = vst [vmem:[%s323 + $0x10] sm:$0xff] %v4933
        %4942 = vst [vmem:[%s323 + $0x18] sm:$0xff] %v4934
        %4943 = vst [vmem:[%s323 + $0x20] sm:$0xff] %v4935
        %4944 = vst [vmem:[%s323 + $0x28] sm:$0xff] %v4936
        %4945 = vst [vmem:[%s323 + $0x30] sm:$0xff] %v4937
        %4946 = vst [vmem:[%s323 + $0x38] sm:$0xff] %v4938
        %s4947 = sand.u32 %s149, 1
        %s4948 = scalar_lea.sflag [#allocation5], %s4947
        %s4949 = sand.u32 %s149, 1
        %s4950 = smul.addr %s4949, 64
        %s4951 = scalar_lea.vmem [#allocation12], %s4950
        // Predicated region
        $region61: #{tpu_custom_call.1} parent=39 // pred_check
          %p4952 = pneg %p159
        $region62: #{tpu_custom_call.1} parent=39 // pred_check_branch
          %4954 = sbr.rel (%p4952) target = $region64
        $region63: #{tpu_custom_call.1} parent=39 // pred_region
          %s4956 = ssub.s32 1024, 1024
          %4957 = vsyncadd %s4948, %s4956
          %s4958 = smul.addr %s26, 8
          %s4959 = smul.addr %s4958, 128
          %s4960 = scalar_lea.hbm %s5, %s4959
          %s4961 = sshll.u32 %s4951, 4
          %s4962 = int_to_ptr.vmem [resolvable:$true] %s4961
          %4967 = dma.vmem_to_hbm [thread:$0]  %s4962, 1024, %s4960, %s4948, 256, 256, 16
        $region64: #{tpu_custom_call.1} parent=39 // pred_fallthru
          _
      $region40: #{tpu_custom_call.1} parent=5 // pred_fallthru
        _
      %p4968 = scmp.le.s32.totalorder 2, %s21
      // Predicated region
      $region65: #{tpu_custom_call.1} parent=5 // pred_check
        %p4969 = pneg %p4968
      $region66: #{tpu_custom_call.1} parent=5 // pred_check_branch
        %4971 = sbr.rel (%p4969) target = $region68
      $region67: #{tpu_custom_call.1} parent=5 // pred_region
        %s4972 = ssub.s32 %s21, 2
        // Predicated region
        $region69: #{tpu_custom_call.1} parent=67 // pred_check
          %p4973 = pneg %p165
        $region70: #{tpu_custom_call.1} parent=67 // pred_check_branch
          %4975 = sbr.rel (%p4973) target = $region72
        $region71: #{tpu_custom_call.1} parent=67 // pred_region
          %s4976 = sand.u32 %s150, 1
          %s4977 = scalar_lea.sflag [#allocation5], %s4976
          %s4978 = sand.u32 %s150, 1
          %s4979 = smul.addr %s4978, 64
          %s4980 = scalar_lea.vmem [#allocation12], %s4979
          %4981 = dma.done %s4977, 1024
        $region72: #{tpu_custom_call.1} parent=67 // pred_fallthru
          _
      $region68: #{tpu_custom_call.1} parent=5 // pred_fallthru
        _
    $region6: #{tpu_custom_call.1} parent=1 // loop_footer
      %s25 = sadd.s32 1, %s21
    $region7: #{tpu_custom_call.1} parent=1 // loop_footer_branch
      %20 = sbr.rel target = $region3
    $region8: #{tpu_custom_call.1} parent=1 // loop_exit
      _
    %4982 = vsyncpa [#allocation4], 1
    %s4983 = scalar_lea.sflag [#allocation4], 1
    %4984 = vsyncpa %s4983, 1
    %4985 = vsyncpa [#allocation7], 1
    %s4986 = scalar_lea.sflag [#allocation7], 1
    %4987 = vsyncpa %s4986, 1
    %4988 = vsyncpa [#allocation10], 1
    %4989 = vsyncpa [#allocation5], 1
    %s4990 = scalar_lea.sflag [#allocation5], 1
    %4991 = vsyncpa %s4990, 1

</llo_original>
